<compile_context>
chip_gen: v7x
topology: tpu7x:2x2x1
jax: 0.10.0
libtpu: 0.0.40
codegen_flags: <defaults>
</compile_context>

<pallas_src>
import math

import jax
import jax.numpy as jnp
from jax import lax
from jax.experimental import pallas as pl
from jax.experimental.pallas import tpu as pltpu


CONFIG = dict(
    embedding_dim_stock=8, embedding_dim_group=4,
    embedding_dim_day=4, embedding_dim_month=4,
    hidden_bilstm=16, first_layer_hidden_size=16,
    second_layer_hidden_size=16, third_layer_hidden_size=16,
    attent_hidden_size=32, dropout=0.1,
)

_BC = 8            # batch chunk per grid step (one vreg sublane group)
_NUM_LAYERS = 4


def _round_up(x, m):
    return -(-x // m) * m


# -----------------------------------------------------------------------------
# Fused kernel: 4 x bidirectional LSTM + attention (QK + folded V*fc) per chunk
# -----------------------------------------------------------------------------
def _make_kernel(T, BC, d_pad, H, A):
    G = 2 * H          # 32 : per-gate width (fwd|bwd interleaved)
    GW = 8 * H         # 128: fused gate slab width (exactly one vreg of lanes)
    N = T * BC
    scale = float(A) ** -0.5
    assert GW == 128 and 2 * A + 1 <= GW

    def kernel(x_ref, w_ref, b_ref, out_ref):
        # ---- masks built ONCE and reused by all four layers ----
        laneG = lax.broadcasted_iota(jnp.int32, (BC, GW), 1)
        fwd_cols = (laneG % G) < H                 # fwd sub-columns of every gate
        laneH = lax.broadcasted_iota(jnp.int32, (BC, G), 1)
        fwd_half = laneH < H                       # fwd half of the h/c slab
        rb = lax.broadcasted_iota(jnp.int32, (N, N), 0) % BC
        cb = lax.broadcasted_iota(jnp.int32, (N, N), 1) % BC
        same_batch = rb == cb                      # rows are (t, b)-ordered

        def bilstm(x_flat, wih, whh, bias):
            """One bidirectional LSTM layer on (T*BC, Din) activations.

            Fused gate slab columns (8H = 128) are interleaved per gate:
                [i_f i_b | f_f f_b | g_f g_b | o_f o_b]
            so h and c live as (BC, 2H) = [fwd | bwd] feeding the block-diagonal
            recurrent weight directly.
            """
            # Hoisted input->hidden projection: all timesteps, both directions.
            xp = jnp.dot(x_flat, wih, preferred_element_type=jnp.float32) + bias
            # Hoisted fwd/bwd merge (off the serial chain): fwd gates read x[t],
            # bwd gates read x[T-1-t].  Row slices are sublane-aligned (BC = 8).
            xg = [jnp.where(fwd_cols,
                            xp[t * BC:(t + 1) * BC, :],
                            xp[(T - 1 - t) * BC:(T - t) * BC, :])
                  for t in range(T)]

            h = jnp.zeros((BC, G), jnp.float32)
            c = jnp.zeros((BC, G), jnp.float32)
            hs = [None] * T
            for t in range(T):                     # static unroll (T small, fixed)
                gates = xg[t] + jnp.dot(h, whh,
                                        preferred_element_type=jnp.float32)
                sig = jax.nn.sigmoid(gates)        # ONE wide EUP pass for i/f/o
                g = jnp.tanh(gates[:, 2 * G:3 * G])
                c = sig[:, G:2 * G] * c + sig[:, 0:G] * g
                h = sig[:, 3 * G:4 * G] * jnp.tanh(c)
                hs[t] = h
            # fwd half of step t belongs to seq pos t; bwd half to seq pos T-1-t.
            rows = [jnp.where(fwd_half, hs[t], hs[T - 1 - t]) for t in range(T)]
            return jnp.concatenate(rows, axis=0)   # (N, 2H)

        x = x_ref[...]                             # (N, d_pad), (t, b)-ordered rows
        off = 0
        for l in range(_NUM_LAYERS):
            din = d_pad if l == 0 else G
            wih = w_ref[off:off + din, :]          # tile-aligned static ref slices
            whh = w_ref[off + din:off + din + G, :]
            x = bilstm(x, wih, whh, b_ref[l:l + 1, :])
            off += din + G

        # ---- attention: fused [Q | K | V@fc.T | 0] projection, masked softmax ----
        attn_w = w_ref[off:off + G, :]             # (2H, 128)
        qkv = (jnp.dot(x, attn_w, preferred_element_type=jnp.float32)
               + b_ref[4:5, :])                    # (N, 128), lane 2A = x @ (wfc@wv).T
        q = qkv[:, 0:A]
        k = qkv[:, A:2 * A]
        scores = jnp.einsum('na,ma->nm', q, k,
                            preferred_element_type=jnp.float32) * scale
        scores = jnp.where(same_batch, scores, -1e30)
        m = jnp.max(scores, axis=-1, keepdims=True)
        e = jnp.exp(scores - m)
        w_attn = e / jnp.sum(e, axis=-1, keepdims=True)
        # One (N,N)x(N,128) matmul; lane 2A carries the folded fc output.
        # The (T*BC, 128) store is fully lane-dense and (8,128)-aligned.
        out_ref[...] = jnp.dot(w_attn, qkv, preferred_element_type=jnp.float32)

    return kernel


# -----------------------------------------------------------------------------
# Deterministic parameter construction (mirrors PyTorch __init__) + slab packing
# -----------------------------------------------------------------------------
def _uniform(key, shape, k):
    return jax.random.uniform(key, shape, jnp.float32, minval=-k, maxval=k)


def _init_lstm_dir(key, din, h):
    k = 1.0 / math.sqrt(h)
    k1, k2, k3, k4 = jax.random.split(key, 4)
    return {"w_ih": _uniform(k1, (4 * h, din), k),   # PyTorch layout (4H, Din)
            "w_hh": _uniform(k2, (4 * h, h), k),     # PyTorch layout (4H, H)
            "b_ih": _uniform(k3, (4 * h,), k),
            "b_hh": _uniform(k4, (4 * h,), k)}


def _init_linear(key, din, dout):
    k = 1.0 / math.sqrt(din)
    k1, k2 = jax.random.split(key)
    return _uniform(k1, (dout, din), k), _uniform(k2, (dout,), k)


def _pack_bilstm(p_f, p_b):
    """Pack one bidirectional layer into the fused/interleaved kernel layout."""
    h = p_f["w_hh"].shape[1]
    din = p_f["w_ih"].shape[1]
    wih_f, wih_b = p_f["w_ih"].T, p_b["w_ih"].T      # (Din, 4H)
    whh_f, whh_b = p_f["w_hh"].T, p_b["w_hh"].T      # (H, 4H)
    bf = p_f["b_ih"] + p_f["b_hh"]
    bb = p_b["b_ih"] + p_b["b_hh"]
    wih = jnp.zeros((din, 8 * h), jnp.float32)
    whh = jnp.zeros((2 * h, 8 * h), jnp.float32)     # block-diagonal per direction
    bias = jnp.zeros((8 * h,), jnp.float32)
    for g in range(4):                               # PyTorch gate order i, f, g, o
        cf = slice(2 * g * h, 2 * g * h + h)
        cb = slice(2 * g * h + h, 2 * (g + 1) * h)
        sg = slice(g * h, (g + 1) * h)
        wih = wih.at[:, cf].set(wih_f[:, sg]).at[:, cb].set(wih_b[:, sg])
        whh = whh.at[:h, cf].set(whh_f[:, sg]).at[h:, cb].set(whh_b[:, sg])
        bias = bias.at[cf].set(bf[sg]).at[cb].set(bb[sg])
    return wih, whh, bias


def init_params(key, feature_dim, num_stocks, num_group, num_day, num_month, cfg):
    keys = jax.random.split(key, 16)
    raw = {
        "emb_stock": jax.random.normal(
            keys[0], (num_stocks, cfg["embedding_dim_stock"]), jnp.float32),
        "emb_group": jax.random.normal(
            keys[1], (num_group, cfg["embedding_dim_group"]), jnp.float32),
        "emb_day": jax.random.normal(
            keys[2], (num_day, cfg["embedding_dim_day"]), jnp.float32),
        "emb_month": jax.random.normal(
            keys[3], (num_month, cfg["embedding_dim_month"]), jnp.float32),
    }
    input_dim = (cfg["embedding_dim_stock"] + cfg["embedding_dim_group"]
                 + cfg["embedding_dim_day"] + cfg["embedding_dim_month"]
                 + feature_dim)
    H = cfg["hidden_bilstm"]
    A = cfg["attent_hidden_size"]
    assert (cfg["first_layer_hidden_size"] == H
            and cfg["second_layer_hidden_size"] == H
            and cfg["third_layer_hidden_size"] == H and 8 * H == 128)
    dims = [(input_dim, H), (2 * H, H), (2 * H, H), (2 * H, H)]
    raw["lstm"] = []
    for li, (din, h) in enumerate(dims):
        pf = _init_lstm_dir(keys[4 + 2 * li], din, h)
        pb = _init_lstm_dir(keys[5 + 2 * li], din, h)
        raw["lstm"].append((pf, pb))

    d_attn = 2 * H
    wq, bq = _init_linear(keys[12], d_attn, A)
    wk, bk = _init_linear(keys[13], d_attn, A)
    wv, bv = _init_linear(keys[14], d_attn, A)
    wfc, bfc = _init_linear(keys[15], A, 1)
    raw["attn"] = {"wq": wq, "bq": bq, "wk": wk, "bk": bk, "wv": wv, "bv": bv,
                   "wfc": wfc, "bfc": bfc}

    # ---- pack everything into two pre-padded slabs (3 input DMAs total) ----
    GW = 8 * H
    d_pad = _round_up(input_dim, 8)
    w_rows, b_rows = [], []
    for li, (pf, pb) in enumerate(raw["lstm"]):
        wih, whh, bias = _pack_bilstm(pf, pb)
        if li == 0 and wih.shape[0] < d_pad:
            wih = jnp.concatenate(
                [wih, jnp.zeros((d_pad - wih.shape[0], GW), jnp.float32)], axis=0)
        w_rows += [wih, whh]
        b_rows.append(bias)
    # Fold the final Linear(A,1) into the V projection (dropout is identity at
    # inference and softmax rows sum to 1, so the bias passes through exactly).
    wvf = (wfc @ wv).T                                   # (2H, 1)
    attn_w = jnp.concatenate(
        [wq.T, wk.T, wvf, jnp.zeros((d_attn, GW - 2 * A - 1), jnp.float32)], axis=1)
    w_rows.append(attn_w)
    b_rows.append(jnp.concatenate([bq, bk, jnp.zeros((GW - 2 * A,), jnp.float32)]))
    while len(b_rows) < 8:
        b_rows.append(jnp.zeros((GW,), jnp.float32))

    packed = {
        "emb_stock": raw["emb_stock"], "emb_group": raw["emb_group"],
        "emb_day": raw["emb_day"], "emb_month": raw["emb_month"],
        "w_slab": jnp.concatenate(w_rows, axis=0),       # (d_pad + 256, 128)
        "b_slab": jnp.stack(b_rows, axis=0),             # (8, 128)
        "b_fold": (wfc @ bv + bfc)[0],                   # folded scalar bias
    }
    # NOTE: the PyTorch module defines BatchNorm1d / Softsign but never uses them
    # in forward(); they have no effect on the computation.
    return raw, packed


# -----------------------------------------------------------------------------
# Forward pass (single fused pallas_call over batch chunks)
# -----------------------------------------------------------------------------
def forward(packed, stock_name, group_name, day_name, month_name, feature):
    cfg = CONFIG
    H, A = cfg["hidden_bilstm"], cfg["attent_hidden_size"]
    stock_emb = jnp.take(packed["emb_stock"], stock_name, axis=0)
    group_emb = jnp.take(packed["emb_group"], group_name, axis=0)
    day_emb = jnp.take(packed["emb_day"], day_name, axis=0)
    month_emb = jnp.take(packed["emb_month"], month_name, axis=0)
    combined = jnp.concatenate(
        [stock_emb, group_emb, day_emb, month_emb, feature], axis=2)   # (B, T, Dc)
    B, T, Dc = combined.shape
    d_pad = _round_up(Dc, 8)
    BC = _BC
    BP = _round_up(max(B, BC), BC)          # pad batch to sublane-aligned chunks
    NC = BP // BC

    x = combined
    if d_pad > Dc:
        x = jnp.pad(x, ((0, 0), (0, 0), (0, d_pad - Dc)))
    if BP > B:
        x = jnp.pad(x, ((0, BP - B), (0, 0), (0, 0)))
    # (BP, T, D) -> (NC, T*BC, D); rows within a chunk are (t, b_local)-ordered.
    x = x.reshape(NC, BC, T, d_pad).transpose(0, 2, 1, 3).reshape(NC, T * BC, d_pad)

    kernel = _make_kernel(T, BC, d_pad, H, A)
    R = packed["w_slab"].shape[0]
    out = pl.pallas_call(
        kernel,
        grid=(NC,),
        in_specs=[
            pl.BlockSpec((None, T * BC, d_pad), lambda i: (i, 0, 0)),
            pl.BlockSpec((R, 128), lambda i: (0, 0)),
            pl.BlockSpec((8, 128), lambda i: (0, 0)),
        ],
        out_specs=pl.BlockSpec((None, T * BC, 128), lambda i: (i, 0, 0)),
        out_shape=jax.ShapeDtypeStruct((NC, T * BC, 128), jnp.float32),
        compiler_params=pltpu.CompilerParams(
            dimension_semantics=("parallel",)),
    )(x, packed["w_slab"], packed["b_slab"])

    fc = out[:, :, 2 * A]                                   # folded fc lane
    fc = fc.reshape(NC, T, BC).transpose(0, 2, 1).reshape(BP, T)[:B]
    fc = fc + packed["b_fold"]
    res = fc[..., None]                                     # (B, T, 1)
    # TODO(synk): dropout is identity here (inference/eval semantics).
    # torch: context_vector.squeeze(1) removes dim 1 only when seq_len == 1.
    if res.shape[1] == 1:
        res = res[:, 0, :]
    return res


# -----------------------------------------------------------------------------
# Pure-JAX reference (built from the raw PyTorch-layout params) for validation
# -----------------------------------------------------------------------------
def _lstm_dir_ref(x_tbd, p, reverse):
    T, B, _ = x_tbd.shape
    h_sz = p["w_hh"].shape[1]
    wih, whh = p["w_ih"].T, p["w_hh"].T
    b = (p["b_ih"] + p["b_hh"])[None, :]
    h = jnp.zeros((B, h_sz), jnp.float32)
    c = jnp.zeros((B, h_sz), jnp.float32)
    outs = [None] * T
    order = range(T - 1, -1, -1) if reverse else range(T)
    for t in order:
        gates = x_tbd[t] @ wih + h @ whh + b
        i = jax.nn.sigmoid(gates[:, :h_sz])
        f = jax.nn.sigmoid(gates[:, h_sz:2 * h_sz])
        g = jnp.tanh(gates[:, 2 * h_sz:3 * h_sz])
        o = jax.nn.sigmoid(gates[:, 3 * h_sz:4 * h_sz])
        c = f * c + i * g
        h = o * jnp.tanh(c)
        outs[t] = h
    return jnp.stack(outs, axis=0)


def forward_ref(raw, stock_name, group_name, day_name, month_name, feature):
    stock_emb = jnp.take(raw["emb_stock"], stock_name, axis=0)
    group_emb = jnp.take(raw["emb_group"], group_name, axis=0)
    day_emb = jnp.take(raw["emb_day"], day_name, axis=0)
    month_emb = jnp.take(raw["emb_month"], month_name, axis=0)
    x = jnp.concatenate([stock_emb, group_emb, day_emb, month_emb, feature], axis=2)
    x = jnp.transpose(x, (1, 0, 2))
    for pf, pb in raw["lstm"]:
        x = jnp.concatenate(
            [_lstm_dir_ref(x, pf, False), _lstm_dir_ref(x, pb, True)], axis=-1)
    x = jnp.transpose(x, (1, 0, 2))                       # (B, T, 2*H3)
    ap = raw["attn"]
    q = x @ ap["wq"].T + ap["bq"]
    k = x @ ap["wk"].T + ap["bk"]
    v = x @ ap["wv"].T + ap["bv"]
    scores = jnp.einsum('bta,bsa->bts', q, k) / (k.shape[-1] ** 0.5)
    w = jax.nn.softmax(scores, axis=-1)
    ctx = jnp.einsum('bts,bsa->bta', w, v)
    fc = ctx @ ap["wfc"].T + ap["bfc"]                    # (B, T, 1)
    if fc.shape[1] == 1:
        fc = fc[:, 0, :]
    return fc


if __name__ == "__main__":
    B, T = 2, 8
    feature_dim = 12
    num_stocks, num_group, num_day, num_month = 10, 5, 31, 12

    key = jax.random.PRNGKey(0)
    kp, k1, k2, k3, k4, k5 = jax.random.split(key, 6)

    raw, packed = init_params(kp, feature_dim, num_stocks, num_group, num_day,
                              num_month, CONFIG)

    stock = jax.random.randint(k1, (B, T), 0, num_stocks)
    group = jax.random.randint(k2, (B, T), 0, num_group)
    day = jax.random.randint(k3, (B, T), 0, num_day)
    month = jax.random.randint(k4, (B, T), 0, num_month)
    feature = jax.random.normal(k5, (B, T, feature_dim), jnp.float32)

    out = jax.jit(forward)(packed, stock, group, day, month, feature)
    out = jax.block_until_ready(out)
    assert out.shape == (B, T, 1), out.shape
    assert bool(jnp.all(jnp.isfinite(out)))

    ref = jax.block_until_ready(
        jax.jit(forward_ref)(raw, stock, group, day, month, feature))
    assert ref.shape == out.shape
    max_err = float(jnp.max(jnp.abs(out - ref)))
    assert max_err < 2e-3, "mismatch vs pure-JAX reference: %g" % max_err

    print("KERNEL_OK")
</pallas_src>

<mosaic_0001>
module attributes {stable_mosaic.version = 11 : i64} {
  func.func @kernel(%arg0: i32, %arg1: memref<1x64x32xf32, #tpu.memory_space<vmem>>, %arg2: memref<288x128xf32, #tpu.memory_space<vmem>>, %arg3: memref<8x128xf32, #tpu.memory_space<vmem>>, %arg4: memref<1x64x128xf32, #tpu.memory_space<vmem>>) attributes {dimension_semantics = [#tpu.dimension_semantics<parallel>], iteration_bounds = array<i64: 1>, scalar_prefetch = 0 : i64, scratch_operands = 0 : i64, tpu.core_type = #tpu.core_type<tc>, window_params = [{transform_indices = @transform_0, window_bounds = array<i64: 1, 64, 32>}, {pipeline_mode = #tpu.pipeline_mode<synchronous>, transform_indices = @transform_1, window_bounds = array<i64: 288, 128>}, {pipeline_mode = #tpu.pipeline_mode<synchronous>, transform_indices = @transform_2, window_bounds = array<i64: 8, 128>}, {transform_indices = @transform_3, window_bounds = array<i64: 1, 64, 128>}]} {
    %0 = tpu.iota {dimensions = array<i32: 1>} : vector<8x128xi32>
    %c32_i32 = arith.constant 32 : i32
    %c0_i32 = arith.constant 0 : i32
    %1 = arith.cmpi eq, %c32_i32, %c0_i32 : i32
    %c1_i32 = arith.constant 1 : i32
    %2 = arith.select %1, %c1_i32, %c32_i32 : i32
    %3 = vector.broadcast %2 : i32 to vector<8x128xi32>
    %4 = arith.remsi %0, %3 : vector<8x128xi32>
    %c0_i32_0 = arith.constant 0 : i32
    %5 = vector.broadcast %c0_i32_0 : i32 to vector<8x128xi32>
    %6 = arith.cmpi ne, %4, %5 : vector<8x128xi32>
    %c0_i32_1 = arith.constant 0 : i32
    %7 = vector.broadcast %c0_i32_1 : i32 to vector<8x128xi32>
    %8 = arith.cmpi slt, %4, %7 : vector<8x128xi32>
    %c0_i32_2 = arith.constant 0 : i32
    %9 = arith.cmpi slt, %2, %c0_i32_2 : i32
    %10 = vector.broadcast %9 : i1 to vector<8x128xi1>
    %11 = vector.broadcast %10 : vector<8x128xi1> to vector<8x128xi1>
    %12 = arith.xori %8, %11 : vector<8x128xi1>
    %13 = arith.andi %12, %6 : vector<8x128xi1>
    %14 = vector.broadcast %2 : i32 to vector<8x128xi32>
    %15 = arith.addi %4, %14 : vector<8x128xi32>
    %16 = arith.select %13, %15, %4 : vector<8x128xi1>, vector<8x128xi32>
    %c16_i32 = arith.constant 16 : i32
    %17 = vector.broadcast %c16_i32 : i32 to vector<8x128xi32>
    %18 = arith.cmpi slt, %16, %17 : vector<8x128xi32>
    %19 = tpu.iota {dimensions = array<i32: 1>} : vector<8x32xi32>
    %c16_i32_3 = arith.constant 16 : i32
    %20 = vector.broadcast %c16_i32_3 : i32 to vector<8x32xi32>
    %21 = arith.cmpi slt, %19, %20 : vector<8x32xi32>
    %22 = tpu.iota {dimensions = array<i32: 0>} : vector<64x64xi32>
    %c8_i32 = arith.constant 8 : i32
    %c0_i32_4 = arith.constant 0 : i32
    %23 = arith.cmpi eq, %c8_i32, %c0_i32_4 : i32
    %c1_i32_5 = arith.constant 1 : i32
    %24 = arith.select %23, %c1_i32_5, %c8_i32 : i32
    %25 = vector.broadcast %24 : i32 to vector<64x64xi32>
    %26 = arith.remsi %22, %25 : vector<64x64xi32>
    %c0_i32_6 = arith.constant 0 : i32
    %27 = vector.broadcast %c0_i32_6 : i32 to vector<64x64xi32>
    %28 = arith.cmpi ne, %26, %27 : vector<64x64xi32>
    %c0_i32_7 = arith.constant 0 : i32
    %29 = vector.broadcast %c0_i32_7 : i32 to vector<64x64xi32>
    %30 = arith.cmpi slt, %26, %29 : vector<64x64xi32>
    %c0_i32_8 = arith.constant 0 : i32
    %31 = arith.cmpi slt, %24, %c0_i32_8 : i32
    %32 = vector.broadcast %31 : i1 to vector<64x64xi1>
    %33 = vector.broadcast %32 : vector<64x64xi1> to vector<64x64xi1>
    %34 = arith.xori %30, %33 : vector<64x64xi1>
    %35 = arith.andi %34, %28 : vector<64x64xi1>
    %36 = vector.broadcast %24 : i32 to vector<64x64xi32>
    %37 = arith.addi %26, %36 : vector<64x64xi32>
    %38 = arith.select %35, %37, %26 : vector<64x64xi1>, vector<64x64xi32>
    %39 = tpu.iota {dimensions = array<i32: 1>} : vector<64x64xi32>
    %c8_i32_9 = arith.constant 8 : i32
    %c0_i32_10 = arith.constant 0 : i32
    %40 = arith.cmpi eq, %c8_i32_9, %c0_i32_10 : i32
    %c1_i32_11 = arith.constant 1 : i32
    %41 = arith.select %40, %c1_i32_11, %c8_i32_9 : i32
    %42 = vector.broadcast %41 : i32 to vector<64x64xi32>
    %43 = arith.remsi %39, %42 : vector<64x64xi32>
    %c0_i32_12 = arith.constant 0 : i32
    %44 = vector.broadcast %c0_i32_12 : i32 to vector<64x64xi32>
    %45 = arith.cmpi ne, %43, %44 : vector<64x64xi32>
    %c0_i32_13 = arith.constant 0 : i32
    %46 = vector.broadcast %c0_i32_13 : i32 to vector<64x64xi32>
    %47 = arith.cmpi slt, %43, %46 : vector<64x64xi32>
    %c0_i32_14 = arith.constant 0 : i32
    %48 = arith.cmpi slt, %41, %c0_i32_14 : i32
    %49 = vector.broadcast %48 : i1 to vector<64x64xi1>
    %50 = vector.broadcast %49 : vector<64x64xi1> to vector<64x64xi1>
    %51 = arith.xori %47, %50 : vector<64x64xi1>
    %52 = arith.andi %51, %45 : vector<64x64xi1>
    %53 = vector.broadcast %41 : i32 to vector<64x64xi32>
    %54 = arith.addi %43, %53 : vector<64x64xi32>
    %55 = arith.select %52, %54, %43 : vector<64x64xi1>, vector<64x64xi32>
    %56 = arith.cmpi eq, %38, %55 : vector<64x64xi32>
    %c0 = arith.constant 0 : index
    %c0_15 = arith.constant 0 : index
    %c0_16 = arith.constant 0 : index
    %57 = vector.load %arg1[%c0, %c0_15, %c0_16] : memref<1x64x32xf32, #tpu.memory_space<vmem>>, vector<1x64x32xf32>
    %58 = vector.shape_cast %57 : vector<1x64x32xf32> to vector<64x32xf32>
    %c0_17 = arith.constant 0 : index
    %c0_18 = arith.constant 0 : index
    %59 = vector.load %arg2[%c0_17, %c0_18] : memref<288x128xf32, #tpu.memory_space<vmem>>, vector<32x128xf32>
    %c32 = arith.constant 32 : index
    %c0_19 = arith.constant 0 : index
    %60 = vector.load %arg2[%c32, %c0_19] : memref<288x128xf32, #tpu.memory_space<vmem>>, vector<32x128xf32>
    %c0_20 = arith.constant 0 : index
    %c0_21 = arith.constant 0 : index
    %61 = vector.load %arg3[%c0_20, %c0_21] : memref<8x128xf32, #tpu.memory_space<vmem>>, vector<1x128xf32>
    %cst = arith.constant dense<0.000000e+00> : vector<64x128xf32>
    %62 = tpu.matmul %58, %59, %cst {dimension_numbers = #tpu.dot_dimension_numbers<[1], [0], [0], [1], [0, 0, 1, 1], [], []>} : vector<64x32xf32>, vector<32x128xf32>, vector<64x128xf32> -> vector<64x128xf32>
    %63 = vector.broadcast %61 : vector<1x128xf32> to vector<64x128xf32>
    %64 = arith.addf %62, %63 : vector<64x128xf32>
    %65 = vector.extract_strided_slice %64 {offsets = [0, 0], sizes = [8, 128], strides = [1, 1]} : vector<64x128xf32> to vector<8x128xf32>
    %66 = vector.extract_strided_slice %64 {offsets = [56, 0], sizes = [8, 128], strides = [1, 1]} : vector<64x128xf32> to vector<8x128xf32>
    %67 = arith.select %18, %65, %66 : vector<8x128xi1>, vector<8x128xf32>
    %68 = vector.extract_strided_slice %64 {offsets = [8, 0], sizes = [8, 128], strides = [1, 1]} : vector<64x128xf32> to vector<8x128xf32>
    %69 = vector.extract_strided_slice %64 {offsets = [48, 0], sizes = [8, 128], strides = [1, 1]} : vector<64x128xf32> to vector<8x128xf32>
    %70 = arith.select %18, %68, %69 : vector<8x128xi1>, vector<8x128xf32>
    %71 = vector.extract_strided_slice %64 {offsets = [16, 0], sizes = [8, 128], strides = [1, 1]} : vector<64x128xf32> to vector<8x128xf32>
    %72 = vector.extract_strided_slice %64 {offsets = [40, 0], sizes = [8, 128], strides = [1, 1]} : vector<64x128xf32> to vector<8x128xf32>
    %73 = arith.select %18, %71, %72 : vector<8x128xi1>, vector<8x128xf32>
    %74 = vector.extract_strided_slice %64 {offsets = [24, 0], sizes = [8, 128], strides = [1, 1]} : vector<64x128xf32> to vector<8x128xf32>
    %75 = vector.extract_strided_slice %64 {offsets = [32, 0], sizes = [8, 128], strides = [1, 1]} : vector<64x128xf32> to vector<8x128xf32>
    %76 = arith.select %18, %74, %75 : vector<8x128xi1>, vector<8x128xf32>
    %77 = vector.extract_strided_slice %64 {offsets = [32, 0], sizes = [8, 128], strides = [1, 1]} : vector<64x128xf32> to vector<8x128xf32>
    %78 = vector.extract_strided_slice %64 {offsets = [24, 0], sizes = [8, 128], strides = [1, 1]} : vector<64x128xf32> to vector<8x128xf32>
    %79 = arith.select %18, %77, %78 : vector<8x128xi1>, vector<8x128xf32>
    %80 = vector.extract_strided_slice %64 {offsets = [40, 0], sizes = [8, 128], strides = [1, 1]} : vector<64x128xf32> to vector<8x128xf32>
    %81 = vector.extract_strided_slice %64 {offsets = [16, 0], sizes = [8, 128], strides = [1, 1]} : vector<64x128xf32> to vector<8x128xf32>
    %82 = arith.select %18, %80, %81 : vector<8x128xi1>, vector<8x128xf32>
    %83 = vector.extract_strided_slice %64 {offsets = [48, 0], sizes = [8, 128], strides = [1, 1]} : vector<64x128xf32> to vector<8x128xf32>
    %84 = vector.extract_strided_slice %64 {offsets = [8, 0], sizes = [8, 128], strides = [1, 1]} : vector<64x128xf32> to vector<8x128xf32>
    %85 = arith.select %18, %83, %84 : vector<8x128xi1>, vector<8x128xf32>
    %86 = vector.extract_strided_slice %64 {offsets = [56, 0], sizes = [8, 128], strides = [1, 1]} : vector<64x128xf32> to vector<8x128xf32>
    %87 = vector.extract_strided_slice %64 {offsets = [0, 0], sizes = [8, 128], strides = [1, 1]} : vector<64x128xf32> to vector<8x128xf32>
    %88 = arith.select %18, %86, %87 : vector<8x128xi1>, vector<8x128xf32>
    %cst_22 = arith.constant 0.000000e+00 : f32
    %89 = vector.broadcast %cst_22 : f32 to vector<8x32xf32>
    %cst_23 = arith.constant 0.000000e+00 : f32
    %90 = vector.broadcast %cst_23 : f32 to vector<8x32xf32>
    %cst_24 = arith.constant dense<0.000000e+00> : vector<8x128xf32>
    %91 = tpu.matmul %89, %60, %cst_24 {dimension_numbers = #tpu.dot_dimension_numbers<[1], [0], [0], [1], [0, 0, 1, 1], [], []>} : vector<8x32xf32>, vector<32x128xf32>, vector<8x128xf32> -> vector<8x128xf32>
    %92 = arith.addf %67, %91 : vector<8x128xf32>
    %93 = arith.negf %92 : vector<8x128xf32>
    %94 = math.exp %93 : vector<8x128xf32>
    %cst_25 = arith.constant 1.000000e+00 : f32
    %95 = vector.broadcast %cst_25 : f32 to vector<8x128xf32>
    %96 = arith.addf %95, %94 : vector<8x128xf32>
    %97 = arith.divf %95, %96 : vector<8x128xf32>
    %98 = vector.extract_strided_slice %92 {offsets = [0, 64], sizes = [8, 32], strides = [1, 1]} : vector<8x128xf32> to vector<8x32xf32>
    %99 = math.tanh %98 : vector<8x32xf32>
    %100 = vector.extract_strided_slice %97 {offsets = [0, 32], sizes = [8, 32], strides = [1, 1]} : vector<8x128xf32> to vector<8x32xf32>
    %101 = arith.mulf %100, %90 : vector<8x32xf32>
    %102 = vector.extract_strided_slice %97 {offsets = [0, 0], sizes = [8, 32], strides = [1, 1]} : vector<8x128xf32> to vector<8x32xf32>
    %103 = arith.mulf %102, %99 : vector<8x32xf32>
    %104 = arith.addf %101, %103 : vector<8x32xf32>
    %105 = vector.extract_strided_slice %97 {offsets = [0, 96], sizes = [8, 32], strides = [1, 1]} : vector<8x128xf32> to vector<8x32xf32>
    %106 = math.tanh %104 : vector<8x32xf32>
    %107 = arith.mulf %105, %106 : vector<8x32xf32>
    %cst_26 = arith.constant dense<0.000000e+00> : vector<8x128xf32>
    %108 = tpu.matmul %107, %60, %cst_26 {dimension_numbers = #tpu.dot_dimension_numbers<[1], [0], [0], [1], [0, 0, 1, 1], [], []>} : vector<8x32xf32>, vector<32x128xf32>, vector<8x128xf32> -> vector<8x128xf32>
    %109 = arith.addf %70, %108 : vector<8x128xf32>
    %110 = arith.negf %109 : vector<8x128xf32>
    %111 = math.exp %110 : vector<8x128xf32>
    %cst_27 = arith.constant 1.000000e+00 : f32
    %112 = vector.broadcast %cst_27 : f32 to vector<8x128xf32>
    %113 = arith.addf %112, %111 : vector<8x128xf32>
    %114 = arith.divf %112, %113 : vector<8x128xf32>
    %115 = vector.extract_strided_slice %109 {offsets = [0, 64], sizes = [8, 32], strides = [1, 1]} : vector<8x128xf32> to vector<8x32xf32>
    %116 = math.tanh %115 : vector<8x32xf32>
    %117 = vector.extract_strided_slice %114 {offsets = [0, 32], sizes = [8, 32], strides = [1, 1]} : vector<8x128xf32> to vector<8x32xf32>
    %118 = arith.mulf %117, %104 : vector<8x32xf32>
    %119 = vector.extract_strided_slice %114 {offsets = [0, 0], sizes = [8, 32], strides = [1, 1]} : vector<8x128xf32> to vector<8x32xf32>
    %120 = arith.mulf %119, %116 : vector<8x32xf32>
    %121 = arith.addf %118, %120 : vector<8x32xf32>
    %122 = vector.extract_strided_slice %114 {offsets = [0, 96], sizes = [8, 32], strides = [1, 1]} : vector<8x128xf32> to vector<8x32xf32>
    %123 = math.tanh %121 : vector<8x32xf32>
    %124 = arith.mulf %122, %123 : vector<8x32xf32>
    %cst_28 = arith.constant dense<0.000000e+00> : vector<8x128xf32>
    %125 = tpu.matmul %124, %60, %cst_28 {dimension_numbers = #tpu.dot_dimension_numbers<[1], [0], [0], [1], [0, 0, 1, 1], [], []>} : vector<8x32xf32>, vector<32x128xf32>, vector<8x128xf32> -> vector<8x128xf32>
    %126 = arith.addf %73, %125 : vector<8x128xf32>
    %127 = arith.negf %126 : vector<8x128xf32>
    %128 = math.exp %127 : vector<8x128xf32>
    %cst_29 = arith.constant 1.000000e+00 : f32
    %129 = vector.broadcast %cst_29 : f32 to vector<8x128xf32>
    %130 = arith.addf %129, %128 : vector<8x128xf32>
    %131 = arith.divf %129, %130 : vector<8x128xf32>
    %132 = vector.extract_strided_slice %126 {offsets = [0, 64], sizes = [8, 32], strides = [1, 1]} : vector<8x128xf32> to vector<8x32xf32>
    %133 = math.tanh %132 : vector<8x32xf32>
    %134 = vector.extract_strided_slice %131 {offsets = [0, 32], sizes = [8, 32], strides = [1, 1]} : vector<8x128xf32> to vector<8x32xf32>
    %135 = arith.mulf %134, %121 : vector<8x32xf32>
    %136 = vector.extract_strided_slice %131 {offsets = [0, 0], sizes = [8, 32], strides = [1, 1]} : vector<8x128xf32> to vector<8x32xf32>
    %137 = arith.mulf %136, %133 : vector<8x32xf32>
    %138 = arith.addf %135, %137 : vector<8x32xf32>
    %139 = vector.extract_strided_slice %131 {offsets = [0, 96], sizes = [8, 32], strides = [1, 1]} : vector<8x128xf32> to vector<8x32xf32>
    %140 = math.tanh %138 : vector<8x32xf32>
    %141 = arith.mulf %139, %140 : vector<8x32xf32>
    %cst_30 = arith.constant dense<0.000000e+00> : vector<8x128xf32>
    %142 = tpu.matmul %141, %60, %cst_30 {dimension_numbers = #tpu.dot_dimension_numbers<[1], [0], [0], [1], [0, 0, 1, 1], [], []>} : vector<8x32xf32>, vector<32x128xf32>, vector<8x128xf32> -> vector<8x128xf32>
    %143 = arith.addf %76, %142 : vector<8x128xf32>
    %144 = arith.negf %143 : vector<8x128xf32>
    %145 = math.exp %144 : vector<8x128xf32>
    %cst_31 = arith.constant 1.000000e+00 : f32
    %146 = vector.broadcast %cst_31 : f32 to vector<8x128xf32>
    %147 = arith.addf %146, %145 : vector<8x128xf32>
    %148 = arith.divf %146, %147 : vector<8x128xf32>
    %149 = vector.extract_strided_slice %143 {offsets = [0, 64], sizes = [8, 32], strides = [1, 1]} : vector<8x128xf32> to vector<8x32xf32>
    %150 = math.tanh %149 : vector<8x32xf32>
    %151 = vector.extract_strided_slice %148 {offsets = [0, 32], sizes = [8, 32], strides = [1, 1]} : vector<8x128xf32> to vector<8x32xf32>
    %152 = arith.mulf %151, %138 : vector<8x32xf32>
    %153 = vector.extract_strided_slice %148 {offsets = [0, 0], sizes = [8, 32], strides = [1, 1]} : vector<8x128xf32> to vector<8x32xf32>
    %154 = arith.mulf %153, %150 : vector<8x32xf32>
    %155 = arith.addf %152, %154 : vector<8x32xf32>
    %156 = vector.extract_strided_slice %148 {offsets = [0, 96], sizes = [8, 32], strides = [1, 1]} : vector<8x128xf32> to vector<8x32xf32>
    %157 = math.tanh %155 : vector<8x32xf32>
    %158 = arith.mulf %156, %157 : vector<8x32xf32>
    %cst_32 = arith.constant dense<0.000000e+00> : vector<8x128xf32>
    %159 = tpu.matmul %158, %60, %cst_32 {dimension_numbers = #tpu.dot_dimension_numbers<[1], [0], [0], [1], [0, 0, 1, 1], [], []>} : vector<8x32xf32>, vector<32x128xf32>, vector<8x128xf32> -> vector<8x128xf32>
    %160 = arith.addf %79, %159 : vector<8x128xf32>
    %161 = arith.negf %160 : vector<8x128xf32>
    %162 = math.exp %161 : vector<8x128xf32>
    %cst_33 = arith.constant 1.000000e+00 : f32
    %163 = vector.broadcast %cst_33 : f32 to vector<8x128xf32>
    %164 = arith.addf %163, %162 : vector<8x128xf32>
    %165 = arith.divf %163, %164 : vector<8x128xf32>
    %166 = vector.extract_strided_slice %160 {offsets = [0, 64], sizes = [8, 32], strides = [1, 1]} : vector<8x128xf32> to vector<8x32xf32>
    %167 = math.tanh %166 : vector<8x32xf32>
    %168 = vector.extract_strided_slice %165 {offsets = [0, 32], sizes = [8, 32], strides = [1, 1]} : vector<8x128xf32> to vector<8x32xf32>
    %169 = arith.mulf %168, %155 : vector<8x32xf32>
    %170 = vector.extract_strided_slice %165 {offsets = [0, 0], sizes = [8, 32], strides = [1, 1]} : vector<8x128xf32> to vector<8x32xf32>
    %171 = arith.mulf %170, %167 : vector<8x32xf32>
    %172 = arith.addf %169, %171 : vector<8x32xf32>
    %173 = vector.extract_strided_slice %165 {offsets = [0, 96], sizes = [8, 32], strides = [1, 1]} : vector<8x128xf32> to vector<8x32xf32>
    %174 = math.tanh %172 : vector<8x32xf32>
    %175 = arith.mulf %173, %174 : vector<8x32xf32>
    %cst_34 = arith.constant dense<0.000000e+00> : vector<8x128xf32>
    %176 = tpu.matmul %175, %60, %cst_34 {dimension_numbers = #tpu.dot_dimension_numbers<[1], [0], [0], [1], [0, 0, 1, 1], [], []>} : vector<8x32xf32>, vector<32x128xf32>, vector<8x128xf32> -> vector<8x128xf32>
    %177 = arith.addf %82, %176 : vector<8x128xf32>
    %178 = arith.negf %177 : vector<8x128xf32>
    %179 = math.exp %178 : vector<8x128xf32>
    %cst_35 = arith.constant 1.000000e+00 : f32
    %180 = vector.broadcast %cst_35 : f32 to vector<8x128xf32>
    %181 = arith.addf %180, %179 : vector<8x128xf32>
    %182 = arith.divf %180, %181 : vector<8x128xf32>
    %183 = vector.extract_strided_slice %177 {offsets = [0, 64], sizes = [8, 32], strides = [1, 1]} : vector<8x128xf32> to vector<8x32xf32>
    %184 = math.tanh %183 : vector<8x32xf32>
    %185 = vector.extract_strided_slice %182 {offsets = [0, 32], sizes = [8, 32], strides = [1, 1]} : vector<8x128xf32> to vector<8x32xf32>
    %186 = arith.mulf %185, %172 : vector<8x32xf32>
    %187 = vector.extract_strided_slice %182 {offsets = [0, 0], sizes = [8, 32], strides = [1, 1]} : vector<8x128xf32> to vector<8x32xf32>
    %188 = arith.mulf %187, %184 : vector<8x32xf32>
    %189 = arith.addf %186, %188 : vector<8x32xf32>
    %190 = vector.extract_strided_slice %182 {offsets = [0, 96], sizes = [8, 32], strides = [1, 1]} : vector<8x128xf32> to vector<8x32xf32>
    %191 = math.tanh %189 : vector<8x32xf32>
    %192 = arith.mulf %190, %191 : vector<8x32xf32>
    %cst_36 = arith.constant dense<0.000000e+00> : vector<8x128xf32>
    %193 = tpu.matmul %192, %60, %cst_36 {dimension_numbers = #tpu.dot_dimension_numbers<[1], [0], [0], [1], [0, 0, 1, 1], [], []>} : vector<8x32xf32>, vector<32x128xf32>, vector<8x128xf32> -> vector<8x128xf32>
    %194 = arith.addf %85, %193 : vector<8x128xf32>
    %195 = arith.negf %194 : vector<8x128xf32>
    %196 = math.exp %195 : vector<8x128xf32>
    %cst_37 = arith.constant 1.000000e+00 : f32
    %197 = vector.broadcast %cst_37 : f32 to vector<8x128xf32>
    %198 = arith.addf %197, %196 : vector<8x128xf32>
    %199 = arith.divf %197, %198 : vector<8x128xf32>
    %200 = vector.extract_strided_slice %194 {offsets = [0, 64], sizes = [8, 32], strides = [1, 1]} : vector<8x128xf32> to vector<8x32xf32>
    %201 = math.tanh %200 : vector<8x32xf32>
    %202 = vector.extract_strided_slice %199 {offsets = [0, 32], sizes = [8, 32], strides = [1, 1]} : vector<8x128xf32> to vector<8x32xf32>
    %203 = arith.mulf %202, %189 : vector<8x32xf32>
    %204 = vector.extract_strided_slice %199 {offsets = [0, 0], sizes = [8, 32], strides = [1, 1]} : vector<8x128xf32> to vector<8x32xf32>
    %205 = arith.mulf %204, %201 : vector<8x32xf32>
    %206 = arith.addf %203, %205 : vector<8x32xf32>
    %207 = vector.extract_strided_slice %199 {offsets = [0, 96], sizes = [8, 32], strides = [1, 1]} : vector<8x128xf32> to vector<8x32xf32>
    %208 = math.tanh %206 : vector<8x32xf32>
    %209 = arith.mulf %207, %208 : vector<8x32xf32>
    %cst_38 = arith.constant dense<0.000000e+00> : vector<8x128xf32>
    %210 = tpu.matmul %209, %60, %cst_38 {dimension_numbers = #tpu.dot_dimension_numbers<[1], [0], [0], [1], [0, 0, 1, 1], [], []>} : vector<8x32xf32>, vector<32x128xf32>, vector<8x128xf32> -> vector<8x128xf32>
    %211 = arith.addf %88, %210 : vector<8x128xf32>
    %212 = arith.negf %211 : vector<8x128xf32>
    %213 = math.exp %212 : vector<8x128xf32>
    %cst_39 = arith.constant 1.000000e+00 : f32
    %214 = vector.broadcast %cst_39 : f32 to vector<8x128xf32>
    %215 = arith.addf %214, %213 : vector<8x128xf32>
    %216 = arith.divf %214, %215 : vector<8x128xf32>
    %217 = vector.extract_strided_slice %211 {offsets = [0, 64], sizes = [8, 32], strides = [1, 1]} : vector<8x128xf32> to vector<8x32xf32>
    %218 = math.tanh %217 : vector<8x32xf32>
    %219 = vector.extract_strided_slice %216 {offsets = [0, 32], sizes = [8, 32], strides = [1, 1]} : vector<8x128xf32> to vector<8x32xf32>
    %220 = arith.mulf %219, %206 : vector<8x32xf32>
    %221 = vector.extract_strided_slice %216 {offsets = [0, 0], sizes = [8, 32], strides = [1, 1]} : vector<8x128xf32> to vector<8x32xf32>
    %222 = arith.mulf %221, %218 : vector<8x32xf32>
    %223 = arith.addf %220, %222 : vector<8x32xf32>
    %224 = vector.extract_strided_slice %216 {offsets = [0, 96], sizes = [8, 32], strides = [1, 1]} : vector<8x128xf32> to vector<8x32xf32>
    %225 = math.tanh %223 : vector<8x32xf32>
    %226 = arith.mulf %224, %225 : vector<8x32xf32>
    %227 = arith.select %21, %107, %226 : vector<8x32xi1>, vector<8x32xf32>
    %228 = arith.select %21, %124, %209 : vector<8x32xi1>, vector<8x32xf32>
    %229 = arith.select %21, %141, %192 : vector<8x32xi1>, vector<8x32xf32>
    %230 = arith.select %21, %158, %175 : vector<8x32xi1>, vector<8x32xf32>
    %231 = arith.select %21, %175, %158 : vector<8x32xi1>, vector<8x32xf32>
    %232 = arith.select %21, %192, %141 : vector<8x32xi1>, vector<8x32xf32>
    %233 = arith.select %21, %209, %124 : vector<8x32xi1>, vector<8x32xf32>
    %234 = arith.select %21, %226, %107 : vector<8x32xi1>, vector<8x32xf32>
    %235 = tpu.concatenate %227, %228, %229, %230, %231, %232, %233, %234 in 0 : vector<8x32xf32>, vector<8x32xf32>, vector<8x32xf32>, vector<8x32xf32>, vector<8x32xf32>, vector<8x32xf32>, vector<8x32xf32>, vector<8x32xf32> -> vector<64x32xf32>
    %c64 = arith.constant 64 : index
    %c0_40 = arith.constant 0 : index
    %236 = vector.load %arg2[%c64, %c0_40] : memref<288x128xf32, #tpu.memory_space<vmem>>, vector<32x128xf32>
    %c96 = arith.constant 96 : index
    %c0_41 = arith.constant 0 : index
    %237 = vector.load %arg2[%c96, %c0_41] : memref<288x128xf32, #tpu.memory_space<vmem>>, vector<32x128xf32>
    %c1 = arith.constant 1 : index
    %c0_42 = arith.constant 0 : index
    %238 = vector.load %arg3[%c1, %c0_42] : memref<8x128xf32, #tpu.memory_space<vmem>>, vector<1x128xf32>
    %cst_43 = arith.constant dense<0.000000e+00> : vector<64x128xf32>
    %239 = tpu.matmul %235, %236, %cst_43 {dimension_numbers = #tpu.dot_dimension_numbers<[1], [0], [0], [1], [0, 0, 1, 1], [], []>} : vector<64x32xf32>, vector<32x128xf32>, vector<64x128xf32> -> vector<64x128xf32>
    %240 = vector.broadcast %238 : vector<1x128xf32> to vector<64x128xf32>
    %241 = arith.addf %239, %240 : vector<64x128xf32>
    %242 = vector.extract_strided_slice %241 {offsets = [0, 0], sizes = [8, 128], strides = [1, 1]} : vector<64x128xf32> to vector<8x128xf32>
    %243 = vector.extract_strided_slice %241 {offsets = [56, 0], sizes = [8, 128], strides = [1, 1]} : vector<64x128xf32> to vector<8x128xf32>
    %244 = arith.select %18, %242, %243 : vector<8x128xi1>, vector<8x128xf32>
    %245 = vector.extract_strided_slice %241 {offsets = [8, 0], sizes = [8, 128], strides = [1, 1]} : vector<64x128xf32> to vector<8x128xf32>
    %246 = vector.extract_strided_slice %241 {offsets = [48, 0], sizes = [8, 128], strides = [1, 1]} : vector<64x128xf32> to vector<8x128xf32>
    %247 = arith.select %18, %245, %246 : vector<8x128xi1>, vector<8x128xf32>
    %248 = vector.extract_strided_slice %241 {offsets = [16, 0], sizes = [8, 128], strides = [1, 1]} : vector<64x128xf32> to vector<8x128xf32>
    %249 = vector.extract_strided_slice %241 {offsets = [40, 0], sizes = [8, 128], strides = [1, 1]} : vector<64x128xf32> to vector<8x128xf32>
    %250 = arith.select %18, %248, %249 : vector<8x128xi1>, vector<8x128xf32>
    %251 = vector.extract_strided_slice %241 {offsets = [24, 0], sizes = [8, 128], strides = [1, 1]} : vector<64x128xf32> to vector<8x128xf32>
    %252 = vector.extract_strided_slice %241 {offsets = [32, 0], sizes = [8, 128], strides = [1, 1]} : vector<64x128xf32> to vector<8x128xf32>
    %253 = arith.select %18, %251, %252 : vector<8x128xi1>, vector<8x128xf32>
    %254 = vector.extract_strided_slice %241 {offsets = [32, 0], sizes = [8, 128], strides = [1, 1]} : vector<64x128xf32> to vector<8x128xf32>
    %255 = vector.extract_strided_slice %241 {offsets = [24, 0], sizes = [8, 128], strides = [1, 1]} : vector<64x128xf32> to vector<8x128xf32>
    %256 = arith.select %18, %254, %255 : vector<8x128xi1>, vector<8x128xf32>
    %257 = vector.extract_strided_slice %241 {offsets = [40, 0], sizes = [8, 128], strides = [1, 1]} : vector<64x128xf32> to vector<8x128xf32>
    %258 = vector.extract_strided_slice %241 {offsets = [16, 0], sizes = [8, 128], strides = [1, 1]} : vector<64x128xf32> to vector<8x128xf32>
    %259 = arith.select %18, %257, %258 : vector<8x128xi1>, vector<8x128xf32>
    %260 = vector.extract_strided_slice %241 {offsets = [48, 0], sizes = [8, 128], strides = [1, 1]} : vector<64x128xf32> to vector<8x128xf32>
    %261 = vector.extract_strided_slice %241 {offsets = [8, 0], sizes = [8, 128], strides = [1, 1]} : vector<64x128xf32> to vector<8x128xf32>
    %262 = arith.select %18, %260, %261 : vector<8x128xi1>, vector<8x128xf32>
    %263 = vector.extract_strided_slice %241 {offsets = [56, 0], sizes = [8, 128], strides = [1, 1]} : vector<64x128xf32> to vector<8x128xf32>
    %264 = vector.extract_strided_slice %241 {offsets = [0, 0], sizes = [8, 128], strides = [1, 1]} : vector<64x128xf32> to vector<8x128xf32>
    %265 = arith.select %18, %263, %264 : vector<8x128xi1>, vector<8x128xf32>
    %cst_44 = arith.constant 0.000000e+00 : f32
    %266 = vector.broadcast %cst_44 : f32 to vector<8x32xf32>
    %cst_45 = arith.constant 0.000000e+00 : f32
    %267 = vector.broadcast %cst_45 : f32 to vector<8x32xf32>
    %cst_46 = arith.constant dense<0.000000e+00> : vector<8x128xf32>
    %268 = tpu.matmul %266, %237, %cst_46 {dimension_numbers = #tpu.dot_dimension_numbers<[1], [0], [0], [1], [0, 0, 1, 1], [], []>} : vector<8x32xf32>, vector<32x128xf32>, vector<8x128xf32> -> vector<8x128xf32>
    %269 = arith.addf %244, %268 : vector<8x128xf32>
    %270 = arith.negf %269 : vector<8x128xf32>
    %271 = math.exp %270 : vector<8x128xf32>
    %cst_47 = arith.constant 1.000000e+00 : f32
    %272 = vector.broadcast %cst_47 : f32 to vector<8x128xf32>
    %273 = arith.addf %272, %271 : vector<8x128xf32>
    %274 = arith.divf %272, %273 : vector<8x128xf32>
    %275 = vector.extract_strided_slice %269 {offsets = [0, 64], sizes = [8, 32], strides = [1, 1]} : vector<8x128xf32> to vector<8x32xf32>
    %276 = math.tanh %275 : vector<8x32xf32>
    %277 = vector.extract_strided_slice %274 {offsets = [0, 32], sizes = [8, 32], strides = [1, 1]} : vector<8x128xf32> to vector<8x32xf32>
    %278 = arith.mulf %277, %267 : vector<8x32xf32>
    %279 = vector.extract_strided_slice %274 {offsets = [0, 0], sizes = [8, 32], strides = [1, 1]} : vector<8x128xf32> to vector<8x32xf32>
    %280 = arith.mulf %279, %276 : vector<8x32xf32>
    %281 = arith.addf %278, %280 : vector<8x32xf32>
    %282 = vector.extract_strided_slice %274 {offsets = [0, 96], sizes = [8, 32], strides = [1, 1]} : vector<8x128xf32> to vector<8x32xf32>
    %283 = math.tanh %281 : vector<8x32xf32>
    %284 = arith.mulf %282, %283 : vector<8x32xf32>
    %cst_48 = arith.constant dense<0.000000e+00> : vector<8x128xf32>
    %285 = tpu.matmul %284, %237, %cst_48 {dimension_numbers = #tpu.dot_dimension_numbers<[1], [0], [0], [1], [0, 0, 1, 1], [], []>} : vector<8x32xf32>, vector<32x128xf32>, vector<8x128xf32> -> vector<8x128xf32>
    %286 = arith.addf %247, %285 : vector<8x128xf32>
    %287 = arith.negf %286 : vector<8x128xf32>
    %288 = math.exp %287 : vector<8x128xf32>
    %cst_49 = arith.constant 1.000000e+00 : f32
    %289 = vector.broadcast %cst_49 : f32 to vector<8x128xf32>
    %290 = arith.addf %289, %288 : vector<8x128xf32>
    %291 = arith.divf %289, %290 : vector<8x128xf32>
    %292 = vector.extract_strided_slice %286 {offsets = [0, 64], sizes = [8, 32], strides = [1, 1]} : vector<8x128xf32> to vector<8x32xf32>
    %293 = math.tanh %292 : vector<8x32xf32>
    %294 = vector.extract_strided_slice %291 {offsets = [0, 32], sizes = [8, 32], strides = [1, 1]} : vector<8x128xf32> to vector<8x32xf32>
    %295 = arith.mulf %294, %281 : vector<8x32xf32>
    %296 = vector.extract_strided_slice %291 {offsets = [0, 0], sizes = [8, 32], strides = [1, 1]} : vector<8x128xf32> to vector<8x32xf32>
    %297 = arith.mulf %296, %293 : vector<8x32xf32>
    %298 = arith.addf %295, %297 : vector<8x32xf32>
    %299 = vector.extract_strided_slice %291 {offsets = [0, 96], sizes = [8, 32], strides = [1, 1]} : vector<8x128xf32> to vector<8x32xf32>
    %300 = math.tanh %298 : vector<8x32xf32>
    %301 = arith.mulf %299, %300 : vector<8x32xf32>
    %cst_50 = arith.constant dense<0.000000e+00> : vector<8x128xf32>
    %302 = tpu.matmul %301, %237, %cst_50 {dimension_numbers = #tpu.dot_dimension_numbers<[1], [0], [0], [1], [0, 0, 1, 1], [], []>} : vector<8x32xf32>, vector<32x128xf32>, vector<8x128xf32> -> vector<8x128xf32>
    %303 = arith.addf %250, %302 : vector<8x128xf32>
    %304 = arith.negf %303 : vector<8x128xf32>
    %305 = math.exp %304 : vector<8x128xf32>
    %cst_51 = arith.constant 1.000000e+00 : f32
    %306 = vector.broadcast %cst_51 : f32 to vector<8x128xf32>
    %307 = arith.addf %306, %305 : vector<8x128xf32>
    %308 = arith.divf %306, %307 : vector<8x128xf32>
    %309 = vector.extract_strided_slice %303 {offsets = [0, 64], sizes = [8, 32], strides = [1, 1]} : vector<8x128xf32> to vector<8x32xf32>
    %310 = math.tanh %309 : vector<8x32xf32>
    %311 = vector.extract_strided_slice %308 {offsets = [0, 32], sizes = [8, 32], strides = [1, 1]} : vector<8x128xf32> to vector<8x32xf32>
    %312 = arith.mulf %311, %298 : vector<8x32xf32>
    %313 = vector.extract_strided_slice %308 {offsets = [0, 0], sizes = [8, 32], strides = [1, 1]} : vector<8x128xf32> to vector<8x32xf32>
    %314 = arith.mulf %313, %310 : vector<8x32xf32>
    %315 = arith.addf %312, %314 : vector<8x32xf32>
    %316 = vector.extract_strided_slice %308 {offsets = [0, 96], sizes = [8, 32], strides = [1, 1]} : vector<8x128xf32> to vector<8x32xf32>
    %317 = math.tanh %315 : vector<8x32xf32>
    %318 = arith.mulf %316, %317 : vector<8x32xf32>
    %cst_52 = arith.constant dense<0.000000e+00> : vector<8x128xf32>
    %319 = tpu.matmul %318, %237, %cst_52 {dimension_numbers = #tpu.dot_dimension_numbers<[1], [0], [0], [1], [0, 0, 1, 1], [], []>} : vector<8x32xf32>, vector<32x128xf32>, vector<8x128xf32> -> vector<8x128xf32>
    %320 = arith.addf %253, %319 : vector<8x128xf32>
    %321 = arith.negf %320 : vector<8x128xf32>
    %322 = math.exp %321 : vector<8x128xf32>
    %cst_53 = arith.constant 1.000000e+00 : f32
    %323 = vector.broadcast %cst_53 : f32 to vector<8x128xf32>
    %324 = arith.addf %323, %322 : vector<8x128xf32>
    %325 = arith.divf %323, %324 : vector<8x128xf32>
    %326 = vector.extract_strided_slice %320 {offsets = [0, 64], sizes = [8, 32], strides = [1, 1]} : vector<8x128xf32> to vector<8x32xf32>
    %327 = math.tanh %326 : vector<8x32xf32>
    %328 = vector.extract_strided_slice %325 {offsets = [0, 32], sizes = [8, 32], strides = [1, 1]} : vector<8x128xf32> to vector<8x32xf32>
    %329 = arith.mulf %328, %315 : vector<8x32xf32>
    %330 = vector.extract_strided_slice %325 {offsets = [0, 0], sizes = [8, 32], strides = [1, 1]} : vector<8x128xf32> to vector<8x32xf32>
    %331 = arith.mulf %330, %327 : vector<8x32xf32>
    %332 = arith.addf %329, %331 : vector<8x32xf32>
    %333 = vector.extract_strided_slice %325 {offsets = [0, 96], sizes = [8, 32], strides = [1, 1]} : vector<8x128xf32> to vector<8x32xf32>
    %334 = math.tanh %332 : vector<8x32xf32>
    %335 = arith.mulf %333, %334 : vector<8x32xf32>
    %cst_54 = arith.constant dense<0.000000e+00> : vector<8x128xf32>
    %336 = tpu.matmul %335, %237, %cst_54 {dimension_numbers = #tpu.dot_dimension_numbers<[1], [0], [0], [1], [0, 0, 1, 1], [], []>} : vector<8x32xf32>, vector<32x128xf32>, vector<8x128xf32> -> vector<8x128xf32>
    %337 = arith.addf %256, %336 : vector<8x128xf32>
    %338 = arith.negf %337 : vector<8x128xf32>
    %339 = math.exp %338 : vector<8x128xf32>
    %cst_55 = arith.constant 1.000000e+00 : f32
    %340 = vector.broadcast %cst_55 : f32 to vector<8x128xf32>
    %341 = arith.addf %340, %339 : vector<8x128xf32>
    %342 = arith.divf %340, %341 : vector<8x128xf32>
    %343 = vector.extract_strided_slice %337 {offsets = [0, 64], sizes = [8, 32], strides = [1, 1]} : vector<8x128xf32> to vector<8x32xf32>
    %344 = math.tanh %343 : vector<8x32xf32>
    %345 = vector.extract_strided_slice %342 {offsets = [0, 32], sizes = [8, 32], strides = [1, 1]} : vector<8x128xf32> to vector<8x32xf32>
    %346 = arith.mulf %345, %332 : vector<8x32xf32>
    %347 = vector.extract_strided_slice %342 {offsets = [0, 0], sizes = [8, 32], strides = [1, 1]} : vector<8x128xf32> to vector<8x32xf32>
    %348 = arith.mulf %347, %344 : vector<8x32xf32>
    %349 = arith.addf %346, %348 : vector<8x32xf32>
    %350 = vector.extract_strided_slice %342 {offsets = [0, 96], sizes = [8, 32], strides = [1, 1]} : vector<8x128xf32> to vector<8x32xf32>
    %351 = math.tanh %349 : vector<8x32xf32>
    %352 = arith.mulf %350, %351 : vector<8x32xf32>
    %cst_56 = arith.constant dense<0.000000e+00> : vector<8x128xf32>
    %353 = tpu.matmul %352, %237, %cst_56 {dimension_numbers = #tpu.dot_dimension_numbers<[1], [0], [0], [1], [0, 0, 1, 1], [], []>} : vector<8x32xf32>, vector<32x128xf32>, vector<8x128xf32> -> vector<8x128xf32>
    %354 = arith.addf %259, %353 : vector<8x128xf32>
    %355 = arith.negf %354 : vector<8x128xf32>
    %356 = math.exp %355 : vector<8x128xf32>
    %cst_57 = arith.constant 1.000000e+00 : f32
    %357 = vector.broadcast %cst_57 : f32 to vector<8x128xf32>
    %358 = arith.addf %357, %356 : vector<8x128xf32>
    %359 = arith.divf %357, %358 : vector<8x128xf32>
    %360 = vector.extract_strided_slice %354 {offsets = [0, 64], sizes = [8, 32], strides = [1, 1]} : vector<8x128xf32> to vector<8x32xf32>
    %361 = math.tanh %360 : vector<8x32xf32>
    %362 = vector.extract_strided_slice %359 {offsets = [0, 32], sizes = [8, 32], strides = [1, 1]} : vector<8x128xf32> to vector<8x32xf32>
    %363 = arith.mulf %362, %349 : vector<8x32xf32>
    %364 = vector.extract_strided_slice %359 {offsets = [0, 0], sizes = [8, 32], strides = [1, 1]} : vector<8x128xf32> to vector<8x32xf32>
    %365 = arith.mulf %364, %361 : vector<8x32xf32>
    %366 = arith.addf %363, %365 : vector<8x32xf32>
    %367 = vector.extract_strided_slice %359 {offsets = [0, 96], sizes = [8, 32], strides = [1, 1]} : vector<8x128xf32> to vector<8x32xf32>
    %368 = math.tanh %366 : vector<8x32xf32>
    %369 = arith.mulf %367, %368 : vector<8x32xf32>
    %cst_58 = arith.constant dense<0.000000e+00> : vector<8x128xf32>
    %370 = tpu.matmul %369, %237, %cst_58 {dimension_numbers = #tpu.dot_dimension_numbers<[1], [0], [0], [1], [0, 0, 1, 1], [], []>} : vector<8x32xf32>, vector<32x128xf32>, vector<8x128xf32> -> vector<8x128xf32>
    %371 = arith.addf %262, %370 : vector<8x128xf32>
    %372 = arith.negf %371 : vector<8x128xf32>
    %373 = math.exp %372 : vector<8x128xf32>
    %cst_59 = arith.constant 1.000000e+00 : f32
    %374 = vector.broadcast %cst_59 : f32 to vector<8x128xf32>
    %375 = arith.addf %374, %373 : vector<8x128xf32>
    %376 = arith.divf %374, %375 : vector<8x128xf32>
    %377 = vector.extract_strided_slice %371 {offsets = [0, 64], sizes = [8, 32], strides = [1, 1]} : vector<8x128xf32> to vector<8x32xf32>
    %378 = math.tanh %377 : vector<8x32xf32>
    %379 = vector.extract_strided_slice %376 {offsets = [0, 32], sizes = [8, 32], strides = [1, 1]} : vector<8x128xf32> to vector<8x32xf32>
    %380 = arith.mulf %379, %366 : vector<8x32xf32>
    %381 = vector.extract_strided_slice %376 {offsets = [0, 0], sizes = [8, 32], strides = [1, 1]} : vector<8x128xf32> to vector<8x32xf32>
    %382 = arith.mulf %381, %378 : vector<8x32xf32>
    %383 = arith.addf %380, %382 : vector<8x32xf32>
    %384 = vector.extract_strided_slice %376 {offsets = [0, 96], sizes = [8, 32], strides = [1, 1]} : vector<8x128xf32> to vector<8x32xf32>
    %385 = math.tanh %383 : vector<8x32xf32>
    %386 = arith.mulf %384, %385 : vector<8x32xf32>
    %cst_60 = arith.constant dense<0.000000e+00> : vector<8x128xf32>
    %387 = tpu.matmul %386, %237, %cst_60 {dimension_numbers = #tpu.dot_dimension_numbers<[1], [0], [0], [1], [0, 0, 1, 1], [], []>} : vector<8x32xf32>, vector<32x128xf32>, vector<8x128xf32> -> vector<8x128xf32>
    %388 = arith.addf %265, %387 : vector<8x128xf32>
    %389 = arith.negf %388 : vector<8x128xf32>
    %390 = math.exp %389 : vector<8x128xf32>
    %cst_61 = arith.constant 1.000000e+00 : f32
    %391 = vector.broadcast %cst_61 : f32 to vector<8x128xf32>
    %392 = arith.addf %391, %390 : vector<8x128xf32>
    %393 = arith.divf %391, %392 : vector<8x128xf32>
    %394 = vector.extract_strided_slice %388 {offsets = [0, 64], sizes = [8, 32], strides = [1, 1]} : vector<8x128xf32> to vector<8x32xf32>
    %395 = math.tanh %394 : vector<8x32xf32>
    %396 = vector.extract_strided_slice %393 {offsets = [0, 32], sizes = [8, 32], strides = [1, 1]} : vector<8x128xf32> to vector<8x32xf32>
    %397 = arith.mulf %396, %383 : vector<8x32xf32>
    %398 = vector.extract_strided_slice %393 {offsets = [0, 0], sizes = [8, 32], strides = [1, 1]} : vector<8x128xf32> to vector<8x32xf32>
    %399 = arith.mulf %398, %395 : vector<8x32xf32>
    %400 = arith.addf %397, %399 : vector<8x32xf32>
    %401 = vector.extract_strided_slice %393 {offsets = [0, 96], sizes = [8, 32], strides = [1, 1]} : vector<8x128xf32> to vector<8x32xf32>
    %402 = math.tanh %400 : vector<8x32xf32>
    %403 = arith.mulf %401, %402 : vector<8x32xf32>
    %404 = arith.select %21, %284, %403 : vector<8x32xi1>, vector<8x32xf32>
    %405 = arith.select %21, %301, %386 : vector<8x32xi1>, vector<8x32xf32>
    %406 = arith.select %21, %318, %369 : vector<8x32xi1>, vector<8x32xf32>
    %407 = arith.select %21, %335, %352 : vector<8x32xi1>, vector<8x32xf32>
    %408 = arith.select %21, %352, %335 : vector<8x32xi1>, vector<8x32xf32>
    %409 = arith.select %21, %369, %318 : vector<8x32xi1>, vector<8x32xf32>
    %410 = arith.select %21, %386, %301 : vector<8x32xi1>, vector<8x32xf32>
    %411 = arith.select %21, %403, %284 : vector<8x32xi1>, vector<8x32xf32>
    %412 = tpu.concatenate %404, %405, %406, %407, %408, %409, %410, %411 in 0 : vector<8x32xf32>, vector<8x32xf32>, vector<8x32xf32>, vector<8x32xf32>, vector<8x32xf32>, vector<8x32xf32>, vector<8x32xf32>, vector<8x32xf32> -> vector<64x32xf32>
    %c128 = arith.constant 128 : index
    %c0_62 = arith.constant 0 : index
    %413 = vector.load %arg2[%c128, %c0_62] : memref<288x128xf32, #tpu.memory_space<vmem>>, vector<32x128xf32>
    %c160 = arith.constant 160 : index
    %c0_63 = arith.constant 0 : index
    %414 = vector.load %arg2[%c160, %c0_63] : memref<288x128xf32, #tpu.memory_space<vmem>>, vector<32x128xf32>
    %c2 = arith.constant 2 : index
    %c0_64 = arith.constant 0 : index
    %415 = vector.load %arg3[%c2, %c0_64] : memref<8x128xf32, #tpu.memory_space<vmem>>, vector<1x128xf32>
    %cst_65 = arith.constant dense<0.000000e+00> : vector<64x128xf32>
    %416 = tpu.matmul %412, %413, %cst_65 {dimension_numbers = #tpu.dot_dimension_numbers<[1], [0], [0], [1], [0, 0, 1, 1], [], []>} : vector<64x32xf32>, vector<32x128xf32>, vector<64x128xf32> -> vector<64x128xf32>
    %417 = vector.broadcast %415 : vector<1x128xf32> to vector<64x128xf32>
    %418 = arith.addf %416, %417 : vector<64x128xf32>
    %419 = vector.extract_strided_slice %418 {offsets = [0, 0], sizes = [8, 128], strides = [1, 1]} : vector<64x128xf32> to vector<8x128xf32>
    %420 = vector.extract_strided_slice %418 {offsets = [56, 0], sizes = [8, 128], strides = [1, 1]} : vector<64x128xf32> to vector<8x128xf32>
    %421 = arith.select %18, %419, %420 : vector<8x128xi1>, vector<8x128xf32>
    %422 = vector.extract_strided_slice %418 {offsets = [8, 0], sizes = [8, 128], strides = [1, 1]} : vector<64x128xf32> to vector<8x128xf32>
    %423 = vector.extract_strided_slice %418 {offsets = [48, 0], sizes = [8, 128], strides = [1, 1]} : vector<64x128xf32> to vector<8x128xf32>
    %424 = arith.select %18, %422, %423 : vector<8x128xi1>, vector<8x128xf32>
    %425 = vector.extract_strided_slice %418 {offsets = [16, 0], sizes = [8, 128], strides = [1, 1]} : vector<64x128xf32> to vector<8x128xf32>
    %426 = vector.extract_strided_slice %418 {offsets = [40, 0], sizes = [8, 128], strides = [1, 1]} : vector<64x128xf32> to vector<8x128xf32>
    %427 = arith.select %18, %425, %426 : vector<8x128xi1>, vector<8x128xf32>
    %428 = vector.extract_strided_slice %418 {offsets = [24, 0], sizes = [8, 128], strides = [1, 1]} : vector<64x128xf32> to vector<8x128xf32>
    %429 = vector.extract_strided_slice %418 {offsets = [32, 0], sizes = [8, 128], strides = [1, 1]} : vector<64x128xf32> to vector<8x128xf32>
    %430 = arith.select %18, %428, %429 : vector<8x128xi1>, vector<8x128xf32>
    %431 = vector.extract_strided_slice %418 {offsets = [32, 0], sizes = [8, 128], strides = [1, 1]} : vector<64x128xf32> to vector<8x128xf32>
    %432 = vector.extract_strided_slice %418 {offsets = [24, 0], sizes = [8, 128], strides = [1, 1]} : vector<64x128xf32> to vector<8x128xf32>
    %433 = arith.select %18, %431, %432 : vector<8x128xi1>, vector<8x128xf32>
    %434 = vector.extract_strided_slice %418 {offsets = [40, 0], sizes = [8, 128], strides = [1, 1]} : vector<64x128xf32> to vector<8x128xf32>
    %435 = vector.extract_strided_slice %418 {offsets = [16, 0], sizes = [8, 128], strides = [1, 1]} : vector<64x128xf32> to vector<8x128xf32>
    %436 = arith.select %18, %434, %435 : vector<8x128xi1>, vector<8x128xf32>
    %437 = vector.extract_strided_slice %418 {offsets = [48, 0], sizes = [8, 128], strides = [1, 1]} : vector<64x128xf32> to vector<8x128xf32>
    %438 = vector.extract_strided_slice %418 {offsets = [8, 0], sizes = [8, 128], strides = [1, 1]} : vector<64x128xf32> to vector<8x128xf32>
    %439 = arith.select %18, %437, %438 : vector<8x128xi1>, vector<8x128xf32>
    %440 = vector.extract_strided_slice %418 {offsets = [56, 0], sizes = [8, 128], strides = [1, 1]} : vector<64x128xf32> to vector<8x128xf32>
    %441 = vector.extract_strided_slice %418 {offsets = [0, 0], sizes = [8, 128], strides = [1, 1]} : vector<64x128xf32> to vector<8x128xf32>
    %442 = arith.select %18, %440, %441 : vector<8x128xi1>, vector<8x128xf32>
    %cst_66 = arith.constant 0.000000e+00 : f32
    %443 = vector.broadcast %cst_66 : f32 to vector<8x32xf32>
    %cst_67 = arith.constant 0.000000e+00 : f32
    %444 = vector.broadcast %cst_67 : f32 to vector<8x32xf32>
    %cst_68 = arith.constant dense<0.000000e+00> : vector<8x128xf32>
    %445 = tpu.matmul %443, %414, %cst_68 {dimension_numbers = #tpu.dot_dimension_numbers<[1], [0], [0], [1], [0, 0, 1, 1], [], []>} : vector<8x32xf32>, vector<32x128xf32>, vector<8x128xf32> -> vector<8x128xf32>
    %446 = arith.addf %421, %445 : vector<8x128xf32>
    %447 = arith.negf %446 : vector<8x128xf32>
    %448 = math.exp %447 : vector<8x128xf32>
    %cst_69 = arith.constant 1.000000e+00 : f32
    %449 = vector.broadcast %cst_69 : f32 to vector<8x128xf32>
    %450 = arith.addf %449, %448 : vector<8x128xf32>
    %451 = arith.divf %449, %450 : vector<8x128xf32>
    %452 = vector.extract_strided_slice %446 {offsets = [0, 64], sizes = [8, 32], strides = [1, 1]} : vector<8x128xf32> to vector<8x32xf32>
    %453 = math.tanh %452 : vector<8x32xf32>
    %454 = vector.extract_strided_slice %451 {offsets = [0, 32], sizes = [8, 32], strides = [1, 1]} : vector<8x128xf32> to vector<8x32xf32>
    %455 = arith.mulf %454, %444 : vector<8x32xf32>
    %456 = vector.extract_strided_slice %451 {offsets = [0, 0], sizes = [8, 32], strides = [1, 1]} : vector<8x128xf32> to vector<8x32xf32>
    %457 = arith.mulf %456, %453 : vector<8x32xf32>
    %458 = arith.addf %455, %457 : vector<8x32xf32>
    %459 = vector.extract_strided_slice %451 {offsets = [0, 96], sizes = [8, 32], strides = [1, 1]} : vector<8x128xf32> to vector<8x32xf32>
    %460 = math.tanh %458 : vector<8x32xf32>
    %461 = arith.mulf %459, %460 : vector<8x32xf32>
    %cst_70 = arith.constant dense<0.000000e+00> : vector<8x128xf32>
    %462 = tpu.matmul %461, %414, %cst_70 {dimension_numbers = #tpu.dot_dimension_numbers<[1], [0], [0], [1], [0, 0, 1, 1], [], []>} : vector<8x32xf32>, vector<32x128xf32>, vector<8x128xf32> -> vector<8x128xf32>
    %463 = arith.addf %424, %462 : vector<8x128xf32>
    %464 = arith.negf %463 : vector<8x128xf32>
    %465 = math.exp %464 : vector<8x128xf32>
    %cst_71 = arith.constant 1.000000e+00 : f32
    %466 = vector.broadcast %cst_71 : f32 to vector<8x128xf32>
    %467 = arith.addf %466, %465 : vector<8x128xf32>
    %468 = arith.divf %466, %467 : vector<8x128xf32>
    %469 = vector.extract_strided_slice %463 {offsets = [0, 64], sizes = [8, 32], strides = [1, 1]} : vector<8x128xf32> to vector<8x32xf32>
    %470 = math.tanh %469 : vector<8x32xf32>
    %471 = vector.extract_strided_slice %468 {offsets = [0, 32], sizes = [8, 32], strides = [1, 1]} : vector<8x128xf32> to vector<8x32xf32>
    %472 = arith.mulf %471, %458 : vector<8x32xf32>
    %473 = vector.extract_strided_slice %468 {offsets = [0, 0], sizes = [8, 32], strides = [1, 1]} : vector<8x128xf32> to vector<8x32xf32>
    %474 = arith.mulf %473, %470 : vector<8x32xf32>
    %475 = arith.addf %472, %474 : vector<8x32xf32>
    %476 = vector.extract_strided_slice %468 {offsets = [0, 96], sizes = [8, 32], strides = [1, 1]} : vector<8x128xf32> to vector<8x32xf32>
    %477 = math.tanh %475 : vector<8x32xf32>
    %478 = arith.mulf %476, %477 : vector<8x32xf32>
    %cst_72 = arith.constant dense<0.000000e+00> : vector<8x128xf32>
    %479 = tpu.matmul %478, %414, %cst_72 {dimension_numbers = #tpu.dot_dimension_numbers<[1], [0], [0], [1], [0, 0, 1, 1], [], []>} : vector<8x32xf32>, vector<32x128xf32>, vector<8x128xf32> -> vector<8x128xf32>
    %480 = arith.addf %427, %479 : vector<8x128xf32>
    %481 = arith.negf %480 : vector<8x128xf32>
    %482 = math.exp %481 : vector<8x128xf32>
    %cst_73 = arith.constant 1.000000e+00 : f32
    %483 = vector.broadcast %cst_73 : f32 to vector<8x128xf32>
    %484 = arith.addf %483, %482 : vector<8x128xf32>
    %485 = arith.divf %483, %484 : vector<8x128xf32>
    %486 = vector.extract_strided_slice %480 {offsets = [0, 64], sizes = [8, 32], strides = [1, 1]} : vector<8x128xf32> to vector<8x32xf32>
    %487 = math.tanh %486 : vector<8x32xf32>
    %488 = vector.extract_strided_slice %485 {offsets = [0, 32], sizes = [8, 32], strides = [1, 1]} : vector<8x128xf32> to vector<8x32xf32>
    %489 = arith.mulf %488, %475 : vector<8x32xf32>
    %490 = vector.extract_strided_slice %485 {offsets = [0, 0], sizes = [8, 32], strides = [1, 1]} : vector<8x128xf32> to vector<8x32xf32>
    %491 = arith.mulf %490, %487 : vector<8x32xf32>
    %492 = arith.addf %489, %491 : vector<8x32xf32>
    %493 = vector.extract_strided_slice %485 {offsets = [0, 96], sizes = [8, 32], strides = [1, 1]} : vector<8x128xf32> to vector<8x32xf32>
    %494 = math.tanh %492 : vector<8x32xf32>
    %495 = arith.mulf %493, %494 : vector<8x32xf32>
    %cst_74 = arith.constant dense<0.000000e+00> : vector<8x128xf32>
    %496 = tpu.matmul %495, %414, %cst_74 {dimension_numbers = #tpu.dot_dimension_numbers<[1], [0], [0], [1], [0, 0, 1, 1], [], []>} : vector<8x32xf32>, vector<32x128xf32>, vector<8x128xf32> -> vector<8x128xf32>
    %497 = arith.addf %430, %496 : vector<8x128xf32>
    %498 = arith.negf %497 : vector<8x128xf32>
    %499 = math.exp %498 : vector<8x128xf32>
    %cst_75 = arith.constant 1.000000e+00 : f32
    %500 = vector.broadcast %cst_75 : f32 to vector<8x128xf32>
    %501 = arith.addf %500, %499 : vector<8x128xf32>
    %502 = arith.divf %500, %501 : vector<8x128xf32>
    %503 = vector.extract_strided_slice %497 {offsets = [0, 64], sizes = [8, 32], strides = [1, 1]} : vector<8x128xf32> to vector<8x32xf32>
    %504 = math.tanh %503 : vector<8x32xf32>
    %505 = vector.extract_strided_slice %502 {offsets = [0, 32], sizes = [8, 32], strides = [1, 1]} : vector<8x128xf32> to vector<8x32xf32>
    %506 = arith.mulf %505, %492 : vector<8x32xf32>
    %507 = vector.extract_strided_slice %502 {offsets = [0, 0], sizes = [8, 32], strides = [1, 1]} : vector<8x128xf32> to vector<8x32xf32>
    %508 = arith.mulf %507, %504 : vector<8x32xf32>
    %509 = arith.addf %506, %508 : vector<8x32xf32>
    %510 = vector.extract_strided_slice %502 {offsets = [0, 96], sizes = [8, 32], strides = [1, 1]} : vector<8x128xf32> to vector<8x32xf32>
    %511 = math.tanh %509 : vector<8x32xf32>
    %512 = arith.mulf %510, %511 : vector<8x32xf32>
    %cst_76 = arith.constant dense<0.000000e+00> : vector<8x128xf32>
    %513 = tpu.matmul %512, %414, %cst_76 {dimension_numbers = #tpu.dot_dimension_numbers<[1], [0], [0], [1], [0, 0, 1, 1], [], []>} : vector<8x32xf32>, vector<32x128xf32>, vector<8x128xf32> -> vector<8x128xf32>
    %514 = arith.addf %433, %513 : vector<8x128xf32>
    %515 = arith.negf %514 : vector<8x128xf32>
    %516 = math.exp %515 : vector<8x128xf32>
    %cst_77 = arith.constant 1.000000e+00 : f32
    %517 = vector.broadcast %cst_77 : f32 to vector<8x128xf32>
    %518 = arith.addf %517, %516 : vector<8x128xf32>
    %519 = arith.divf %517, %518 : vector<8x128xf32>
    %520 = vector.extract_strided_slice %514 {offsets = [0, 64], sizes = [8, 32], strides = [1, 1]} : vector<8x128xf32> to vector<8x32xf32>
    %521 = math.tanh %520 : vector<8x32xf32>
    %522 = vector.extract_strided_slice %519 {offsets = [0, 32], sizes = [8, 32], strides = [1, 1]} : vector<8x128xf32> to vector<8x32xf32>
    %523 = arith.mulf %522, %509 : vector<8x32xf32>
    %524 = vector.extract_strided_slice %519 {offsets = [0, 0], sizes = [8, 32], strides = [1, 1]} : vector<8x128xf32> to vector<8x32xf32>
    %525 = arith.mulf %524, %521 : vector<8x32xf32>
    %526 = arith.addf %523, %525 : vector<8x32xf32>
    %527 = vector.extract_strided_slice %519 {offsets = [0, 96], sizes = [8, 32], strides = [1, 1]} : vector<8x128xf32> to vector<8x32xf32>
    %528 = math.tanh %526 : vector<8x32xf32>
    %529 = arith.mulf %527, %528 : vector<8x32xf32>
    %cst_78 = arith.constant dense<0.000000e+00> : vector<8x128xf32>
    %530 = tpu.matmul %529, %414, %cst_78 {dimension_numbers = #tpu.dot_dimension_numbers<[1], [0], [0], [1], [0, 0, 1, 1], [], []>} : vector<8x32xf32>, vector<32x128xf32>, vector<8x128xf32> -> vector<8x128xf32>
    %531 = arith.addf %436, %530 : vector<8x128xf32>
    %532 = arith.negf %531 : vector<8x128xf32>
    %533 = math.exp %532 : vector<8x128xf32>
    %cst_79 = arith.constant 1.000000e+00 : f32
    %534 = vector.broadcast %cst_79 : f32 to vector<8x128xf32>
    %535 = arith.addf %534, %533 : vector<8x128xf32>
    %536 = arith.divf %534, %535 : vector<8x128xf32>
    %537 = vector.extract_strided_slice %531 {offsets = [0, 64], sizes = [8, 32], strides = [1, 1]} : vector<8x128xf32> to vector<8x32xf32>
    %538 = math.tanh %537 : vector<8x32xf32>
    %539 = vector.extract_strided_slice %536 {offsets = [0, 32], sizes = [8, 32], strides = [1, 1]} : vector<8x128xf32> to vector<8x32xf32>
    %540 = arith.mulf %539, %526 : vector<8x32xf32>
    %541 = vector.extract_strided_slice %536 {offsets = [0, 0], sizes = [8, 32], strides = [1, 1]} : vector<8x128xf32> to vector<8x32xf32>
    %542 = arith.mulf %541, %538 : vector<8x32xf32>
    %543 = arith.addf %540, %542 : vector<8x32xf32>
    %544 = vector.extract_strided_slice %536 {offsets = [0, 96], sizes = [8, 32], strides = [1, 1]} : vector<8x128xf32> to vector<8x32xf32>
    %545 = math.tanh %543 : vector<8x32xf32>
    %546 = arith.mulf %544, %545 : vector<8x32xf32>
    %cst_80 = arith.constant dense<0.000000e+00> : vector<8x128xf32>
    %547 = tpu.matmul %546, %414, %cst_80 {dimension_numbers = #tpu.dot_dimension_numbers<[1], [0], [0], [1], [0, 0, 1, 1], [], []>} : vector<8x32xf32>, vector<32x128xf32>, vector<8x128xf32> -> vector<8x128xf32>
    %548 = arith.addf %439, %547 : vector<8x128xf32>
    %549 = arith.negf %548 : vector<8x128xf32>
    %550 = math.exp %549 : vector<8x128xf32>
    %cst_81 = arith.constant 1.000000e+00 : f32
    %551 = vector.broadcast %cst_81 : f32 to vector<8x128xf32>
    %552 = arith.addf %551, %550 : vector<8x128xf32>
    %553 = arith.divf %551, %552 : vector<8x128xf32>
    %554 = vector.extract_strided_slice %548 {offsets = [0, 64], sizes = [8, 32], strides = [1, 1]} : vector<8x128xf32> to vector<8x32xf32>
    %555 = math.tanh %554 : vector<8x32xf32>
    %556 = vector.extract_strided_slice %553 {offsets = [0, 32], sizes = [8, 32], strides = [1, 1]} : vector<8x128xf32> to vector<8x32xf32>
    %557 = arith.mulf %556, %543 : vector<8x32xf32>
    %558 = vector.extract_strided_slice %553 {offsets = [0, 0], sizes = [8, 32], strides = [1, 1]} : vector<8x128xf32> to vector<8x32xf32>
    %559 = arith.mulf %558, %555 : vector<8x32xf32>
    %560 = arith.addf %557, %559 : vector<8x32xf32>
    %561 = vector.extract_strided_slice %553 {offsets = [0, 96], sizes = [8, 32], strides = [1, 1]} : vector<8x128xf32> to vector<8x32xf32>
    %562 = math.tanh %560 : vector<8x32xf32>
    %563 = arith.mulf %561, %562 : vector<8x32xf32>
    %cst_82 = arith.constant dense<0.000000e+00> : vector<8x128xf32>
    %564 = tpu.matmul %563, %414, %cst_82 {dimension_numbers = #tpu.dot_dimension_numbers<[1], [0], [0], [1], [0, 0, 1, 1], [], []>} : vector<8x32xf32>, vector<32x128xf32>, vector<8x128xf32> -> vector<8x128xf32>
    %565 = arith.addf %442, %564 : vector<8x128xf32>
    %566 = arith.negf %565 : vector<8x128xf32>
    %567 = math.exp %566 : vector<8x128xf32>
    %cst_83 = arith.constant 1.000000e+00 : f32
    %568 = vector.broadcast %cst_83 : f32 to vector<8x128xf32>
    %569 = arith.addf %568, %567 : vector<8x128xf32>
    %570 = arith.divf %568, %569 : vector<8x128xf32>
    %571 = vector.extract_strided_slice %565 {offsets = [0, 64], sizes = [8, 32], strides = [1, 1]} : vector<8x128xf32> to vector<8x32xf32>
    %572 = math.tanh %571 : vector<8x32xf32>
    %573 = vector.extract_strided_slice %570 {offsets = [0, 32], sizes = [8, 32], strides = [1, 1]} : vector<8x128xf32> to vector<8x32xf32>
    %574 = arith.mulf %573, %560 : vector<8x32xf32>
    %575 = vector.extract_strided_slice %570 {offsets = [0, 0], sizes = [8, 32], strides = [1, 1]} : vector<8x128xf32> to vector<8x32xf32>
    %576 = arith.mulf %575, %572 : vector<8x32xf32>
    %577 = arith.addf %574, %576 : vector<8x32xf32>
    %578 = vector.extract_strided_slice %570 {offsets = [0, 96], sizes = [8, 32], strides = [1, 1]} : vector<8x128xf32> to vector<8x32xf32>
    %579 = math.tanh %577 : vector<8x32xf32>
    %580 = arith.mulf %578, %579 : vector<8x32xf32>
    %581 = arith.select %21, %461, %580 : vector<8x32xi1>, vector<8x32xf32>
    %582 = arith.select %21, %478, %563 : vector<8x32xi1>, vector<8x32xf32>
    %583 = arith.select %21, %495, %546 : vector<8x32xi1>, vector<8x32xf32>
    %584 = arith.select %21, %512, %529 : vector<8x32xi1>, vector<8x32xf32>
    %585 = arith.select %21, %529, %512 : vector<8x32xi1>, vector<8x32xf32>
    %586 = arith.select %21, %546, %495 : vector<8x32xi1>, vector<8x32xf32>
    %587 = arith.select %21, %563, %478 : vector<8x32xi1>, vector<8x32xf32>
    %588 = arith.select %21, %580, %461 : vector<8x32xi1>, vector<8x32xf32>
    %589 = tpu.concatenate %581, %582, %583, %584, %585, %586, %587, %588 in 0 : vector<8x32xf32>, vector<8x32xf32>, vector<8x32xf32>, vector<8x32xf32>, vector<8x32xf32>, vector<8x32xf32>, vector<8x32xf32>, vector<8x32xf32> -> vector<64x32xf32>
    %c192 = arith.constant 192 : index
    %c0_84 = arith.constant 0 : index
    %590 = vector.load %arg2[%c192, %c0_84] : memref<288x128xf32, #tpu.memory_space<vmem>>, vector<32x128xf32>
    %c224 = arith.constant 224 : index
    %c0_85 = arith.constant 0 : index
    %591 = vector.load %arg2[%c224, %c0_85] : memref<288x128xf32, #tpu.memory_space<vmem>>, vector<32x128xf32>
    %c3 = arith.constant 3 : index
    %c0_86 = arith.constant 0 : index
    %592 = vector.load %arg3[%c3, %c0_86] : memref<8x128xf32, #tpu.memory_space<vmem>>, vector<1x128xf32>
    %cst_87 = arith.constant dense<0.000000e+00> : vector<64x128xf32>
    %593 = tpu.matmul %589, %590, %cst_87 {dimension_numbers = #tpu.dot_dimension_numbers<[1], [0], [0], [1], [0, 0, 1, 1], [], []>} : vector<64x32xf32>, vector<32x128xf32>, vector<64x128xf32> -> vector<64x128xf32>
    %594 = vector.broadcast %592 : vector<1x128xf32> to vector<64x128xf32>
    %595 = arith.addf %593, %594 : vector<64x128xf32>
    %596 = vector.extract_strided_slice %595 {offsets = [0, 0], sizes = [8, 128], strides = [1, 1]} : vector<64x128xf32> to vector<8x128xf32>
    %597 = vector.extract_strided_slice %595 {offsets = [56, 0], sizes = [8, 128], strides = [1, 1]} : vector<64x128xf32> to vector<8x128xf32>
    %598 = arith.select %18, %596, %597 : vector<8x128xi1>, vector<8x128xf32>
    %599 = vector.extract_strided_slice %595 {offsets = [8, 0], sizes = [8, 128], strides = [1, 1]} : vector<64x128xf32> to vector<8x128xf32>
    %600 = vector.extract_strided_slice %595 {offsets = [48, 0], sizes = [8, 128], strides = [1, 1]} : vector<64x128xf32> to vector<8x128xf32>
    %601 = arith.select %18, %599, %600 : vector<8x128xi1>, vector<8x128xf32>
    %602 = vector.extract_strided_slice %595 {offsets = [16, 0], sizes = [8, 128], strides = [1, 1]} : vector<64x128xf32> to vector<8x128xf32>
    %603 = vector.extract_strided_slice %595 {offsets = [40, 0], sizes = [8, 128], strides = [1, 1]} : vector<64x128xf32> to vector<8x128xf32>
    %604 = arith.select %18, %602, %603 : vector<8x128xi1>, vector<8x128xf32>
    %605 = vector.extract_strided_slice %595 {offsets = [24, 0], sizes = [8, 128], strides = [1, 1]} : vector<64x128xf32> to vector<8x128xf32>
    %606 = vector.extract_strided_slice %595 {offsets = [32, 0], sizes = [8, 128], strides = [1, 1]} : vector<64x128xf32> to vector<8x128xf32>
    %607 = arith.select %18, %605, %606 : vector<8x128xi1>, vector<8x128xf32>
    %608 = vector.extract_strided_slice %595 {offsets = [32, 0], sizes = [8, 128], strides = [1, 1]} : vector<64x128xf32> to vector<8x128xf32>
    %609 = vector.extract_strided_slice %595 {offsets = [24, 0], sizes = [8, 128], strides = [1, 1]} : vector<64x128xf32> to vector<8x128xf32>
    %610 = arith.select %18, %608, %609 : vector<8x128xi1>, vector<8x128xf32>
    %611 = vector.extract_strided_slice %595 {offsets = [40, 0], sizes = [8, 128], strides = [1, 1]} : vector<64x128xf32> to vector<8x128xf32>
    %612 = vector.extract_strided_slice %595 {offsets = [16, 0], sizes = [8, 128], strides = [1, 1]} : vector<64x128xf32> to vector<8x128xf32>
    %613 = arith.select %18, %611, %612 : vector<8x128xi1>, vector<8x128xf32>
    %614 = vector.extract_strided_slice %595 {offsets = [48, 0], sizes = [8, 128], strides = [1, 1]} : vector<64x128xf32> to vector<8x128xf32>
    %615 = vector.extract_strided_slice %595 {offsets = [8, 0], sizes = [8, 128], strides = [1, 1]} : vector<64x128xf32> to vector<8x128xf32>
    %616 = arith.select %18, %614, %615 : vector<8x128xi1>, vector<8x128xf32>
    %617 = vector.extract_strided_slice %595 {offsets = [56, 0], sizes = [8, 128], strides = [1, 1]} : vector<64x128xf32> to vector<8x128xf32>
    %618 = vector.extract_strided_slice %595 {offsets = [0, 0], sizes = [8, 128], strides = [1, 1]} : vector<64x128xf32> to vector<8x128xf32>
    %619 = arith.select %18, %617, %618 : vector<8x128xi1>, vector<8x128xf32>
    %cst_88 = arith.constant 0.000000e+00 : f32
    %620 = vector.broadcast %cst_88 : f32 to vector<8x32xf32>
    %cst_89 = arith.constant 0.000000e+00 : f32
    %621 = vector.broadcast %cst_89 : f32 to vector<8x32xf32>
    %cst_90 = arith.constant dense<0.000000e+00> : vector<8x128xf32>
    %622 = tpu.matmul %620, %591, %cst_90 {dimension_numbers = #tpu.dot_dimension_numbers<[1], [0], [0], [1], [0, 0, 1, 1], [], []>} : vector<8x32xf32>, vector<32x128xf32>, vector<8x128xf32> -> vector<8x128xf32>
    %623 = arith.addf %598, %622 : vector<8x128xf32>
    %624 = arith.negf %623 : vector<8x128xf32>
    %625 = math.exp %624 : vector<8x128xf32>
    %cst_91 = arith.constant 1.000000e+00 : f32
    %626 = vector.broadcast %cst_91 : f32 to vector<8x128xf32>
    %627 = arith.addf %626, %625 : vector<8x128xf32>
    %628 = arith.divf %626, %627 : vector<8x128xf32>
    %629 = vector.extract_strided_slice %623 {offsets = [0, 64], sizes = [8, 32], strides = [1, 1]} : vector<8x128xf32> to vector<8x32xf32>
    %630 = math.tanh %629 : vector<8x32xf32>
    %631 = vector.extract_strided_slice %628 {offsets = [0, 32], sizes = [8, 32], strides = [1, 1]} : vector<8x128xf32> to vector<8x32xf32>
    %632 = arith.mulf %631, %621 : vector<8x32xf32>
    %633 = vector.extract_strided_slice %628 {offsets = [0, 0], sizes = [8, 32], strides = [1, 1]} : vector<8x128xf32> to vector<8x32xf32>
    %634 = arith.mulf %633, %630 : vector<8x32xf32>
    %635 = arith.addf %632, %634 : vector<8x32xf32>
    %636 = vector.extract_strided_slice %628 {offsets = [0, 96], sizes = [8, 32], strides = [1, 1]} : vector<8x128xf32> to vector<8x32xf32>
    %637 = math.tanh %635 : vector<8x32xf32>
    %638 = arith.mulf %636, %637 : vector<8x32xf32>
    %cst_92 = arith.constant dense<0.000000e+00> : vector<8x128xf32>
    %639 = tpu.matmul %638, %591, %cst_92 {dimension_numbers = #tpu.dot_dimension_numbers<[1], [0], [0], [1], [0, 0, 1, 1], [], []>} : vector<8x32xf32>, vector<32x128xf32>, vector<8x128xf32> -> vector<8x128xf32>
    %640 = arith.addf %601, %639 : vector<8x128xf32>
    %641 = arith.negf %640 : vector<8x128xf32>
    %642 = math.exp %641 : vector<8x128xf32>
    %cst_93 = arith.constant 1.000000e+00 : f32
    %643 = vector.broadcast %cst_93 : f32 to vector<8x128xf32>
    %644 = arith.addf %643, %642 : vector<8x128xf32>
    %645 = arith.divf %643, %644 : vector<8x128xf32>
    %646 = vector.extract_strided_slice %640 {offsets = [0, 64], sizes = [8, 32], strides = [1, 1]} : vector<8x128xf32> to vector<8x32xf32>
    %647 = math.tanh %646 : vector<8x32xf32>
    %648 = vector.extract_strided_slice %645 {offsets = [0, 32], sizes = [8, 32], strides = [1, 1]} : vector<8x128xf32> to vector<8x32xf32>
    %649 = arith.mulf %648, %635 : vector<8x32xf32>
    %650 = vector.extract_strided_slice %645 {offsets = [0, 0], sizes = [8, 32], strides = [1, 1]} : vector<8x128xf32> to vector<8x32xf32>
    %651 = arith.mulf %650, %647 : vector<8x32xf32>
    %652 = arith.addf %649, %651 : vector<8x32xf32>
    %653 = vector.extract_strided_slice %645 {offsets = [0, 96], sizes = [8, 32], strides = [1, 1]} : vector<8x128xf32> to vector<8x32xf32>
    %654 = math.tanh %652 : vector<8x32xf32>
    %655 = arith.mulf %653, %654 : vector<8x32xf32>
    %cst_94 = arith.constant dense<0.000000e+00> : vector<8x128xf32>
    %656 = tpu.matmul %655, %591, %cst_94 {dimension_numbers = #tpu.dot_dimension_numbers<[1], [0], [0], [1], [0, 0, 1, 1], [], []>} : vector<8x32xf32>, vector<32x128xf32>, vector<8x128xf32> -> vector<8x128xf32>
    %657 = arith.addf %604, %656 : vector<8x128xf32>
    %658 = arith.negf %657 : vector<8x128xf32>
    %659 = math.exp %658 : vector<8x128xf32>
    %cst_95 = arith.constant 1.000000e+00 : f32
    %660 = vector.broadcast %cst_95 : f32 to vector<8x128xf32>
    %661 = arith.addf %660, %659 : vector<8x128xf32>
    %662 = arith.divf %660, %661 : vector<8x128xf32>
    %663 = vector.extract_strided_slice %657 {offsets = [0, 64], sizes = [8, 32], strides = [1, 1]} : vector<8x128xf32> to vector<8x32xf32>
    %664 = math.tanh %663 : vector<8x32xf32>
    %665 = vector.extract_strided_slice %662 {offsets = [0, 32], sizes = [8, 32], strides = [1, 1]} : vector<8x128xf32> to vector<8x32xf32>
    %666 = arith.mulf %665, %652 : vector<8x32xf32>
    %667 = vector.extract_strided_slice %662 {offsets = [0, 0], sizes = [8, 32], strides = [1, 1]} : vector<8x128xf32> to vector<8x32xf32>
    %668 = arith.mulf %667, %664 : vector<8x32xf32>
    %669 = arith.addf %666, %668 : vector<8x32xf32>
    %670 = vector.extract_strided_slice %662 {offsets = [0, 96], sizes = [8, 32], strides = [1, 1]} : vector<8x128xf32> to vector<8x32xf32>
    %671 = math.tanh %669 : vector<8x32xf32>
    %672 = arith.mulf %670, %671 : vector<8x32xf32>
    %cst_96 = arith.constant dense<0.000000e+00> : vector<8x128xf32>
    %673 = tpu.matmul %672, %591, %cst_96 {dimension_numbers = #tpu.dot_dimension_numbers<[1], [0], [0], [1], [0, 0, 1, 1], [], []>} : vector<8x32xf32>, vector<32x128xf32>, vector<8x128xf32> -> vector<8x128xf32>
    %674 = arith.addf %607, %673 : vector<8x128xf32>
    %675 = arith.negf %674 : vector<8x128xf32>
    %676 = math.exp %675 : vector<8x128xf32>
    %cst_97 = arith.constant 1.000000e+00 : f32
    %677 = vector.broadcast %cst_97 : f32 to vector<8x128xf32>
    %678 = arith.addf %677, %676 : vector<8x128xf32>
    %679 = arith.divf %677, %678 : vector<8x128xf32>
    %680 = vector.extract_strided_slice %674 {offsets = [0, 64], sizes = [8, 32], strides = [1, 1]} : vector<8x128xf32> to vector<8x32xf32>
    %681 = math.tanh %680 : vector<8x32xf32>
    %682 = vector.extract_strided_slice %679 {offsets = [0, 32], sizes = [8, 32], strides = [1, 1]} : vector<8x128xf32> to vector<8x32xf32>
    %683 = arith.mulf %682, %669 : vector<8x32xf32>
    %684 = vector.extract_strided_slice %679 {offsets = [0, 0], sizes = [8, 32], strides = [1, 1]} : vector<8x128xf32> to vector<8x32xf32>
    %685 = arith.mulf %684, %681 : vector<8x32xf32>
    %686 = arith.addf %683, %685 : vector<8x32xf32>
    %687 = vector.extract_strided_slice %679 {offsets = [0, 96], sizes = [8, 32], strides = [1, 1]} : vector<8x128xf32> to vector<8x32xf32>
    %688 = math.tanh %686 : vector<8x32xf32>
    %689 = arith.mulf %687, %688 : vector<8x32xf32>
    %cst_98 = arith.constant dense<0.000000e+00> : vector<8x128xf32>
    %690 = tpu.matmul %689, %591, %cst_98 {dimension_numbers = #tpu.dot_dimension_numbers<[1], [0], [0], [1], [0, 0, 1, 1], [], []>} : vector<8x32xf32>, vector<32x128xf32>, vector<8x128xf32> -> vector<8x128xf32>
    %691 = arith.addf %610, %690 : vector<8x128xf32>
    %692 = arith.negf %691 : vector<8x128xf32>
    %693 = math.exp %692 : vector<8x128xf32>
    %cst_99 = arith.constant 1.000000e+00 : f32
    %694 = vector.broadcast %cst_99 : f32 to vector<8x128xf32>
    %695 = arith.addf %694, %693 : vector<8x128xf32>
    %696 = arith.divf %694, %695 : vector<8x128xf32>
    %697 = vector.extract_strided_slice %691 {offsets = [0, 64], sizes = [8, 32], strides = [1, 1]} : vector<8x128xf32> to vector<8x32xf32>
    %698 = math.tanh %697 : vector<8x32xf32>
    %699 = vector.extract_strided_slice %696 {offsets = [0, 32], sizes = [8, 32], strides = [1, 1]} : vector<8x128xf32> to vector<8x32xf32>
    %700 = arith.mulf %699, %686 : vector<8x32xf32>
    %701 = vector.extract_strided_slice %696 {offsets = [0, 0], sizes = [8, 32], strides = [1, 1]} : vector<8x128xf32> to vector<8x32xf32>
    %702 = arith.mulf %701, %698 : vector<8x32xf32>
    %703 = arith.addf %700, %702 : vector<8x32xf32>
    %704 = vector.extract_strided_slice %696 {offsets = [0, 96], sizes = [8, 32], strides = [1, 1]} : vector<8x128xf32> to vector<8x32xf32>
    %705 = math.tanh %703 : vector<8x32xf32>
    %706 = arith.mulf %704, %705 : vector<8x32xf32>
    %cst_100 = arith.constant dense<0.000000e+00> : vector<8x128xf32>
    %707 = tpu.matmul %706, %591, %cst_100 {dimension_numbers = #tpu.dot_dimension_numbers<[1], [0], [0], [1], [0, 0, 1, 1], [], []>} : vector<8x32xf32>, vector<32x128xf32>, vector<8x128xf32> -> vector<8x128xf32>
    %708 = arith.addf %613, %707 : vector<8x128xf32>
    %709 = arith.negf %708 : vector<8x128xf32>
    %710 = math.exp %709 : vector<8x128xf32>
    %cst_101 = arith.constant 1.000000e+00 : f32
    %711 = vector.broadcast %cst_101 : f32 to vector<8x128xf32>
    %712 = arith.addf %711, %710 : vector<8x128xf32>
    %713 = arith.divf %711, %712 : vector<8x128xf32>
    %714 = vector.extract_strided_slice %708 {offsets = [0, 64], sizes = [8, 32], strides = [1, 1]} : vector<8x128xf32> to vector<8x32xf32>
    %715 = math.tanh %714 : vector<8x32xf32>
    %716 = vector.extract_strided_slice %713 {offsets = [0, 32], sizes = [8, 32], strides = [1, 1]} : vector<8x128xf32> to vector<8x32xf32>
    %717 = arith.mulf %716, %703 : vector<8x32xf32>
    %718 = vector.extract_strided_slice %713 {offsets = [0, 0], sizes = [8, 32], strides = [1, 1]} : vector<8x128xf32> to vector<8x32xf32>
    %719 = arith.mulf %718, %715 : vector<8x32xf32>
    %720 = arith.addf %717, %719 : vector<8x32xf32>
    %721 = vector.extract_strided_slice %713 {offsets = [0, 96], sizes = [8, 32], strides = [1, 1]} : vector<8x128xf32> to vector<8x32xf32>
    %722 = math.tanh %720 : vector<8x32xf32>
    %723 = arith.mulf %721, %722 : vector<8x32xf32>
    %cst_102 = arith.constant dense<0.000000e+00> : vector<8x128xf32>
    %724 = tpu.matmul %723, %591, %cst_102 {dimension_numbers = #tpu.dot_dimension_numbers<[1], [0], [0], [1], [0, 0, 1, 1], [], []>} : vector<8x32xf32>, vector<32x128xf32>, vector<8x128xf32> -> vector<8x128xf32>
    %725 = arith.addf %616, %724 : vector<8x128xf32>
    %726 = arith.negf %725 : vector<8x128xf32>
    %727 = math.exp %726 : vector<8x128xf32>
    %cst_103 = arith.constant 1.000000e+00 : f32
    %728 = vector.broadcast %cst_103 : f32 to vector<8x128xf32>
    %729 = arith.addf %728, %727 : vector<8x128xf32>
    %730 = arith.divf %728, %729 : vector<8x128xf32>
    %731 = vector.extract_strided_slice %725 {offsets = [0, 64], sizes = [8, 32], strides = [1, 1]} : vector<8x128xf32> to vector<8x32xf32>
    %732 = math.tanh %731 : vector<8x32xf32>
    %733 = vector.extract_strided_slice %730 {offsets = [0, 32], sizes = [8, 32], strides = [1, 1]} : vector<8x128xf32> to vector<8x32xf32>
    %734 = arith.mulf %733, %720 : vector<8x32xf32>
    %735 = vector.extract_strided_slice %730 {offsets = [0, 0], sizes = [8, 32], strides = [1, 1]} : vector<8x128xf32> to vector<8x32xf32>
    %736 = arith.mulf %735, %732 : vector<8x32xf32>
    %737 = arith.addf %734, %736 : vector<8x32xf32>
    %738 = vector.extract_strided_slice %730 {offsets = [0, 96], sizes = [8, 32], strides = [1, 1]} : vector<8x128xf32> to vector<8x32xf32>
    %739 = math.tanh %737 : vector<8x32xf32>
    %740 = arith.mulf %738, %739 : vector<8x32xf32>
    %cst_104 = arith.constant dense<0.000000e+00> : vector<8x128xf32>
    %741 = tpu.matmul %740, %591, %cst_104 {dimension_numbers = #tpu.dot_dimension_numbers<[1], [0], [0], [1], [0, 0, 1, 1], [], []>} : vector<8x32xf32>, vector<32x128xf32>, vector<8x128xf32> -> vector<8x128xf32>
    %742 = arith.addf %619, %741 : vector<8x128xf32>
    %743 = arith.negf %742 : vector<8x128xf32>
    %744 = math.exp %743 : vector<8x128xf32>
    %cst_105 = arith.constant 1.000000e+00 : f32
    %745 = vector.broadcast %cst_105 : f32 to vector<8x128xf32>
    %746 = arith.addf %745, %744 : vector<8x128xf32>
    %747 = arith.divf %745, %746 : vector<8x128xf32>
    %748 = vector.extract_strided_slice %742 {offsets = [0, 64], sizes = [8, 32], strides = [1, 1]} : vector<8x128xf32> to vector<8x32xf32>
    %749 = math.tanh %748 : vector<8x32xf32>
    %750 = vector.extract_strided_slice %747 {offsets = [0, 32], sizes = [8, 32], strides = [1, 1]} : vector<8x128xf32> to vector<8x32xf32>
    %751 = arith.mulf %750, %737 : vector<8x32xf32>
    %752 = vector.extract_strided_slice %747 {offsets = [0, 0], sizes = [8, 32], strides = [1, 1]} : vector<8x128xf32> to vector<8x32xf32>
    %753 = arith.mulf %752, %749 : vector<8x32xf32>
    %754 = arith.addf %751, %753 : vector<8x32xf32>
    %755 = vector.extract_strided_slice %747 {offsets = [0, 96], sizes = [8, 32], strides = [1, 1]} : vector<8x128xf32> to vector<8x32xf32>
    %756 = math.tanh %754 : vector<8x32xf32>
    %757 = arith.mulf %755, %756 : vector<8x32xf32>
    %758 = arith.select %21, %638, %757 : vector<8x32xi1>, vector<8x32xf32>
    %759 = arith.select %21, %655, %740 : vector<8x32xi1>, vector<8x32xf32>
    %760 = arith.select %21, %672, %723 : vector<8x32xi1>, vector<8x32xf32>
    %761 = arith.select %21, %689, %706 : vector<8x32xi1>, vector<8x32xf32>
    %762 = arith.select %21, %706, %689 : vector<8x32xi1>, vector<8x32xf32>
    %763 = arith.select %21, %723, %672 : vector<8x32xi1>, vector<8x32xf32>
    %764 = arith.select %21, %740, %655 : vector<8x32xi1>, vector<8x32xf32>
    %765 = arith.select %21, %757, %638 : vector<8x32xi1>, vector<8x32xf32>
    %766 = tpu.concatenate %758, %759, %760, %761, %762, %763, %764, %765 in 0 : vector<8x32xf32>, vector<8x32xf32>, vector<8x32xf32>, vector<8x32xf32>, vector<8x32xf32>, vector<8x32xf32>, vector<8x32xf32>, vector<8x32xf32> -> vector<64x32xf32>
    %c256 = arith.constant 256 : index
    %c0_106 = arith.constant 0 : index
    %767 = vector.load %arg2[%c256, %c0_106] : memref<288x128xf32, #tpu.memory_space<vmem>>, vector<32x128xf32>
    %cst_107 = arith.constant dense<0.000000e+00> : vector<64x128xf32>
    %768 = tpu.matmul %766, %767, %cst_107 {dimension_numbers = #tpu.dot_dimension_numbers<[1], [0], [0], [1], [0, 0, 1, 1], [], []>} : vector<64x32xf32>, vector<32x128xf32>, vector<64x128xf32> -> vector<64x128xf32>
    %c4 = arith.constant 4 : index
    %c0_108 = arith.constant 0 : index
    %769 = vector.load %arg3[%c4, %c0_108] : memref<8x128xf32, #tpu.memory_space<vmem>>, vector<1x128xf32>
    %770 = vector.broadcast %769 : vector<1x128xf32> to vector<64x128xf32>
    %771 = arith.addf %768, %770 : vector<64x128xf32>
    %772 = vector.extract_strided_slice %771 {offsets = [0, 0], sizes = [64, 32], strides = [1, 1]} : vector<64x128xf32> to vector<64x32xf32>
    %773 = vector.extract_strided_slice %771 {offsets = [0, 32], sizes = [64, 32], strides = [1, 1]} : vector<64x128xf32> to vector<64x32xf32>
    "tpu.trace_start"() <{level = 10 : i32, message = "na,ma->nm"}> : () -> ()
    %cst_109 = arith.constant dense<0.000000e+00> : vector<64x64xf32>
    %774 = tpu.matmul %772, %773, %cst_109 {dimension_numbers = #tpu.dot_dimension_numbers<[1], [1], [0], [0], [0, 0, 1, 0], [], []>} : vector<64x32xf32>, vector<64x32xf32>, vector<64x64xf32> -> vector<64x64xf32>
    "tpu.trace_stop"() : () -> ()
    %cst_110 = arith.constant 0.176776692 : f32
    %775 = vector.broadcast %cst_110 : f32 to vector<64x64xf32>
    %776 = arith.mulf %774, %775 : vector<64x64xf32>
    %cst_111 = arith.constant -1.000000e+30 : f32
    %777 = vector.broadcast %cst_111 : f32 to vector<64x64xf32>
    %778 = arith.select %56, %776, %777 : vector<64x64xi1>, vector<64x64xf32>
    %cst_112 = arith.constant dense<0xFF800000> : vector<64xf32>
    %779 = vector.multi_reduction <maximumf>, %778, %cst_112 [1] : vector<64x64xf32> to vector<64xf32>
    %780 = vector.shape_cast %779 : vector<64xf32> to vector<64x1xf32>
    %781 = vector.broadcast %780 : vector<64x1xf32> to vector<64x64xf32>
    %782 = arith.subf %778, %781 : vector<64x64xf32>
    %783 = math.exp %782 : vector<64x64xf32>
    %cst_113 = arith.constant dense<0.000000e+00> : vector<64xf32>
    %784 = vector.multi_reduction <add>, %783, %cst_113 [1] : vector<64x64xf32> to vector<64xf32>
    %785 = vector.shape_cast %784 : vector<64xf32> to vector<64x1xf32>
    %786 = vector.broadcast %785 : vector<64x1xf32> to vector<64x64xf32>
    %787 = arith.divf %783, %786 : vector<64x64xf32>
    %cst_114 = arith.constant dense<0.000000e+00> : vector<64x128xf32>
    %788 = tpu.matmul %787, %771, %cst_114 {dimension_numbers = #tpu.dot_dimension_numbers<[1], [0], [0], [1], [0, 0, 1, 1], [], []>} : vector<64x64xf32>, vector<64x128xf32>, vector<64x128xf32> -> vector<64x128xf32>
    %c0_115 = arith.constant 0 : index
    %c0_116 = arith.constant 0 : index
    %c0_117 = arith.constant 0 : index
    %789 = vector.load %arg4[%c0_115, %c0_116, %c0_117] : memref<1x64x128xf32, #tpu.memory_space<vmem>>, vector<1x64x128xf32>
    %790 = vector.shape_cast %789 : vector<1x64x128xf32> to vector<64x128xf32>
    %791 = vector.shape_cast %788 : vector<64x128xf32> to vector<1x64x128xf32>
    tpu.vector_store %arg4[%c0_115, %c0_116, %c0_117], %791 {strides = array<i32>} : memref<1x64x128xf32, #tpu.memory_space<vmem>>, vector<1x64x128xf32>,
    return
  }
  func.func @transform_0(%arg0: i32) -> (i32, i32, i32) {
    %c0_i32 = arith.constant 0 : i32
    %c0_i32_0 = arith.constant 0 : i32
    %c0_i32_1 = arith.constant 0 : i32
    return %arg0, %c0_i32, %c0_i32_0 : i32, i32, i32
  }
  func.func @transform_1(%arg0: i32) -> (i32, i32) {
    %c0_i32 = arith.constant 0 : i32
    %c0_i32_0 = arith.constant 0 : i32
    %c0_i32_1 = arith.constant 0 : i32
    return %c0_i32, %c0_i32_0 : i32, i32
  }
  func.func @transform_2(%arg0: i32) -> (i32, i32) {
    %c0_i32 = arith.constant 0 : i32
    %c0_i32_0 = arith.constant 0 : i32
    %c0_i32_1 = arith.constant 0 : i32
    return %c0_i32, %c0_i32_0 : i32, i32
  }
  func.func @transform_3(%arg0: i32) -> (i32, i32, i32) {
    %c0_i32 = arith.constant 0 : i32
    %c0_i32_0 = arith.constant 0 : i32
    %c0_i32_1 = arith.constant 0 : i32
    return %arg0, %c0_i32, %c0_i32_0 : i32, i32, i32
  }
}

</mosaic_0001>

<llo_original>
// kernel: squeeze.1
$region0: #{squeeze.1}
  %s0 = inlined_call_operand.vmem [shape: f32[64], index: 0, kind: input, shape index: {}]
  %s1 = inlined_call_operand.vmem [shape: f32[1,8,8], index: 1, kind: output, shape index: {}]
  $region1: #{squeeze.1} parent=0
    #allocation0 [shape = 'u8[4096]{0}', space=vmem, size = 0x1000, scoped, tag = 'scoped mem for input reshape']
    %s3 = sshllo.u32 0, 1
    %v4 = vld [vmem:[%s0] sm:%s3]
    %5 = vst [vmem:[#allocation0] sm:%s3] %v4
    %v6 = vld [vmem:[#allocation0] sm:$0x1]
    %vm7 = vcmask 64512
    %8 = vst.msk [vmem:[%s1] sm:$0x1] %vm7, %v6
    %v9 = vld [vmem:[#allocation0] sm:$0x1]
    %10 = vrot.lane.b32.xlu0 %v9, 120
    %v11 = vpop.permute.xlu0 %10
    %vm12 = vcmask 64512
    %s13 = scalar_lea.vmem %s1, 1
    %14 = vst.msk [vmem:[%s13] sm:$0x1] %vm12, %v11
    %v15 = vld [vmem:[#allocation0] sm:$0x1]
    %16 = vrot.lane.b32.xlu0 %v15, 112
    %v17 = vpop.permute.xlu0 %16
    %vm18 = vcmask 64512
    %s19 = scalar_lea.vmem %s1, 2
    %20 = vst.msk [vmem:[%s19] sm:$0x1] %vm18, %v17
    %v21 = vld [vmem:[#allocation0] sm:$0x1]
    %22 = vrot.lane.b32.xlu0 %v21, 104
    %v23 = vpop.permute.xlu0 %22
    %vm24 = vcmask 64512
    %s25 = scalar_lea.vmem %s1, 3
    %26 = vst.msk [vmem:[%s25] sm:$0x1] %vm24, %v23
    %v27 = vld [vmem:[#allocation0] sm:$0x1]
    %28 = vrot.lane.b32.xlu0 %v27, 96
    %v29 = vpop.permute.xlu0 %28
    %vm30 = vcmask 64512
    %s31 = scalar_lea.vmem %s1, 4
    %32 = vst.msk [vmem:[%s31] sm:$0x1] %vm30, %v29
    %v33 = vld [vmem:[#allocation0] sm:$0x1]
    %34 = vrot.lane.b32.xlu0 %v33, 88
    %v35 = vpop.permute.xlu0 %34
    %vm36 = vcmask 64512
    %s37 = scalar_lea.vmem %s1, 5
    %38 = vst.msk [vmem:[%s37] sm:$0x1] %vm36, %v35
    %v39 = vld [vmem:[#allocation0] sm:$0x1]
    %40 = vrot.lane.b32.xlu0 %v39, 80
    %v41 = vpop.permute.xlu0 %40
    %vm42 = vcmask 64512
    %s43 = scalar_lea.vmem %s1, 6
    %44 = vst.msk [vmem:[%s43] sm:$0x1] %vm42, %v41
    %v45 = vld [vmem:[#allocation0] sm:$0x1]
    %46 = vrot.lane.b32.xlu0 %v45, 72
    %v47 = vpop.permute.xlu0 %46
    %vm48 = vcmask 64512
    %s49 = scalar_lea.vmem %s1, 7
    %50 = vst.msk [vmem:[%s49] sm:$0x1] %vm48, %v47

// kernel: forward.1
$region0: #{forward.1}
  #allocation0 [shape = 'u32[]', space=smem, size = 0x4, offset = 0x4, fixed_abs, tag = 'smem constant byte address 0x4 - core index']
  #allocation1 [shape = 'u32[144,128]{1,0:T(1,128)}', space=vmem, size = 0x12000, scoped, tag = 'internal scratch']
  %s0 = inlined_call_operand.vmem [shape: f32[1,64,32], index: 0, kind: input, shape index: {}]
  %s1 = inlined_call_operand.vmem [shape: f32[288,128], index: 1, kind: input, shape index: {}]
  %s2 = inlined_call_operand.vmem [shape: f32[8,128], index: 2, kind: input, shape index: {}]
  %s3 = inlined_call_operand.vmem [shape: f32[1,64,128], index: 3, kind: output, shape index: {}]
  %s4 = sld [smem:[#allocation0]]
  $region22: #{forward.1} parent=0
    _
  %s6 = ssub.s32 1, %s4
  %s7 = scalar_select 0, %s6, %s4
  // Predicated region
  $region2: #{forward.1} parent=0 // pred_check
    _
  $region3: #{forward.1} parent=0 // pred_check_branch
    %9 = sbr.rel (0) target = $region5
  $region4: #{forward.1} parent=0 // pred_region
    _
  $region5: #{forward.1} parent=0 // pred_fallthru
    _
  // Predicated region
  $region6: #{forward.1} parent=0 // pred_check
    _
  $region7: #{forward.1} parent=0 // pred_check_branch
    %11 = sbr.rel (0) target = $region9
  $region8: #{forward.1} parent=0 // pred_region
    _
  $region9: #{forward.1} parent=0 // pred_fallthru
    _
  // Predicated region
  $region10: #{forward.1} parent=0 // pred_check
    _
  $region11: #{forward.1} parent=0 // pred_check_branch
    %13 = sbr.rel (0) target = $region13
  $region12: #{forward.1} parent=0 // pred_region
    _
  $region13: #{forward.1} parent=0 // pred_fallthru
    _
  %v14 = vlaneseq
  %v15 = vand.u32 %v14, 127
  %vm16 = vcmp.lt.s32.totalorder %v15, 0
  %v17 = vsub.s32 0, %v15
  %v18 = vsel %vm16, %v17, %v15
  %v19 = vshrl.u32 %v18, 5
  %v20 = vand.u32 %v18, 31
  %v21 = vsub.s32 0, %v20
  %v22 = vsel %vm16, %v21, %v20
  %vm23 = vcmp.ne.s32.totalorder %v22, 0
  %vm24 = vcmp.lt.s32.totalorder %v22, 0
  %vm25 = vmand %vm24, %vm23
  %v26 = vadd.s32 %v22, 32
  %v27 = vsel %vm25, %v26, %v22
  %vm28 = vcmp.lt.s32.totalorder %v27, 16
  %vm29 = vcmp.lt.s32.totalorder %v15, 16
  %v30 = vlaneseq
  %v31 = vshrl.u32 %v30, 7
  %v32 = vadd.s32 %v31, 8
  %v33 = vadd.s32 %v31, 16
  %v34 = vadd.s32 %v31, 24
  %v35 = vadd.s32 %v31, 32
  %v36 = vadd.s32 %v31, 40
  %v37 = vadd.s32 %v31, 48
  %v38 = vadd.s32 %v31, 56
  %vm39 = vcmp.lt.s32.totalorder %v31, 0
  %v40 = vsub.s32 0, %v31
  %v41 = vsel %vm39, %v40, %v31
  %v42 = vshrl.u32 %v41, 3
  %v43 = vand.u32 %v41, 7
  %v44 = vsub.s32 0, %v43
  %v45 = vsel %vm39, %v44, %v43
  %vm46 = vcmp.lt.s32.totalorder %v32, 0
  %v47 = vsub.s32 0, %v32
  %v48 = vsel %vm46, %v47, %v32
  %v49 = vshrl.u32 %v48, 3
  %v50 = vand.u32 %v48, 7
  %v51 = vsub.s32 0, %v50
  %v52 = vsel %vm46, %v51, %v50
  %vm53 = vcmp.lt.s32.totalorder %v33, 0
  %v54 = vsub.s32 0, %v33
  %v55 = vsel %vm53, %v54, %v33
  %v56 = vshrl.u32 %v55, 3
  %v57 = vand.u32 %v55, 7
  %v58 = vsub.s32 0, %v57
  %v59 = vsel %vm53, %v58, %v57
  %vm60 = vcmp.lt.s32.totalorder %v34, 0
  %v61 = vsub.s32 0, %v34
  %v62 = vsel %vm60, %v61, %v34
  %v63 = vshrl.u32 %v62, 3
  %v64 = vand.u32 %v62, 7
  %v65 = vsub.s32 0, %v64
  %v66 = vsel %vm60, %v65, %v64
  %vm67 = vcmp.lt.s32.totalorder %v35, 0
  %v68 = vsub.s32 0, %v35
  %v69 = vsel %vm67, %v68, %v35
  %v70 = vshrl.u32 %v69, 3
  %v71 = vand.u32 %v69, 7
  %v72 = vsub.s32 0, %v71
  %v73 = vsel %vm67, %v72, %v71
  %vm74 = vcmp.lt.s32.totalorder %v36, 0
  %v75 = vsub.s32 0, %v36
  %v76 = vsel %vm74, %v75, %v36
  %v77 = vshrl.u32 %v76, 3
  %v78 = vand.u32 %v76, 7
  %v79 = vsub.s32 0, %v78
  %v80 = vsel %vm74, %v79, %v78
  %vm81 = vcmp.lt.s32.totalorder %v37, 0
  %v82 = vsub.s32 0, %v37
  %v83 = vsel %vm81, %v82, %v37
  %v84 = vshrl.u32 %v83, 3
  %v85 = vand.u32 %v83, 7
  %v86 = vsub.s32 0, %v85
  %v87 = vsel %vm81, %v86, %v85
  %vm88 = vcmp.lt.s32.totalorder %v38, 0
  %v89 = vsub.s32 0, %v38
  %v90 = vsel %vm88, %v89, %v38
  %v91 = vshrl.u32 %v90, 3
  %v92 = vand.u32 %v90, 7
  %v93 = vsub.s32 0, %v92
  %v94 = vsel %vm88, %v93, %v92
  %vm95 = vcmp.ne.s32.totalorder %v45, 0
  %vm96 = vcmp.ne.s32.totalorder %v52, 0
  %vm97 = vcmp.ne.s32.totalorder %v59, 0
  %vm98 = vcmp.ne.s32.totalorder %v66, 0
  %vm99 = vcmp.ne.s32.totalorder %v73, 0
  %vm100 = vcmp.ne.s32.totalorder %v80, 0
  %vm101 = vcmp.ne.s32.totalorder %v87, 0
  %vm102 = vcmp.ne.s32.totalorder %v94, 0
  %vm103 = vcmp.lt.s32.totalorder %v45, 0
  %vm104 = vcmp.lt.s32.totalorder %v52, 0
  %vm105 = vcmp.lt.s32.totalorder %v59, 0
  %vm106 = vcmp.lt.s32.totalorder %v66, 0
  %vm107 = vcmp.lt.s32.totalorder %v73, 0
  %vm108 = vcmp.lt.s32.totalorder %v80, 0
  %vm109 = vcmp.lt.s32.totalorder %v87, 0
  %vm110 = vcmp.lt.s32.totalorder %v94, 0
  %vm111 = vmand %vm103, %vm95
  %vm112 = vmand %vm104, %vm96
  %vm113 = vmand %vm105, %vm97
  %vm114 = vmand %vm106, %vm98
  %vm115 = vmand %vm107, %vm99
  %vm116 = vmand %vm108, %vm100
  %vm117 = vmand %vm109, %vm101
  %vm118 = vmand %vm110, %vm102
  %v119 = vadd.s32 %v45, 8
  %v120 = vadd.s32 %v52, 8
  %v121 = vadd.s32 %v59, 8
  %v122 = vadd.s32 %v66, 8
  %v123 = vadd.s32 %v73, 8
  %v124 = vadd.s32 %v80, 8
  %v125 = vadd.s32 %v87, 8
  %v126 = vadd.s32 %v94, 8
  %v127 = vsel %vm111, %v119, %v45
  %v128 = vsel %vm112, %v120, %v52
  %v129 = vsel %vm113, %v121, %v59
  %v130 = vsel %vm114, %v122, %v66
  %v131 = vsel %vm115, %v123, %v73
  %v132 = vsel %vm116, %v124, %v80
  %v133 = vsel %vm117, %v125, %v87
  %v134 = vsel %vm118, %v126, %v94
  %vm135 = vcmp.lt.s32.totalorder %v15, 0
  %v136 = vsub.s32 0, %v15
  %v137 = vsel %vm135, %v136, %v15
  %v138 = vshrl.u32 %v137, 3
  %v139 = vand.u32 %v137, 7
  %v140 = vsub.s32 0, %v139
  %v141 = vsel %vm135, %v140, %v139
  %vm142 = vcmp.ne.s32.totalorder %v141, 0
  %vm143 = vcmp.lt.s32.totalorder %v141, 0
  %vm144 = vmand %vm143, %vm142
  %v145 = vadd.s32 %v141, 8
  %v146 = vsel %vm144, %v145, %v141
  %vm147 = vcmp.eq.s32.totalorder %v127, %v146
  %vm148 = vcmp.eq.s32.totalorder %v128, %v146
  %vm149 = vcmp.eq.s32.totalorder %v129, %v146
  %vm150 = vcmp.eq.s32.totalorder %v130, %v146
  %vm151 = vcmp.eq.s32.totalorder %v131, %v146
  %vm152 = vcmp.eq.s32.totalorder %v132, %v146
  %vm153 = vcmp.eq.s32.totalorder %v133, %v146
  %vm154 = vcmp.eq.s32.totalorder %v134, %v146
  %v155 = vld [vmem:[%s0] sm:$0xff]
  %v156 = vld [vmem:[%s0 + $0x8] sm:$0xff]
  %v157 = vld [vmem:[%s0 + $0x10] sm:$0xff]
  %v158 = vld [vmem:[%s0 + $0x18] sm:$0xff]
  %v159 = vld [vmem:[%s0 + $0x20] sm:$0xff]
  %v160 = vld [vmem:[%s0 + $0x28] sm:$0xff]
  %v161 = vld [vmem:[%s0 + $0x30] sm:$0xff]
  %v162 = vld [vmem:[%s0 + $0x38] sm:$0xff]
  %v163 = vld [vmem:[%s1] sm:$0xff]
  %v164 = vld [vmem:[%s1 + $0x8] sm:$0xff]
  %v165 = vld [vmem:[%s1 + $0x10] sm:$0xff]
  %v166 = vld [vmem:[%s1 + $0x18] sm:$0xff]
  %v167 = vld [vmem:[%s1 + $0x20] sm:$0xff]
  %v168 = vld [vmem:[%s1 + $0x28] sm:$0xff]
  %v169 = vld [vmem:[%s1 + $0x30] sm:$0xff]
  %v170 = vld [vmem:[%s1 + $0x38] sm:$0xff]
  %v171 = vld [vmem:[%s2] sm:$0x1]
  %v172 = vlaneseq
  %v173 = vshrl.u32 %v172, 7
  %v174 = vsub.s32 0, %v173
  %v175 = vrot.slane %v171, %v174
  %vm176 = vcmask 261120
  %v178 = vsel %vm176, %v155, 0
  %v181 = vsel %vm176, %v156, 0
  %v184 = vsel %vm176, %v157, 0
  %v187 = vsel %vm176, %v158, 0
  %v190 = vsel %vm176, %v159, 0
  %v193 = vsel %vm176, %v160, 0
  %v196 = vsel %vm176, %v161, 0
  %v199 = vsel %vm176, %v162, 0
  %201 = vmatprep.subr.mxu0 0.0
  %202 = vmatpush1.msra.mxu0 %v163
  %203 = vmatprep.subr.mxu0 0.0
  %204 = vmatpush1.msra.mxu0 %v164
  %205 = vmatprep.subr.mxu0 0.0
  %206 = vmatpush1.msra.mxu0 %v165
  %207 = vmatprep.subr.mxu0 0.0
  %208 = vmatpush1.msra.mxu0 %v166
  %209 = vmatprep.subr.mxu0 0.0
  %210 = vmatpush1.msra.mxu0 0.0
  %211 = vmatprep.subr.mxu0 0.0
  %212 = vmatpush1.msra.mxu0 0.0
  %213 = vmatprep.subr.mxu0 0.0
  %214 = vmatpush1.msra.mxu0 0.0
  %215 = vmatprep.subr.mxu0 0.0
  %216 = vmatpush1.msra.mxu0 0.0
  %217 = vmatprep.subr.mxu0 0.0
  %218 = vmatpush1.msra.mxu0 0.0
  %219 = vmatprep.subr.mxu0 0.0
  %220 = vmatpush1.msra.mxu0 0.0
  %221 = vmatprep.subr.mxu0 0.0
  %222 = vmatpush1.msra.mxu0 0.0
  %223 = vmatprep.subr.mxu0 0.0
  %224 = vmatpush1.msra.mxu0 0.0
  %225 = vmatprep.subr.mxu0 0.0
  %226 = vmatpush1.msra.mxu0 0.0
  %227 = vmatprep.subr.mxu0 0.0
  %228 = vmatpush1.msra.mxu0 0.0
  %229 = vmatprep.subr.mxu0 0.0
  %230 = vmatpush1.msra.mxu0 0.0
  %231 = vmatprep.subr.mxu0 0.0
  %232 = vmatpush1.msra.mxu0 0.0
  %233 = vmatprep.subr.mxu0 0.0
  %234 = vmatpush1.msra.mxu0 0.0
  %235 = vmatprep.subr.mxu0 0.0
  %236 = vmatpush1.msra.mxu0 0.0
  %237 = vmatprep.subr.mxu0 0.0
  %238 = vmatpush1.msra.mxu0 0.0
  %239 = vmatprep.subr.mxu0 0.0
  %240 = vmatpush1.msra.mxu0 0.0
  %241 = vmatprep.subr.mxu0 0.0
  %242 = vmatpush1.msra.mxu0 0.0
  %243 = vmatprep.subr.mxu0 0.0
  %244 = vmatpush1.msra.mxu0 0.0
  %245 = vmatprep.subr.mxu0 0.0
  %246 = vmatpush1.msra.mxu0 0.0
  %247 = vmatprep.subr.mxu0 0.0
  %248 = vmatpush1.msra.mxu0 0.0
  %249 = vmatprep.subr.mxu0 0.0
  %250 = vmatpush1.msra.mxu0 0.0
  %251 = vmatprep.subr.mxu0 0.0
  %252 = vmatpush1.msra.mxu0 0.0
  %253 = vmatprep.subr.mxu0 0.0
  %254 = vmatpush1.msra.mxu0 0.0
  %255 = vmatprep.subr.mxu0 0.0
  %256 = vmatpush1.msra.mxu0 0.0
  %257 = vmatprep.subr.mxu0 0.0
  %258 = vmatpush1.msra.mxu0 0.0
  %259 = vmatprep.subr.mxu0 0.0
  %260 = vmatpush1.msra.mxu0 0.0
  %261 = vmatprep.subr.mxu0 0.0
  %262 = vmatpush1.msra.mxu0 0.0
  %263 = vmatprep.subr.mxu0 0.0
  %264 = vmatpush1.msra.mxu0 0.0
  %265 = vmatprep.mubr.f32.mxu0 0.0
  %266 = vmatmul.mubr.f32.gmra.mrb[0].mxu0 %v178
  %v267 = vpop.f32.mrb[0].mxu0
  %v268 = vadd.f32 %v175, %v267
  %v269 = vpop.f32.mrb[0].mxu0
  %270 = vmatprep.mubr.f32.mxu0 0.0
  %271 = vmatmul.mubr.f32.gmra.mrb[0].mxu0 %v181
  %v272 = vpop.f32.mrb[0].mxu0
  %v273 = vadd.f32 %v175, %v272
  %v274 = vpop.f32.mrb[0].mxu0
  %275 = vmatprep.mubr.f32.mxu0 0.0
  %276 = vmatmul.mubr.f32.gmra.mrb[0].mxu0 %v184
  %v277 = vpop.f32.mrb[0].mxu0
  %v278 = vadd.f32 %v175, %v277
  %v279 = vpop.f32.mrb[0].mxu0
  %280 = vmatprep.mubr.f32.mxu0 0.0
  %281 = vmatmul.mubr.f32.gmra.mrb[0].mxu0 %v187
  %v282 = vpop.f32.mrb[0].mxu0
  %v283 = vadd.f32 %v175, %v282
  %v284 = vpop.f32.mrb[0].mxu0
  %285 = vmatprep.mubr.f32.mxu0 0.0
  %286 = vmatmul.mubr.f32.gmra.mrb[0].mxu0 %v190
  %v287 = vpop.f32.mrb[0].mxu0
  %v288 = vadd.f32 %v175, %v287
  %v289 = vpop.f32.mrb[0].mxu0
  %290 = vmatprep.mubr.f32.mxu0 0.0
  %291 = vmatmul.mubr.f32.gmra.mrb[0].mxu0 %v193
  %v292 = vpop.f32.mrb[0].mxu0
  %v293 = vadd.f32 %v175, %v292
  %v294 = vpop.f32.mrb[0].mxu0
  %295 = vmatprep.mubr.f32.mxu0 0.0
  %296 = vmatmul.mubr.f32.gmra.mrb[0].mxu0 %v196
  %v297 = vpop.f32.mrb[0].mxu0
  %v298 = vadd.f32 %v175, %v297
  %v299 = vpop.f32.mrb[0].mxu0
  %300 = vmatprep.mubr.f32.mxu0 0.0
  %301 = vmatmul.mubr.f32.gmra.mrb[0].mxu0 %v199
  %v302 = vpop.f32.mrb[0].mxu0
  %v303 = vadd.f32 %v175, %v302
  %v304 = vpop.f32.mrb[0].mxu0
  %305 = vdwg.mxu0
  %v306 = vsel %vm28, %v268, %v303
  %v307 = vsel %vm28, %v273, %v298
  %v308 = vsel %vm28, %v278, %v293
  %v309 = vsel %vm28, %v283, %v288
  %v310 = vsel %vm28, %v288, %v283
  %v311 = vsel %vm28, %v293, %v278
  %v312 = vsel %vm28, %v298, %v273
  %v313 = vsel %vm28, %v303, %v268
  %v315 = vsel %vm176, 0.0, 0
  %317 = vmatprep.subr.mxu0 0.0
  %318 = vmatpush1.msra.mxu0 %v167
  %319 = vmatprep.subr.mxu0 0.0
  %320 = vmatpush1.msra.mxu0 %v168
  %321 = vmatprep.subr.mxu0 0.0
  %322 = vmatpush1.msra.mxu0 %v169
  %323 = vmatprep.subr.mxu0 0.0
  %324 = vmatpush1.msra.mxu0 %v170
  %325 = vmatprep.subr.mxu0 0.0
  %326 = vmatpush1.msra.mxu0 0.0
  %327 = vmatprep.subr.mxu0 0.0
  %328 = vmatpush1.msra.mxu0 0.0
  %329 = vmatprep.subr.mxu0 0.0
  %330 = vmatpush1.msra.mxu0 0.0
  %331 = vmatprep.subr.mxu0 0.0
  %332 = vmatpush1.msra.mxu0 0.0
  %333 = vmatprep.subr.mxu0 0.0
  %334 = vmatpush1.msra.mxu0 0.0
  %335 = vmatprep.subr.mxu0 0.0
  %336 = vmatpush1.msra.mxu0 0.0
  %337 = vmatprep.subr.mxu0 0.0
  %338 = vmatpush1.msra.mxu0 0.0
  %339 = vmatprep.subr.mxu0 0.0
  %340 = vmatpush1.msra.mxu0 0.0
  %341 = vmatprep.subr.mxu0 0.0
  %342 = vmatpush1.msra.mxu0 0.0
  %343 = vmatprep.subr.mxu0 0.0
  %344 = vmatpush1.msra.mxu0 0.0
  %345 = vmatprep.subr.mxu0 0.0
  %346 = vmatpush1.msra.mxu0 0.0
  %347 = vmatprep.subr.mxu0 0.0
  %348 = vmatpush1.msra.mxu0 0.0
  %349 = vmatprep.subr.mxu0 0.0
  %350 = vmatpush1.msra.mxu0 0.0
  %351 = vmatprep.subr.mxu0 0.0
  %352 = vmatpush1.msra.mxu0 0.0
  %353 = vmatprep.subr.mxu0 0.0
  %354 = vmatpush1.msra.mxu0 0.0
  %355 = vmatprep.subr.mxu0 0.0
  %356 = vmatpush1.msra.mxu0 0.0
  %357 = vmatprep.subr.mxu0 0.0
  %358 = vmatpush1.msra.mxu0 0.0
  %359 = vmatprep.subr.mxu0 0.0
  %360 = vmatpush1.msra.mxu0 0.0
  %361 = vmatprep.subr.mxu0 0.0
  %362 = vmatpush1.msra.mxu0 0.0
  %363 = vmatprep.subr.mxu0 0.0
  %364 = vmatpush1.msra.mxu0 0.0
  %365 = vmatprep.subr.mxu0 0.0
  %366 = vmatpush1.msra.mxu0 0.0
  %367 = vmatprep.subr.mxu0 0.0
  %368 = vmatpush1.msra.mxu0 0.0
  %369 = vmatprep.subr.mxu0 0.0
  %370 = vmatpush1.msra.mxu0 0.0
  %371 = vmatprep.subr.mxu0 0.0
  %372 = vmatpush1.msra.mxu0 0.0
  %373 = vmatprep.subr.mxu0 0.0
  %374 = vmatpush1.msra.mxu0 0.0
  %375 = vmatprep.subr.mxu0 0.0
  %376 = vmatpush1.msra.mxu0 0.0
  %377 = vmatprep.subr.mxu0 0.0
  %378 = vmatpush1.msra.mxu0 0.0
  %379 = vmatprep.subr.mxu0 0.0
  %380 = vmatpush1.msra.mxu0 0.0
  %381 = vmatprep.mubr.f32.mxu0 0.0
  %382 = vmatmul.mubr.f32.gmra.mrb[0].mxu0 %v315
  %v383 = vpop.f32.mrb[0].mxu0
  %v384 = vadd.f32 0.0, %v383
  %v385 = vpop.f32.mrb[0].mxu0
  %386 = vdwg.mxu0
  %v387 = vadd.f32 %v306, %v384
  %v388 = vxor.u32 %v387, 2147483648
  %v389 = vmul.f32 %v388, 1.442695
  %v390 = vpow.pop %v389
  %v391 = vadd.f32 %v390, 1.0
  %v392 = vrcp.pop %v391
  %v393 = vmul.f32 1.0, %v392
  %v394 = vtanh.pop %v387
  %v395 = vmul.f32 %v393, 0.0
  %397 = vrot.lane.b32.xlu0 %v394, 64
  %v398 = vpop.permute.xlu0 %397
  %v400 = vmul.f32 %v393, %v398
  %402 = vrot.lane.b32.xlu0 %v400, 32
  %v403 = vpop.permute.xlu0 %402
  %v405 = vadd.f32 %v395, %v403
  %v406 = vtanh.pop %v405
  %408 = vrot.lane.b32.xlu0 %v406, 64
  %v409 = vpop.permute.xlu0 %408
  %v411 = vmul.f32 %v393, %v409
  %413 = vrot.lane.b32.xlu0 %v411, 32
  %v414 = vpop.permute.xlu0 %413
  %v415 = vsel %vm176, %v414, 0
  %417 = vmatprep.subr.mxu0 0.0
  %418 = vmatpush1.msra.mxu0 %v167
  %419 = vmatprep.subr.mxu0 0.0
  %420 = vmatpush1.msra.mxu0 %v168
  %421 = vmatprep.subr.mxu0 0.0
  %422 = vmatpush1.msra.mxu0 %v169
  %423 = vmatprep.subr.mxu0 0.0
  %424 = vmatpush1.msra.mxu0 %v170
  %425 = vmatprep.subr.mxu0 0.0
  %426 = vmatpush1.msra.mxu0 0.0
  %427 = vmatprep.subr.mxu0 0.0
  %428 = vmatpush1.msra.mxu0 0.0
  %429 = vmatprep.subr.mxu0 0.0
  %430 = vmatpush1.msra.mxu0 0.0
  %431 = vmatprep.subr.mxu0 0.0
  %432 = vmatpush1.msra.mxu0 0.0
  %433 = vmatprep.subr.mxu0 0.0
  %434 = vmatpush1.msra.mxu0 0.0
  %435 = vmatprep.subr.mxu0 0.0
  %436 = vmatpush1.msra.mxu0 0.0
  %437 = vmatprep.subr.mxu0 0.0
  %438 = vmatpush1.msra.mxu0 0.0
  %439 = vmatprep.subr.mxu0 0.0
  %440 = vmatpush1.msra.mxu0 0.0
  %441 = vmatprep.subr.mxu0 0.0
  %442 = vmatpush1.msra.mxu0 0.0
  %443 = vmatprep.subr.mxu0 0.0
  %444 = vmatpush1.msra.mxu0 0.0
  %445 = vmatprep.subr.mxu0 0.0
  %446 = vmatpush1.msra.mxu0 0.0
  %447 = vmatprep.subr.mxu0 0.0
  %448 = vmatpush1.msra.mxu0 0.0
  %449 = vmatprep.subr.mxu0 0.0
  %450 = vmatpush1.msra.mxu0 0.0
  %451 = vmatprep.subr.mxu0 0.0
  %452 = vmatpush1.msra.mxu0 0.0
  %453 = vmatprep.subr.mxu0 0.0
  %454 = vmatpush1.msra.mxu0 0.0
  %455 = vmatprep.subr.mxu0 0.0
  %456 = vmatpush1.msra.mxu0 0.0
  %457 = vmatprep.subr.mxu0 0.0
  %458 = vmatpush1.msra.mxu0 0.0
  %459 = vmatprep.subr.mxu0 0.0
  %460 = vmatpush1.msra.mxu0 0.0
  %461 = vmatprep.subr.mxu0 0.0
  %462 = vmatpush1.msra.mxu0 0.0
  %463 = vmatprep.subr.mxu0 0.0
  %464 = vmatpush1.msra.mxu0 0.0
  %465 = vmatprep.subr.mxu0 0.0
  %466 = vmatpush1.msra.mxu0 0.0
  %467 = vmatprep.subr.mxu0 0.0
  %468 = vmatpush1.msra.mxu0 0.0
  %469 = vmatprep.subr.mxu0 0.0
  %470 = vmatpush1.msra.mxu0 0.0
  %471 = vmatprep.subr.mxu0 0.0
  %472 = vmatpush1.msra.mxu0 0.0
  %473 = vmatprep.subr.mxu0 0.0
  %474 = vmatpush1.msra.mxu0 0.0
  %475 = vmatprep.subr.mxu0 0.0
  %476 = vmatpush1.msra.mxu0 0.0
  %477 = vmatprep.subr.mxu0 0.0
  %478 = vmatpush1.msra.mxu0 0.0
  %479 = vmatprep.subr.mxu0 0.0
  %480 = vmatpush1.msra.mxu0 0.0
  %481 = vmatprep.mubr.f32.mxu0 0.0
  %482 = vmatmul.mubr.f32.gmra.mrb[0].mxu0 %v415
  %v483 = vpop.f32.mrb[0].mxu0
  %v484 = vadd.f32 0.0, %v483
  %v485 = vpop.f32.mrb[0].mxu0
  %486 = vdwg.mxu0
  %v487 = vadd.f32 %v307, %v484
  %v488 = vxor.u32 %v487, 2147483648
  %v489 = vmul.f32 %v488, 1.442695
  %v490 = vpow.pop %v489
  %v491 = vadd.f32 %v490, 1.0
  %v492 = vrcp.pop %v491
  %v493 = vmul.f32 1.0, %v492
  %v494 = vtanh.pop %v487
  %v495 = vmul.f32 %v493, %v405
  %497 = vrot.lane.b32.xlu0 %v494, 64
  %v498 = vpop.permute.xlu0 %497
  %v500 = vmul.f32 %v493, %v498
  %502 = vrot.lane.b32.xlu0 %v500, 32
  %v503 = vpop.permute.xlu0 %502
  %v505 = vadd.f32 %v495, %v503
  %v506 = vtanh.pop %v505
  %508 = vrot.lane.b32.xlu0 %v506, 64
  %v509 = vpop.permute.xlu0 %508
  %v511 = vmul.f32 %v493, %v509
  %513 = vrot.lane.b32.xlu0 %v511, 32
  %v514 = vpop.permute.xlu0 %513
  %v515 = vsel %vm176, %v514, 0
  %517 = vmatprep.subr.mxu0 0.0
  %518 = vmatpush1.msra.mxu0 %v167
  %519 = vmatprep.subr.mxu0 0.0
  %520 = vmatpush1.msra.mxu0 %v168
  %521 = vmatprep.subr.mxu0 0.0
  %522 = vmatpush1.msra.mxu0 %v169
  %523 = vmatprep.subr.mxu0 0.0
  %524 = vmatpush1.msra.mxu0 %v170
  %525 = vmatprep.subr.mxu0 0.0
  %526 = vmatpush1.msra.mxu0 0.0
  %527 = vmatprep.subr.mxu0 0.0
  %528 = vmatpush1.msra.mxu0 0.0
  %529 = vmatprep.subr.mxu0 0.0
  %530 = vmatpush1.msra.mxu0 0.0
  %531 = vmatprep.subr.mxu0 0.0
  %532 = vmatpush1.msra.mxu0 0.0
  %533 = vmatprep.subr.mxu0 0.0
  %534 = vmatpush1.msra.mxu0 0.0
  %535 = vmatprep.subr.mxu0 0.0
  %536 = vmatpush1.msra.mxu0 0.0
  %537 = vmatprep.subr.mxu0 0.0
  %538 = vmatpush1.msra.mxu0 0.0
  %539 = vmatprep.subr.mxu0 0.0
  %540 = vmatpush1.msra.mxu0 0.0
  %541 = vmatprep.subr.mxu0 0.0
  %542 = vmatpush1.msra.mxu0 0.0
  %543 = vmatprep.subr.mxu0 0.0
  %544 = vmatpush1.msra.mxu0 0.0
  %545 = vmatprep.subr.mxu0 0.0
  %546 = vmatpush1.msra.mxu0 0.0
  %547 = vmatprep.subr.mxu0 0.0
  %548 = vmatpush1.msra.mxu0 0.0
  %549 = vmatprep.subr.mxu0 0.0
  %550 = vmatpush1.msra.mxu0 0.0
  %551 = vmatprep.subr.mxu0 0.0
  %552 = vmatpush1.msra.mxu0 0.0
  %553 = vmatprep.subr.mxu0 0.0
  %554 = vmatpush1.msra.mxu0 0.0
  %555 = vmatprep.subr.mxu0 0.0
  %556 = vmatpush1.msra.mxu0 0.0
  %557 = vmatprep.subr.mxu0 0.0
  %558 = vmatpush1.msra.mxu0 0.0
  %559 = vmatprep.subr.mxu0 0.0
  %560 = vmatpush1.msra.mxu0 0.0
  %561 = vmatprep.subr.mxu0 0.0
  %562 = vmatpush1.msra.mxu0 0.0
  %563 = vmatprep.subr.mxu0 0.0
  %564 = vmatpush1.msra.mxu0 0.0
  %565 = vmatprep.subr.mxu0 0.0
  %566 = vmatpush1.msra.mxu0 0.0
  %567 = vmatprep.subr.mxu0 0.0
  %568 = vmatpush1.msra.mxu0 0.0
  %569 = vmatprep.subr.mxu0 0.0
  %570 = vmatpush1.msra.mxu0 0.0
  %571 = vmatprep.subr.mxu0 0.0
  %572 = vmatpush1.msra.mxu0 0.0
  %573 = vmatprep.subr.mxu0 0.0
  %574 = vmatpush1.msra.mxu0 0.0
  %575 = vmatprep.subr.mxu0 0.0
  %576 = vmatpush1.msra.mxu0 0.0
  %577 = vmatprep.subr.mxu0 0.0
  %578 = vmatpush1.msra.mxu0 0.0
  %579 = vmatprep.subr.mxu0 0.0
  %580 = vmatpush1.msra.mxu0 0.0
  %581 = vmatprep.mubr.f32.mxu0 0.0
  %582 = vmatmul.mubr.f32.gmra.mrb[0].mxu0 %v515
  %v583 = vpop.f32.mrb[0].mxu0
  %v584 = vadd.f32 0.0, %v583
  %v585 = vpop.f32.mrb[0].mxu0
  %586 = vdwg.mxu0
  %v587 = vadd.f32 %v308, %v584
  %v588 = vxor.u32 %v587, 2147483648
  %v589 = vmul.f32 %v588, 1.442695
  %v590 = vpow.pop %v589
  %v591 = vadd.f32 %v590, 1.0
  %v592 = vrcp.pop %v591
  %v593 = vmul.f32 1.0, %v592
  %v594 = vtanh.pop %v587
  %v595 = vmul.f32 %v593, %v505
  %597 = vrot.lane.b32.xlu0 %v594, 64
  %v598 = vpop.permute.xlu0 %597
  %v600 = vmul.f32 %v593, %v598
  %602 = vrot.lane.b32.xlu0 %v600, 32
  %v603 = vpop.permute.xlu0 %602
  %v605 = vadd.f32 %v595, %v603
  %v606 = vtanh.pop %v605
  %608 = vrot.lane.b32.xlu0 %v606, 64
  %v609 = vpop.permute.xlu0 %608
  %v611 = vmul.f32 %v593, %v609
  %613 = vrot.lane.b32.xlu0 %v611, 32
  %v614 = vpop.permute.xlu0 %613
  %v615 = vsel %vm176, %v614, 0
  %617 = vmatprep.subr.mxu0 0.0
  %618 = vmatpush1.msra.mxu0 %v167
  %619 = vmatprep.subr.mxu0 0.0
  %620 = vmatpush1.msra.mxu0 %v168
  %621 = vmatprep.subr.mxu0 0.0
  %622 = vmatpush1.msra.mxu0 %v169
  %623 = vmatprep.subr.mxu0 0.0
  %624 = vmatpush1.msra.mxu0 %v170
  %625 = vmatprep.subr.mxu0 0.0
  %626 = vmatpush1.msra.mxu0 0.0
  %627 = vmatprep.subr.mxu0 0.0
  %628 = vmatpush1.msra.mxu0 0.0
  %629 = vmatprep.subr.mxu0 0.0
  %630 = vmatpush1.msra.mxu0 0.0
  %631 = vmatprep.subr.mxu0 0.0
  %632 = vmatpush1.msra.mxu0 0.0
  %633 = vmatprep.subr.mxu0 0.0
  %634 = vmatpush1.msra.mxu0 0.0
  %635 = vmatprep.subr.mxu0 0.0
  %636 = vmatpush1.msra.mxu0 0.0
  %637 = vmatprep.subr.mxu0 0.0
  %638 = vmatpush1.msra.mxu0 0.0
  %639 = vmatprep.subr.mxu0 0.0
  %640 = vmatpush1.msra.mxu0 0.0
  %641 = vmatprep.subr.mxu0 0.0
  %642 = vmatpush1.msra.mxu0 0.0
  %643 = vmatprep.subr.mxu0 0.0
  %644 = vmatpush1.msra.mxu0 0.0
  %645 = vmatprep.subr.mxu0 0.0
  %646 = vmatpush1.msra.mxu0 0.0
  %647 = vmatprep.subr.mxu0 0.0
  %648 = vmatpush1.msra.mxu0 0.0
  %649 = vmatprep.subr.mxu0 0.0
  %650 = vmatpush1.msra.mxu0 0.0
  %651 = vmatprep.subr.mxu0 0.0
  %652 = vmatpush1.msra.mxu0 0.0
  %653 = vmatprep.subr.mxu0 0.0
  %654 = vmatpush1.msra.mxu0 0.0
  %655 = vmatprep.subr.mxu0 0.0
  %656 = vmatpush1.msra.mxu0 0.0
  %657 = vmatprep.subr.mxu0 0.0
  %658 = vmatpush1.msra.mxu0 0.0
  %659 = vmatprep.subr.mxu0 0.0
  %660 = vmatpush1.msra.mxu0 0.0
  %661 = vmatprep.subr.mxu0 0.0
  %662 = vmatpush1.msra.mxu0 0.0
  %663 = vmatprep.subr.mxu0 0.0
  %664 = vmatpush1.msra.mxu0 0.0
  %665 = vmatprep.subr.mxu0 0.0
  %666 = vmatpush1.msra.mxu0 0.0
  %667 = vmatprep.subr.mxu0 0.0
  %668 = vmatpush1.msra.mxu0 0.0
  %669 = vmatprep.subr.mxu0 0.0
  %670 = vmatpush1.msra.mxu0 0.0
  %671 = vmatprep.subr.mxu0 0.0
  %672 = vmatpush1.msra.mxu0 0.0
  %673 = vmatprep.subr.mxu0 0.0
  %674 = vmatpush1.msra.mxu0 0.0
  %675 = vmatprep.subr.mxu0 0.0
  %676 = vmatpush1.msra.mxu0 0.0
  %677 = vmatprep.subr.mxu0 0.0
  %678 = vmatpush1.msra.mxu0 0.0
  %679 = vmatprep.subr.mxu0 0.0
  %680 = vmatpush1.msra.mxu0 0.0
  %681 = vmatprep.mubr.f32.mxu0 0.0
  %682 = vmatmul.mubr.f32.gmra.mrb[0].mxu0 %v615
  %v683 = vpop.f32.mrb[0].mxu0
  %v684 = vadd.f32 0.0, %v683
  %v685 = vpop.f32.mrb[0].mxu0
  %686 = vdwg.mxu0
  %v687 = vadd.f32 %v309, %v684
  %v688 = vxor.u32 %v687, 2147483648
  %v689 = vmul.f32 %v688, 1.442695
  %v690 = vpow.pop %v689
  %v691 = vadd.f32 %v690, 1.0
  %v692 = vrcp.pop %v691
  %v693 = vmul.f32 1.0, %v692
  %v694 = vtanh.pop %v687
  %v695 = vmul.f32 %v693, %v605
  %697 = vrot.lane.b32.xlu0 %v694, 64
  %v698 = vpop.permute.xlu0 %697
  %v700 = vmul.f32 %v693, %v698
  %702 = vrot.lane.b32.xlu0 %v700, 32
  %v703 = vpop.permute.xlu0 %702
  %v705 = vadd.f32 %v695, %v703
  %v706 = vtanh.pop %v705
  %708 = vrot.lane.b32.xlu0 %v706, 64
  %v709 = vpop.permute.xlu0 %708
  %v711 = vmul.f32 %v693, %v709
  %713 = vrot.lane.b32.xlu0 %v711, 32
  %v714 = vpop.permute.xlu0 %713
  %v715 = vsel %vm176, %v714, 0
  %717 = vmatprep.subr.mxu0 0.0
  %718 = vmatpush1.msra.mxu0 %v167
  %719 = vmatprep.subr.mxu0 0.0
  %720 = vmatpush1.msra.mxu0 %v168
  %721 = vmatprep.subr.mxu0 0.0
  %722 = vmatpush1.msra.mxu0 %v169
  %723 = vmatprep.subr.mxu0 0.0
  %724 = vmatpush1.msra.mxu0 %v170
  %725 = vmatprep.subr.mxu0 0.0
  %726 = vmatpush1.msra.mxu0 0.0
  %727 = vmatprep.subr.mxu0 0.0
  %728 = vmatpush1.msra.mxu0 0.0
  %729 = vmatprep.subr.mxu0 0.0
  %730 = vmatpush1.msra.mxu0 0.0
  %731 = vmatprep.subr.mxu0 0.0
  %732 = vmatpush1.msra.mxu0 0.0
  %733 = vmatprep.subr.mxu0 0.0
  %734 = vmatpush1.msra.mxu0 0.0
  %735 = vmatprep.subr.mxu0 0.0
  %736 = vmatpush1.msra.mxu0 0.0
  %737 = vmatprep.subr.mxu0 0.0
  %738 = vmatpush1.msra.mxu0 0.0
  %739 = vmatprep.subr.mxu0 0.0
  %740 = vmatpush1.msra.mxu0 0.0
  %741 = vmatprep.subr.mxu0 0.0
  %742 = vmatpush1.msra.mxu0 0.0
  %743 = vmatprep.subr.mxu0 0.0
  %744 = vmatpush1.msra.mxu0 0.0
  %745 = vmatprep.subr.mxu0 0.0
  %746 = vmatpush1.msra.mxu0 0.0
  %747 = vmatprep.subr.mxu0 0.0
  %748 = vmatpush1.msra.mxu0 0.0
  %749 = vmatprep.subr.mxu0 0.0
  %750 = vmatpush1.msra.mxu0 0.0
  %751 = vmatprep.subr.mxu0 0.0
  %752 = vmatpush1.msra.mxu0 0.0
  %753 = vmatprep.subr.mxu0 0.0
  %754 = vmatpush1.msra.mxu0 0.0
  %755 = vmatprep.subr.mxu0 0.0
  %756 = vmatpush1.msra.mxu0 0.0
  %757 = vmatprep.subr.mxu0 0.0
  %758 = vmatpush1.msra.mxu0 0.0
  %759 = vmatprep.subr.mxu0 0.0
  %760 = vmatpush1.msra.mxu0 0.0
  %761 = vmatprep.subr.mxu0 0.0
  %762 = vmatpush1.msra.mxu0 0.0
  %763 = vmatprep.subr.mxu0 0.0
  %764 = vmatpush1.msra.mxu0 0.0
  %765 = vmatprep.subr.mxu0 0.0
  %766 = vmatpush1.msra.mxu0 0.0
  %767 = vmatprep.subr.mxu0 0.0
  %768 = vmatpush1.msra.mxu0 0.0
  %769 = vmatprep.subr.mxu0 0.0
  %770 = vmatpush1.msra.mxu0 0.0
  %771 = vmatprep.subr.mxu0 0.0
  %772 = vmatpush1.msra.mxu0 0.0
  %773 = vmatprep.subr.mxu0 0.0
  %774 = vmatpush1.msra.mxu0 0.0
  %775 = vmatprep.subr.mxu0 0.0
  %776 = vmatpush1.msra.mxu0 0.0
  %777 = vmatprep.subr.mxu0 0.0
  %778 = vmatpush1.msra.mxu0 0.0
  %779 = vmatprep.subr.mxu0 0.0
  %780 = vmatpush1.msra.mxu0 0.0
  %781 = vmatprep.mubr.f32.mxu0 0.0
  %782 = vmatmul.mubr.f32.gmra.mrb[0].mxu0 %v715
  %v783 = vpop.f32.mrb[0].mxu0
  %v784 = vadd.f32 0.0, %v783
  %v785 = vpop.f32.mrb[0].mxu0
  %786 = vdwg.mxu0
  %v787 = vadd.f32 %v310, %v784
  %v788 = vxor.u32 %v787, 2147483648
  %v789 = vmul.f32 %v788, 1.442695
  %v790 = vpow.pop %v789
  %v791 = vadd.f32 %v790, 1.0
  %v792 = vrcp.pop %v791
  %v793 = vmul.f32 1.0, %v792
  %v794 = vtanh.pop %v787
  %v795 = vmul.f32 %v793, %v705
  %797 = vrot.lane.b32.xlu0 %v794, 64
  %v798 = vpop.permute.xlu0 %797
  %v800 = vmul.f32 %v793, %v798
  %802 = vrot.lane.b32.xlu0 %v800, 32
  %v803 = vpop.permute.xlu0 %802
  %v805 = vadd.f32 %v795, %v803
  %v806 = vtanh.pop %v805
  %808 = vrot.lane.b32.xlu0 %v806, 64
  %v809 = vpop.permute.xlu0 %808
  %v811 = vmul.f32 %v793, %v809
  %813 = vrot.lane.b32.xlu0 %v811, 32
  %v814 = vpop.permute.xlu0 %813
  %v815 = vsel %vm176, %v814, 0
  %817 = vmatprep.subr.mxu0 0.0
  %818 = vmatpush1.msra.mxu0 %v167
  %819 = vmatprep.subr.mxu0 0.0
  %820 = vmatpush1.msra.mxu0 %v168
  %821 = vmatprep.subr.mxu0 0.0
  %822 = vmatpush1.msra.mxu0 %v169
  %823 = vmatprep.subr.mxu0 0.0
  %824 = vmatpush1.msra.mxu0 %v170
  %825 = vmatprep.subr.mxu0 0.0
  %826 = vmatpush1.msra.mxu0 0.0
  %827 = vmatprep.subr.mxu0 0.0
  %828 = vmatpush1.msra.mxu0 0.0
  %829 = vmatprep.subr.mxu0 0.0
  %830 = vmatpush1.msra.mxu0 0.0
  %831 = vmatprep.subr.mxu0 0.0
  %832 = vmatpush1.msra.mxu0 0.0
  %833 = vmatprep.subr.mxu0 0.0
  %834 = vmatpush1.msra.mxu0 0.0
  %835 = vmatprep.subr.mxu0 0.0
  %836 = vmatpush1.msra.mxu0 0.0
  %837 = vmatprep.subr.mxu0 0.0
  %838 = vmatpush1.msra.mxu0 0.0
  %839 = vmatprep.subr.mxu0 0.0
  %840 = vmatpush1.msra.mxu0 0.0
  %841 = vmatprep.subr.mxu0 0.0
  %842 = vmatpush1.msra.mxu0 0.0
  %843 = vmatprep.subr.mxu0 0.0
  %844 = vmatpush1.msra.mxu0 0.0
  %845 = vmatprep.subr.mxu0 0.0
  %846 = vmatpush1.msra.mxu0 0.0
  %847 = vmatprep.subr.mxu0 0.0
  %848 = vmatpush1.msra.mxu0 0.0
  %849 = vmatprep.subr.mxu0 0.0
  %850 = vmatpush1.msra.mxu0 0.0
  %851 = vmatprep.subr.mxu0 0.0
  %852 = vmatpush1.msra.mxu0 0.0
  %853 = vmatprep.subr.mxu0 0.0
  %854 = vmatpush1.msra.mxu0 0.0
  %855 = vmatprep.subr.mxu0 0.0
  %856 = vmatpush1.msra.mxu0 0.0
  %857 = vmatprep.subr.mxu0 0.0
  %858 = vmatpush1.msra.mxu0 0.0
  %859 = vmatprep.subr.mxu0 0.0
  %860 = vmatpush1.msra.mxu0 0.0
  %861 = vmatprep.subr.mxu0 0.0
  %862 = vmatpush1.msra.mxu0 0.0
  %863 = vmatprep.subr.mxu0 0.0
  %864 = vmatpush1.msra.mxu0 0.0
  %865 = vmatprep.subr.mxu0 0.0
  %866 = vmatpush1.msra.mxu0 0.0
  %867 = vmatprep.subr.mxu0 0.0
  %868 = vmatpush1.msra.mxu0 0.0
  %869 = vmatprep.subr.mxu0 0.0
  %870 = vmatpush1.msra.mxu0 0.0
  %871 = vmatprep.subr.mxu0 0.0
  %872 = vmatpush1.msra.mxu0 0.0
  %873 = vmatprep.subr.mxu0 0.0
  %874 = vmatpush1.msra.mxu0 0.0
  %875 = vmatprep.subr.mxu0 0.0
  %876 = vmatpush1.msra.mxu0 0.0
  %877 = vmatprep.subr.mxu0 0.0
  %878 = vmatpush1.msra.mxu0 0.0
  %879 = vmatprep.subr.mxu0 0.0
  %880 = vmatpush1.msra.mxu0 0.0
  %881 = vmatprep.mubr.f32.mxu0 0.0
  %882 = vmatmul.mubr.f32.gmra.mrb[0].mxu0 %v815
  %v883 = vpop.f32.mrb[0].mxu0
  %v884 = vadd.f32 0.0, %v883
  %v885 = vpop.f32.mrb[0].mxu0
  %886 = vdwg.mxu0
  %v887 = vadd.f32 %v311, %v884
  %v888 = vxor.u32 %v887, 2147483648
  %v889 = vmul.f32 %v888, 1.442695
  %v890 = vpow.pop %v889
  %v891 = vadd.f32 %v890, 1.0
  %v892 = vrcp.pop %v891
  %v893 = vmul.f32 1.0, %v892
  %v894 = vtanh.pop %v887
  %v895 = vmul.f32 %v893, %v805
  %897 = vrot.lane.b32.xlu0 %v894, 64
  %v898 = vpop.permute.xlu0 %897
  %v900 = vmul.f32 %v893, %v898
  %902 = vrot.lane.b32.xlu0 %v900, 32
  %v903 = vpop.permute.xlu0 %902
  %v905 = vadd.f32 %v895, %v903
  %v906 = vtanh.pop %v905
  %908 = vrot.lane.b32.xlu0 %v906, 64
  %v909 = vpop.permute.xlu0 %908
  %v911 = vmul.f32 %v893, %v909
  %913 = vrot.lane.b32.xlu0 %v911, 32
  %v914 = vpop.permute.xlu0 %913
  %v915 = vsel %vm176, %v914, 0
  %917 = vmatprep.subr.mxu0 0.0
  %918 = vmatpush1.msra.mxu0 %v167
  %919 = vmatprep.subr.mxu0 0.0
  %920 = vmatpush1.msra.mxu0 %v168
  %921 = vmatprep.subr.mxu0 0.0
  %922 = vmatpush1.msra.mxu0 %v169
  %923 = vmatprep.subr.mxu0 0.0
  %924 = vmatpush1.msra.mxu0 %v170
  %925 = vmatprep.subr.mxu0 0.0
  %926 = vmatpush1.msra.mxu0 0.0
  %927 = vmatprep.subr.mxu0 0.0
  %928 = vmatpush1.msra.mxu0 0.0
  %929 = vmatprep.subr.mxu0 0.0
  %930 = vmatpush1.msra.mxu0 0.0
  %931 = vmatprep.subr.mxu0 0.0
  %932 = vmatpush1.msra.mxu0 0.0
  %933 = vmatprep.subr.mxu0 0.0
  %934 = vmatpush1.msra.mxu0 0.0
  %935 = vmatprep.subr.mxu0 0.0
  %936 = vmatpush1.msra.mxu0 0.0
  %937 = vmatprep.subr.mxu0 0.0
  %938 = vmatpush1.msra.mxu0 0.0
  %939 = vmatprep.subr.mxu0 0.0
  %940 = vmatpush1.msra.mxu0 0.0
  %941 = vmatprep.subr.mxu0 0.0
  %942 = vmatpush1.msra.mxu0 0.0
  %943 = vmatprep.subr.mxu0 0.0
  %944 = vmatpush1.msra.mxu0 0.0
  %945 = vmatprep.subr.mxu0 0.0
  %946 = vmatpush1.msra.mxu0 0.0
  %947 = vmatprep.subr.mxu0 0.0
  %948 = vmatpush1.msra.mxu0 0.0
  %949 = vmatprep.subr.mxu0 0.0
  %950 = vmatpush1.msra.mxu0 0.0
  %951 = vmatprep.subr.mxu0 0.0
  %952 = vmatpush1.msra.mxu0 0.0
  %953 = vmatprep.subr.mxu0 0.0
  %954 = vmatpush1.msra.mxu0 0.0
  %955 = vmatprep.subr.mxu0 0.0
  %956 = vmatpush1.msra.mxu0 0.0
  %957 = vmatprep.subr.mxu0 0.0
  %958 = vmatpush1.msra.mxu0 0.0
  %959 = vmatprep.subr.mxu0 0.0
  %960 = vmatpush1.msra.mxu0 0.0
  %961 = vmatprep.subr.mxu0 0.0
  %962 = vmatpush1.msra.mxu0 0.0
  %963 = vmatprep.subr.mxu0 0.0
  %964 = vmatpush1.msra.mxu0 0.0
  %965 = vmatprep.subr.mxu0 0.0
  %966 = vmatpush1.msra.mxu0 0.0
  %967 = vmatprep.subr.mxu0 0.0
  %968 = vmatpush1.msra.mxu0 0.0
  %969 = vmatprep.subr.mxu0 0.0
  %970 = vmatpush1.msra.mxu0 0.0
  %971 = vmatprep.subr.mxu0 0.0
  %972 = vmatpush1.msra.mxu0 0.0
  %973 = vmatprep.subr.mxu0 0.0
  %974 = vmatpush1.msra.mxu0 0.0
  %975 = vmatprep.subr.mxu0 0.0
  %976 = vmatpush1.msra.mxu0 0.0
  %977 = vmatprep.subr.mxu0 0.0
  %978 = vmatpush1.msra.mxu0 0.0
  %979 = vmatprep.subr.mxu0 0.0
  %980 = vmatpush1.msra.mxu0 0.0
  %981 = vmatprep.mubr.f32.mxu0 0.0
  %982 = vmatmul.mubr.f32.gmra.mrb[0].mxu0 %v915
  %v983 = vpop.f32.mrb[0].mxu0
  %v984 = vadd.f32 0.0, %v983
  %v985 = vpop.f32.mrb[0].mxu0
  %986 = vdwg.mxu0
  %v987 = vadd.f32 %v312, %v984
  %v988 = vxor.u32 %v987, 2147483648
  %v989 = vmul.f32 %v988, 1.442695
  %v990 = vpow.pop %v989
  %v991 = vadd.f32 %v990, 1.0
  %v992 = vrcp.pop %v991
  %v993 = vmul.f32 1.0, %v992
  %v994 = vtanh.pop %v987
  %v995 = vmul.f32 %v993, %v905
  %997 = vrot.lane.b32.xlu0 %v994, 64
  %v998 = vpop.permute.xlu0 %997
  %v1000 = vmul.f32 %v993, %v998
  %1002 = vrot.lane.b32.xlu0 %v1000, 32
  %v1003 = vpop.permute.xlu0 %1002
  %v1005 = vadd.f32 %v995, %v1003
  %v1006 = vtanh.pop %v1005
  %1008 = vrot.lane.b32.xlu0 %v1006, 64
  %v1009 = vpop.permute.xlu0 %1008
  %v1011 = vmul.f32 %v993, %v1009
  %1013 = vrot.lane.b32.xlu0 %v1011, 32
  %v1014 = vpop.permute.xlu0 %1013
  %v1015 = vsel %vm176, %v1014, 0
  %1017 = vmatprep.subr.mxu0 0.0
  %1018 = vmatpush1.msra.mxu0 %v167
  %1019 = vmatprep.subr.mxu0 0.0
  %1020 = vmatpush1.msra.mxu0 %v168
  %1021 = vmatprep.subr.mxu0 0.0
  %1022 = vmatpush1.msra.mxu0 %v169
  %1023 = vmatprep.subr.mxu0 0.0
  %1024 = vmatpush1.msra.mxu0 %v170
  %1025 = vmatprep.subr.mxu0 0.0
  %1026 = vmatpush1.msra.mxu0 0.0
  %1027 = vmatprep.subr.mxu0 0.0
  %1028 = vmatpush1.msra.mxu0 0.0
  %1029 = vmatprep.subr.mxu0 0.0
  %1030 = vmatpush1.msra.mxu0 0.0
  %1031 = vmatprep.subr.mxu0 0.0
  %1032 = vmatpush1.msra.mxu0 0.0
  %1033 = vmatprep.subr.mxu0 0.0
  %1034 = vmatpush1.msra.mxu0 0.0
  %1035 = vmatprep.subr.mxu0 0.0
  %1036 = vmatpush1.msra.mxu0 0.0
  %1037 = vmatprep.subr.mxu0 0.0
  %1038 = vmatpush1.msra.mxu0 0.0
  %1039 = vmatprep.subr.mxu0 0.0
  %1040 = vmatpush1.msra.mxu0 0.0
  %1041 = vmatprep.subr.mxu0 0.0
  %1042 = vmatpush1.msra.mxu0 0.0
  %1043 = vmatprep.subr.mxu0 0.0
  %1044 = vmatpush1.msra.mxu0 0.0
  %1045 = vmatprep.subr.mxu0 0.0
  %1046 = vmatpush1.msra.mxu0 0.0
  %1047 = vmatprep.subr.mxu0 0.0
  %1048 = vmatpush1.msra.mxu0 0.0
  %1049 = vmatprep.subr.mxu0 0.0
  %1050 = vmatpush1.msra.mxu0 0.0
  %1051 = vmatprep.subr.mxu0 0.0
  %1052 = vmatpush1.msra.mxu0 0.0
  %1053 = vmatprep.subr.mxu0 0.0
  %1054 = vmatpush1.msra.mxu0 0.0
  %1055 = vmatprep.subr.mxu0 0.0
  %1056 = vmatpush1.msra.mxu0 0.0
  %1057 = vmatprep.subr.mxu0 0.0
  %1058 = vmatpush1.msra.mxu0 0.0
  %1059 = vmatprep.subr.mxu0 0.0
  %1060 = vmatpush1.msra.mxu0 0.0
  %1061 = vmatprep.subr.mxu0 0.0
  %1062 = vmatpush1.msra.mxu0 0.0
  %1063 = vmatprep.subr.mxu0 0.0
  %1064 = vmatpush1.msra.mxu0 0.0
  %1065 = vmatprep.subr.mxu0 0.0
  %1066 = vmatpush1.msra.mxu0 0.0
  %1067 = vmatprep.subr.mxu0 0.0
  %1068 = vmatpush1.msra.mxu0 0.0
  %1069 = vmatprep.subr.mxu0 0.0
  %1070 = vmatpush1.msra.mxu0 0.0
  %1071 = vmatprep.subr.mxu0 0.0
  %1072 = vmatpush1.msra.mxu0 0.0
  %1073 = vmatprep.subr.mxu0 0.0
  %1074 = vmatpush1.msra.mxu0 0.0
  %1075 = vmatprep.subr.mxu0 0.0
  %1076 = vmatpush1.msra.mxu0 0.0
  %1077 = vmatprep.subr.mxu0 0.0
  %1078 = vmatpush1.msra.mxu0 0.0
  %1079 = vmatprep.subr.mxu0 0.0
  %1080 = vmatpush1.msra.mxu0 0.0
  %1081 = vmatprep.mubr.f32.mxu0 0.0
  %1082 = vmatmul.mubr.f32.gmra.mrb[0].mxu0 %v1015
  %v1083 = vpop.f32.mrb[0].mxu0
  %v1084 = vadd.f32 0.0, %v1083
  %v1085 = vpop.f32.mrb[0].mxu0
  %1086 = vdwg.mxu0
  %v1087 = vadd.f32 %v313, %v1084
  %v1088 = vxor.u32 %v1087, 2147483648
  %v1089 = vmul.f32 %v1088, 1.442695
  %v1090 = vpow.pop %v1089
  %v1091 = vadd.f32 %v1090, 1.0
  %v1092 = vrcp.pop %v1091
  %v1093 = vmul.f32 1.0, %v1092
  %v1094 = vtanh.pop %v1087
  %v1095 = vmul.f32 %v1093, %v1005
  %1097 = vrot.lane.b32.xlu0 %v1094, 64
  %v1098 = vpop.permute.xlu0 %1097
  %v1100 = vmul.f32 %v1093, %v1098
  %1102 = vrot.lane.b32.xlu0 %v1100, 32
  %v1103 = vpop.permute.xlu0 %1102
  %v1105 = vadd.f32 %v1095, %v1103
  %v1106 = vtanh.pop %v1105
  %1108 = vrot.lane.b32.xlu0 %v1106, 64
  %v1109 = vpop.permute.xlu0 %1108
  %v1111 = vmul.f32 %v1093, %v1109
  %1114 = vrot.lane.b32.xlu0 %v1111, 32
  %v1115 = vpop.permute.xlu0 %1114
  %v1117 = vsel %vm29, %v414, %v1115
  %v1120 = vsel %vm29, %v514, %v1014
  %v1123 = vsel %vm29, %v614, %v914
  %v1126 = vsel %vm29, %v714, %v814
  %v1127 = vsel %vm29, %v814, %v714
  %v1128 = vsel %vm29, %v914, %v614
  %v1129 = vsel %vm29, %v1014, %v514
  %v1130 = vsel %vm29, %v1115, %v414
  %v1131 = vld [vmem:[%s1 + $0x40] sm:$0xff]
  %v1132 = vld [vmem:[%s1 + $0x48] sm:$0xff]
  %v1133 = vld [vmem:[%s1 + $0x50] sm:$0xff]
  %v1134 = vld [vmem:[%s1 + $0x58] sm:$0xff]
  %v1135 = vld [vmem:[%s1 + $0x60] sm:$0xff]
  %v1136 = vld [vmem:[%s1 + $0x68] sm:$0xff]
  %v1137 = vld [vmem:[%s1 + $0x70] sm:$0xff]
  %v1138 = vld [vmem:[%s1 + $0x78] sm:$0xff]
  %v1139 = vld [vmem:[%s2 + $0x1] sm:$0x1]
  %v1140 = vlaneseq
  %v1141 = vshrl.u32 %v1140, 7
  %v1142 = vsub.s32 0, %v1141
  %v1143 = vrot.slane %v1139, %v1142
  %v1145 = vsel %vm176, %v1117, 0
  %v1148 = vsel %vm176, %v1120, 0
  %v1151 = vsel %vm176, %v1123, 0
  %v1154 = vsel %vm176, %v1126, 0
  %v1157 = vsel %vm176, %v1127, 0
  %v1160 = vsel %vm176, %v1128, 0
  %v1163 = vsel %vm176, %v1129, 0
  %v1166 = vsel %vm176, %v1130, 0
  %1168 = vmatprep.subr.mxu0 0.0
  %1169 = vmatpush1.msra.mxu0 %v1131
  %1170 = vmatprep.subr.mxu0 0.0
  %1171 = vmatpush1.msra.mxu0 %v1132
  %1172 = vmatprep.subr.mxu0 0.0
  %1173 = vmatpush1.msra.mxu0 %v1133
  %1174 = vmatprep.subr.mxu0 0.0
  %1175 = vmatpush1.msra.mxu0 %v1134
  %1176 = vmatprep.subr.mxu0 0.0
  %1177 = vmatpush1.msra.mxu0 0.0
  %1178 = vmatprep.subr.mxu0 0.0
  %1179 = vmatpush1.msra.mxu0 0.0
  %1180 = vmatprep.subr.mxu0 0.0
  %1181 = vmatpush1.msra.mxu0 0.0
  %1182 = vmatprep.subr.mxu0 0.0
  %1183 = vmatpush1.msra.mxu0 0.0
  %1184 = vmatprep.subr.mxu0 0.0
  %1185 = vmatpush1.msra.mxu0 0.0
  %1186 = vmatprep.subr.mxu0 0.0
  %1187 = vmatpush1.msra.mxu0 0.0
  %1188 = vmatprep.subr.mxu0 0.0
  %1189 = vmatpush1.msra.mxu0 0.0
  %1190 = vmatprep.subr.mxu0 0.0
  %1191 = vmatpush1.msra.mxu0 0.0
  %1192 = vmatprep.subr.mxu0 0.0
  %1193 = vmatpush1.msra.mxu0 0.0
  %1194 = vmatprep.subr.mxu0 0.0
  %1195 = vmatpush1.msra.mxu0 0.0
  %1196 = vmatprep.subr.mxu0 0.0
  %1197 = vmatpush1.msra.mxu0 0.0
  %1198 = vmatprep.subr.mxu0 0.0
  %1199 = vmatpush1.msra.mxu0 0.0
  %1200 = vmatprep.subr.mxu0 0.0
  %1201 = vmatpush1.msra.mxu0 0.0
  %1202 = vmatprep.subr.mxu0 0.0
  %1203 = vmatpush1.msra.mxu0 0.0
  %1204 = vmatprep.subr.mxu0 0.0
  %1205 = vmatpush1.msra.mxu0 0.0
  %1206 = vmatprep.subr.mxu0 0.0
  %1207 = vmatpush1.msra.mxu0 0.0
  %1208 = vmatprep.subr.mxu0 0.0
  %1209 = vmatpush1.msra.mxu0 0.0
  %1210 = vmatprep.subr.mxu0 0.0
  %1211 = vmatpush1.msra.mxu0 0.0
  %1212 = vmatprep.subr.mxu0 0.0
  %1213 = vmatpush1.msra.mxu0 0.0
  %1214 = vmatprep.subr.mxu0 0.0
  %1215 = vmatpush1.msra.mxu0 0.0
  %1216 = vmatprep.subr.mxu0 0.0
  %1217 = vmatpush1.msra.mxu0 0.0
  %1218 = vmatprep.subr.mxu0 0.0
  %1219 = vmatpush1.msra.mxu0 0.0
  %1220 = vmatprep.subr.mxu0 0.0
  %1221 = vmatpush1.msra.mxu0 0.0
  %1222 = vmatprep.subr.mxu0 0.0
  %1223 = vmatpush1.msra.mxu0 0.0
  %1224 = vmatprep.subr.mxu0 0.0
  %1225 = vmatpush1.msra.mxu0 0.0
  %1226 = vmatprep.subr.mxu0 0.0
  %1227 = vmatpush1.msra.mxu0 0.0
  %1228 = vmatprep.subr.mxu0 0.0
  %1229 = vmatpush1.msra.mxu0 0.0
  %1230 = vmatprep.subr.mxu0 0.0
  %1231 = vmatpush1.msra.mxu0 0.0
  %1232 = vmatprep.mubr.f32.mxu0 0.0
  %1233 = vmatmul.mubr.f32.gmra.mrb[0].mxu0 %v1145
  %v1234 = vpop.f32.mrb[0].mxu0
  %v1235 = vadd.f32 %v1143, %v1234
  %v1236 = vpop.f32.mrb[0].mxu0
  %1237 = vmatprep.mubr.f32.mxu0 0.0
  %1238 = vmatmul.mubr.f32.gmra.mrb[0].mxu0 %v1148
  %v1239 = vpop.f32.mrb[0].mxu0
  %v1240 = vadd.f32 %v1143, %v1239
  %v1241 = vpop.f32.mrb[0].mxu0
  %1242 = vmatprep.mubr.f32.mxu0 0.0
  %1243 = vmatmul.mubr.f32.gmra.mrb[0].mxu0 %v1151
  %v1244 = vpop.f32.mrb[0].mxu0
  %v1245 = vadd.f32 %v1143, %v1244
  %v1246 = vpop.f32.mrb[0].mxu0
  %1247 = vmatprep.mubr.f32.mxu0 0.0
  %1248 = vmatmul.mubr.f32.gmra.mrb[0].mxu0 %v1154
  %v1249 = vpop.f32.mrb[0].mxu0
  %v1250 = vadd.f32 %v1143, %v1249
  %v1251 = vpop.f32.mrb[0].mxu0
  %1252 = vmatprep.mubr.f32.mxu0 0.0
  %1253 = vmatmul.mubr.f32.gmra.mrb[0].mxu0 %v1157
  %v1254 = vpop.f32.mrb[0].mxu0
  %v1255 = vadd.f32 %v1143, %v1254
  %v1256 = vpop.f32.mrb[0].mxu0
  %1257 = vmatprep.mubr.f32.mxu0 0.0
  %1258 = vmatmul.mubr.f32.gmra.mrb[0].mxu0 %v1160
  %v1259 = vpop.f32.mrb[0].mxu0
  %v1260 = vadd.f32 %v1143, %v1259
  %v1261 = vpop.f32.mrb[0].mxu0
  %1262 = vmatprep.mubr.f32.mxu0 0.0
  %1263 = vmatmul.mubr.f32.gmra.mrb[0].mxu0 %v1163
  %v1264 = vpop.f32.mrb[0].mxu0
  %v1265 = vadd.f32 %v1143, %v1264
  %v1266 = vpop.f32.mrb[0].mxu0
  %1267 = vmatprep.mubr.f32.mxu0 0.0
  %1268 = vmatmul.mubr.f32.gmra.mrb[0].mxu0 %v1166
  %v1269 = vpop.f32.mrb[0].mxu0
  %v1270 = vadd.f32 %v1143, %v1269
  %v1271 = vpop.f32.mrb[0].mxu0
  %1272 = vdwg.mxu0
  %v1273 = vsel %vm28, %v1235, %v1270
  %v1274 = vsel %vm28, %v1240, %v1265
  %v1275 = vsel %vm28, %v1245, %v1260
  %v1276 = vsel %vm28, %v1250, %v1255
  %v1277 = vsel %vm28, %v1255, %v1250
  %v1278 = vsel %vm28, %v1260, %v1245
  %v1279 = vsel %vm28, %v1265, %v1240
  %v1280 = vsel %vm28, %v1270, %v1235
  %1281 = vmatprep.subr.mxu0 0.0
  %1282 = vmatpush1.msra.mxu0 %v1135
  %1283 = vmatprep.subr.mxu0 0.0
  %1284 = vmatpush1.msra.mxu0 %v1136
  %1285 = vmatprep.subr.mxu0 0.0
  %1286 = vmatpush1.msra.mxu0 %v1137
  %1287 = vmatprep.subr.mxu0 0.0
  %1288 = vmatpush1.msra.mxu0 %v1138
  %1289 = vmatprep.subr.mxu0 0.0
  %1290 = vmatpush1.msra.mxu0 0.0
  %1291 = vmatprep.subr.mxu0 0.0
  %1292 = vmatpush1.msra.mxu0 0.0
  %1293 = vmatprep.subr.mxu0 0.0
  %1294 = vmatpush1.msra.mxu0 0.0
  %1295 = vmatprep.subr.mxu0 0.0
  %1296 = vmatpush1.msra.mxu0 0.0
  %1297 = vmatprep.subr.mxu0 0.0
  %1298 = vmatpush1.msra.mxu0 0.0
  %1299 = vmatprep.subr.mxu0 0.0
  %1300 = vmatpush1.msra.mxu0 0.0
  %1301 = vmatprep.subr.mxu0 0.0
  %1302 = vmatpush1.msra.mxu0 0.0
  %1303 = vmatprep.subr.mxu0 0.0
  %1304 = vmatpush1.msra.mxu0 0.0
  %1305 = vmatprep.subr.mxu0 0.0
  %1306 = vmatpush1.msra.mxu0 0.0
  %1307 = vmatprep.subr.mxu0 0.0
  %1308 = vmatpush1.msra.mxu0 0.0
  %1309 = vmatprep.subr.mxu0 0.0
  %1310 = vmatpush1.msra.mxu0 0.0
  %1311 = vmatprep.subr.mxu0 0.0
  %1312 = vmatpush1.msra.mxu0 0.0
  %1313 = vmatprep.subr.mxu0 0.0
  %1314 = vmatpush1.msra.mxu0 0.0
  %1315 = vmatprep.subr.mxu0 0.0
  %1316 = vmatpush1.msra.mxu0 0.0
  %1317 = vmatprep.subr.mxu0 0.0
  %1318 = vmatpush1.msra.mxu0 0.0
  %1319 = vmatprep.subr.mxu0 0.0
  %1320 = vmatpush1.msra.mxu0 0.0
  %1321 = vmatprep.subr.mxu0 0.0
  %1322 = vmatpush1.msra.mxu0 0.0
  %1323 = vmatprep.subr.mxu0 0.0
  %1324 = vmatpush1.msra.mxu0 0.0
  %1325 = vmatprep.subr.mxu0 0.0
  %1326 = vmatpush1.msra.mxu0 0.0
  %1327 = vmatprep.subr.mxu0 0.0
  %1328 = vmatpush1.msra.mxu0 0.0
  %1329 = vmatprep.subr.mxu0 0.0
  %1330 = vmatpush1.msra.mxu0 0.0
  %1331 = vmatprep.subr.mxu0 0.0
  %1332 = vmatpush1.msra.mxu0 0.0
  %1333 = vmatprep.subr.mxu0 0.0
  %1334 = vmatpush1.msra.mxu0 0.0
  %1335 = vmatprep.subr.mxu0 0.0
  %1336 = vmatpush1.msra.mxu0 0.0
  %1337 = vmatprep.subr.mxu0 0.0
  %1338 = vmatpush1.msra.mxu0 0.0
  %1339 = vmatprep.subr.mxu0 0.0
  %1340 = vmatpush1.msra.mxu0 0.0
  %1341 = vmatprep.subr.mxu0 0.0
  %1342 = vmatpush1.msra.mxu0 0.0
  %1343 = vmatprep.subr.mxu0 0.0
  %1344 = vmatpush1.msra.mxu0 0.0
  %1345 = vmatprep.mubr.f32.mxu0 0.0
  %1346 = vmatmul.mubr.f32.gmra.mrb[0].mxu0 %v315
  %v1347 = vpop.f32.mrb[0].mxu0
  %v1348 = vadd.f32 0.0, %v1347
  %v1349 = vpop.f32.mrb[0].mxu0
  %1350 = vdwg.mxu0
  %v1351 = vadd.f32 %v1273, %v1348
  %v1352 = vxor.u32 %v1351, 2147483648
  %v1353 = vmul.f32 %v1352, 1.442695
  %v1354 = vpow.pop %v1353
  %v1355 = vadd.f32 %v1354, 1.0
  %v1356 = vrcp.pop %v1355
  %v1357 = vmul.f32 1.0, %v1356
  %v1358 = vtanh.pop %v1351
  %v1359 = vmul.f32 %v1357, 0.0
  %1361 = vrot.lane.b32.xlu0 %v1358, 64
  %v1362 = vpop.permute.xlu0 %1361
  %v1364 = vmul.f32 %v1357, %v1362
  %1366 = vrot.lane.b32.xlu0 %v1364, 32
  %v1367 = vpop.permute.xlu0 %1366
  %v1369 = vadd.f32 %v1359, %v1367
  %v1370 = vtanh.pop %v1369
  %1372 = vrot.lane.b32.xlu0 %v1370, 64
  %v1373 = vpop.permute.xlu0 %1372
  %v1375 = vmul.f32 %v1357, %v1373
  %1377 = vrot.lane.b32.xlu0 %v1375, 32
  %v1378 = vpop.permute.xlu0 %1377
  %v1379 = vsel %vm176, %v1378, 0
  %1381 = vmatprep.subr.mxu0 0.0
  %1382 = vmatpush1.msra.mxu0 %v1135
  %1383 = vmatprep.subr.mxu0 0.0
  %1384 = vmatpush1.msra.mxu0 %v1136
  %1385 = vmatprep.subr.mxu0 0.0
  %1386 = vmatpush1.msra.mxu0 %v1137
  %1387 = vmatprep.subr.mxu0 0.0
  %1388 = vmatpush1.msra.mxu0 %v1138
  %1389 = vmatprep.subr.mxu0 0.0
  %1390 = vmatpush1.msra.mxu0 0.0
  %1391 = vmatprep.subr.mxu0 0.0
  %1392 = vmatpush1.msra.mxu0 0.0
  %1393 = vmatprep.subr.mxu0 0.0
  %1394 = vmatpush1.msra.mxu0 0.0
  %1395 = vmatprep.subr.mxu0 0.0
  %1396 = vmatpush1.msra.mxu0 0.0
  %1397 = vmatprep.subr.mxu0 0.0
  %1398 = vmatpush1.msra.mxu0 0.0
  %1399 = vmatprep.subr.mxu0 0.0
  %1400 = vmatpush1.msra.mxu0 0.0
  %1401 = vmatprep.subr.mxu0 0.0
  %1402 = vmatpush1.msra.mxu0 0.0
  %1403 = vmatprep.subr.mxu0 0.0
  %1404 = vmatpush1.msra.mxu0 0.0
  %1405 = vmatprep.subr.mxu0 0.0
  %1406 = vmatpush1.msra.mxu0 0.0
  %1407 = vmatprep.subr.mxu0 0.0
  %1408 = vmatpush1.msra.mxu0 0.0
  %1409 = vmatprep.subr.mxu0 0.0
  %1410 = vmatpush1.msra.mxu0 0.0
  %1411 = vmatprep.subr.mxu0 0.0
  %1412 = vmatpush1.msra.mxu0 0.0
  %1413 = vmatprep.subr.mxu0 0.0
  %1414 = vmatpush1.msra.mxu0 0.0
  %1415 = vmatprep.subr.mxu0 0.0
  %1416 = vmatpush1.msra.mxu0 0.0
  %1417 = vmatprep.subr.mxu0 0.0
  %1418 = vmatpush1.msra.mxu0 0.0
  %1419 = vmatprep.subr.mxu0 0.0
  %1420 = vmatpush1.msra.mxu0 0.0
  %1421 = vmatprep.subr.mxu0 0.0
  %1422 = vmatpush1.msra.mxu0 0.0
  %1423 = vmatprep.subr.mxu0 0.0
  %1424 = vmatpush1.msra.mxu0 0.0
  %1425 = vmatprep.subr.mxu0 0.0
  %1426 = vmatpush1.msra.mxu0 0.0
  %1427 = vmatprep.subr.mxu0 0.0
  %1428 = vmatpush1.msra.mxu0 0.0
  %1429 = vmatprep.subr.mxu0 0.0
  %1430 = vmatpush1.msra.mxu0 0.0
  %1431 = vmatprep.subr.mxu0 0.0
  %1432 = vmatpush1.msra.mxu0 0.0
  %1433 = vmatprep.subr.mxu0 0.0
  %1434 = vmatpush1.msra.mxu0 0.0
  %1435 = vmatprep.subr.mxu0 0.0
  %1436 = vmatpush1.msra.mxu0 0.0
  %1437 = vmatprep.subr.mxu0 0.0
  %1438 = vmatpush1.msra.mxu0 0.0
  %1439 = vmatprep.subr.mxu0 0.0
  %1440 = vmatpush1.msra.mxu0 0.0
  %1441 = vmatprep.subr.mxu0 0.0
  %1442 = vmatpush1.msra.mxu0 0.0
  %1443 = vmatprep.subr.mxu0 0.0
  %1444 = vmatpush1.msra.mxu0 0.0
  %1445 = vmatprep.mubr.f32.mxu0 0.0
  %1446 = vmatmul.mubr.f32.gmra.mrb[0].mxu0 %v1379
  %v1447 = vpop.f32.mrb[0].mxu0
  %v1448 = vadd.f32 0.0, %v1447
  %v1449 = vpop.f32.mrb[0].mxu0
  %1450 = vdwg.mxu0
  %v1451 = vadd.f32 %v1274, %v1448
  %v1452 = vxor.u32 %v1451, 2147483648
  %v1453 = vmul.f32 %v1452, 1.442695
  %v1454 = vpow.pop %v1453
  %v1455 = vadd.f32 %v1454, 1.0
  %v1456 = vrcp.pop %v1455
  %v1457 = vmul.f32 1.0, %v1456
  %v1458 = vtanh.pop %v1451
  %v1459 = vmul.f32 %v1457, %v1369
  %1461 = vrot.lane.b32.xlu0 %v1458, 64
  %v1462 = vpop.permute.xlu0 %1461
  %v1464 = vmul.f32 %v1457, %v1462
  %1466 = vrot.lane.b32.xlu0 %v1464, 32
  %v1467 = vpop.permute.xlu0 %1466
  %v1469 = vadd.f32 %v1459, %v1467
  %v1470 = vtanh.pop %v1469
  %1472 = vrot.lane.b32.xlu0 %v1470, 64
  %v1473 = vpop.permute.xlu0 %1472
  %v1475 = vmul.f32 %v1457, %v1473
  %1477 = vrot.lane.b32.xlu0 %v1475, 32
  %v1478 = vpop.permute.xlu0 %1477
  %v1479 = vsel %vm176, %v1478, 0
  %1481 = vmatprep.subr.mxu0 0.0
  %1482 = vmatpush1.msra.mxu0 %v1135
  %1483 = vmatprep.subr.mxu0 0.0
  %1484 = vmatpush1.msra.mxu0 %v1136
  %1485 = vmatprep.subr.mxu0 0.0
  %1486 = vmatpush1.msra.mxu0 %v1137
  %1487 = vmatprep.subr.mxu0 0.0
  %1488 = vmatpush1.msra.mxu0 %v1138
  %1489 = vmatprep.subr.mxu0 0.0
  %1490 = vmatpush1.msra.mxu0 0.0
  %1491 = vmatprep.subr.mxu0 0.0
  %1492 = vmatpush1.msra.mxu0 0.0
  %1493 = vmatprep.subr.mxu0 0.0
  %1494 = vmatpush1.msra.mxu0 0.0
  %1495 = vmatprep.subr.mxu0 0.0
  %1496 = vmatpush1.msra.mxu0 0.0
  %1497 = vmatprep.subr.mxu0 0.0
  %1498 = vmatpush1.msra.mxu0 0.0
  %1499 = vmatprep.subr.mxu0 0.0
  %1500 = vmatpush1.msra.mxu0 0.0
  %1501 = vmatprep.subr.mxu0 0.0
  %1502 = vmatpush1.msra.mxu0 0.0
  %1503 = vmatprep.subr.mxu0 0.0
  %1504 = vmatpush1.msra.mxu0 0.0
  %1505 = vmatprep.subr.mxu0 0.0
  %1506 = vmatpush1.msra.mxu0 0.0
  %1507 = vmatprep.subr.mxu0 0.0
  %1508 = vmatpush1.msra.mxu0 0.0
  %1509 = vmatprep.subr.mxu0 0.0
  %1510 = vmatpush1.msra.mxu0 0.0
  %1511 = vmatprep.subr.mxu0 0.0
  %1512 = vmatpush1.msra.mxu0 0.0
  %1513 = vmatprep.subr.mxu0 0.0
  %1514 = vmatpush1.msra.mxu0 0.0
  %1515 = vmatprep.subr.mxu0 0.0
  %1516 = vmatpush1.msra.mxu0 0.0
  %1517 = vmatprep.subr.mxu0 0.0
  %1518 = vmatpush1.msra.mxu0 0.0
  %1519 = vmatprep.subr.mxu0 0.0
  %1520 = vmatpush1.msra.mxu0 0.0
  %1521 = vmatprep.subr.mxu0 0.0
  %1522 = vmatpush1.msra.mxu0 0.0
  %1523 = vmatprep.subr.mxu0 0.0
  %1524 = vmatpush1.msra.mxu0 0.0
  %1525 = vmatprep.subr.mxu0 0.0
  %1526 = vmatpush1.msra.mxu0 0.0
  %1527 = vmatprep.subr.mxu0 0.0
  %1528 = vmatpush1.msra.mxu0 0.0
  %1529 = vmatprep.subr.mxu0 0.0
  %1530 = vmatpush1.msra.mxu0 0.0
  %1531 = vmatprep.subr.mxu0 0.0
  %1532 = vmatpush1.msra.mxu0 0.0
  %1533 = vmatprep.subr.mxu0 0.0
  %1534 = vmatpush1.msra.mxu0 0.0
  %1535 = vmatprep.subr.mxu0 0.0
  %1536 = vmatpush1.msra.mxu0 0.0
  %1537 = vmatprep.subr.mxu0 0.0
  %1538 = vmatpush1.msra.mxu0 0.0
  %1539 = vmatprep.subr.mxu0 0.0
  %1540 = vmatpush1.msra.mxu0 0.0
  %1541 = vmatprep.subr.mxu0 0.0
  %1542 = vmatpush1.msra.mxu0 0.0
  %1543 = vmatprep.subr.mxu0 0.0
  %1544 = vmatpush1.msra.mxu0 0.0
  %1545 = vmatprep.mubr.f32.mxu0 0.0
  %1546 = vmatmul.mubr.f32.gmra.mrb[0].mxu0 %v1479
  %v1547 = vpop.f32.mrb[0].mxu0
  %v1548 = vadd.f32 0.0, %v1547
  %v1549 = vpop.f32.mrb[0].mxu0
  %1550 = vdwg.mxu0
  %v1551 = vadd.f32 %v1275, %v1548
  %v1552 = vxor.u32 %v1551, 2147483648
  %v1553 = vmul.f32 %v1552, 1.442695
  %v1554 = vpow.pop %v1553
  %v1555 = vadd.f32 %v1554, 1.0
  %v1556 = vrcp.pop %v1555
  %v1557 = vmul.f32 1.0, %v1556
  %v1558 = vtanh.pop %v1551
  %v1559 = vmul.f32 %v1557, %v1469
  %1561 = vrot.lane.b32.xlu0 %v1558, 64
  %v1562 = vpop.permute.xlu0 %1561
  %v1564 = vmul.f32 %v1557, %v1562
  %1566 = vrot.lane.b32.xlu0 %v1564, 32
  %v1567 = vpop.permute.xlu0 %1566
  %v1569 = vadd.f32 %v1559, %v1567
  %v1570 = vtanh.pop %v1569
  %1572 = vrot.lane.b32.xlu0 %v1570, 64
  %v1573 = vpop.permute.xlu0 %1572
  %v1575 = vmul.f32 %v1557, %v1573
  %1577 = vrot.lane.b32.xlu0 %v1575, 32
  %v1578 = vpop.permute.xlu0 %1577
  %v1579 = vsel %vm176, %v1578, 0
  %1581 = vmatprep.subr.mxu0 0.0
  %1582 = vmatpush1.msra.mxu0 %v1135
  %1583 = vmatprep.subr.mxu0 0.0
  %1584 = vmatpush1.msra.mxu0 %v1136
  %1585 = vmatprep.subr.mxu0 0.0
  %1586 = vmatpush1.msra.mxu0 %v1137
  %1587 = vmatprep.subr.mxu0 0.0
  %1588 = vmatpush1.msra.mxu0 %v1138
  %1589 = vmatprep.subr.mxu0 0.0
  %1590 = vmatpush1.msra.mxu0 0.0
  %1591 = vmatprep.subr.mxu0 0.0
  %1592 = vmatpush1.msra.mxu0 0.0
  %1593 = vmatprep.subr.mxu0 0.0
  %1594 = vmatpush1.msra.mxu0 0.0
  %1595 = vmatprep.subr.mxu0 0.0
  %1596 = vmatpush1.msra.mxu0 0.0
  %1597 = vmatprep.subr.mxu0 0.0
  %1598 = vmatpush1.msra.mxu0 0.0
  %1599 = vmatprep.subr.mxu0 0.0
  %1600 = vmatpush1.msra.mxu0 0.0
  %1601 = vmatprep.subr.mxu0 0.0
  %1602 = vmatpush1.msra.mxu0 0.0
  %1603 = vmatprep.subr.mxu0 0.0
  %1604 = vmatpush1.msra.mxu0 0.0
  %1605 = vmatprep.subr.mxu0 0.0
  %1606 = vmatpush1.msra.mxu0 0.0
  %1607 = vmatprep.subr.mxu0 0.0
  %1608 = vmatpush1.msra.mxu0 0.0
  %1609 = vmatprep.subr.mxu0 0.0
  %1610 = vmatpush1.msra.mxu0 0.0
  %1611 = vmatprep.subr.mxu0 0.0
  %1612 = vmatpush1.msra.mxu0 0.0
  %1613 = vmatprep.subr.mxu0 0.0
  %1614 = vmatpush1.msra.mxu0 0.0
  %1615 = vmatprep.subr.mxu0 0.0
  %1616 = vmatpush1.msra.mxu0 0.0
  %1617 = vmatprep.subr.mxu0 0.0
  %1618 = vmatpush1.msra.mxu0 0.0
  %1619 = vmatprep.subr.mxu0 0.0
  %1620 = vmatpush1.msra.mxu0 0.0
  %1621 = vmatprep.subr.mxu0 0.0
  %1622 = vmatpush1.msra.mxu0 0.0
  %1623 = vmatprep.subr.mxu0 0.0
  %1624 = vmatpush1.msra.mxu0 0.0
  %1625 = vmatprep.subr.mxu0 0.0
  %1626 = vmatpush1.msra.mxu0 0.0
  %1627 = vmatprep.subr.mxu0 0.0
  %1628 = vmatpush1.msra.mxu0 0.0
  %1629 = vmatprep.subr.mxu0 0.0
  %1630 = vmatpush1.msra.mxu0 0.0
  %1631 = vmatprep.subr.mxu0 0.0
  %1632 = vmatpush1.msra.mxu0 0.0
  %1633 = vmatprep.subr.mxu0 0.0
  %1634 = vmatpush1.msra.mxu0 0.0
  %1635 = vmatprep.subr.mxu0 0.0
  %1636 = vmatpush1.msra.mxu0 0.0
  %1637 = vmatprep.subr.mxu0 0.0
  %1638 = vmatpush1.msra.mxu0 0.0
  %1639 = vmatprep.subr.mxu0 0.0
  %1640 = vmatpush1.msra.mxu0 0.0
  %1641 = vmatprep.subr.mxu0 0.0
  %1642 = vmatpush1.msra.mxu0 0.0
  %1643 = vmatprep.subr.mxu0 0.0
  %1644 = vmatpush1.msra.mxu0 0.0
  %1645 = vmatprep.mubr.f32.mxu0 0.0
  %1646 = vmatmul.mubr.f32.gmra.mrb[0].mxu0 %v1579
  %v1647 = vpop.f32.mrb[0].mxu0
  %v1648 = vadd.f32 0.0, %v1647
  %v1649 = vpop.f32.mrb[0].mxu0
  %1650 = vdwg.mxu0
  %v1651 = vadd.f32 %v1276, %v1648
  %v1652 = vxor.u32 %v1651, 2147483648
  %v1653 = vmul.f32 %v1652, 1.442695
  %v1654 = vpow.pop %v1653
  %v1655 = vadd.f32 %v1654, 1.0
  %v1656 = vrcp.pop %v1655
  %v1657 = vmul.f32 1.0, %v1656
  %v1658 = vtanh.pop %v1651
  %v1659 = vmul.f32 %v1657, %v1569
  %1661 = vrot.lane.b32.xlu0 %v1658, 64
  %v1662 = vpop.permute.xlu0 %1661
  %v1664 = vmul.f32 %v1657, %v1662
  %1666 = vrot.lane.b32.xlu0 %v1664, 32
  %v1667 = vpop.permute.xlu0 %1666
  %v1669 = vadd.f32 %v1659, %v1667
  %v1670 = vtanh.pop %v1669
  %1672 = vrot.lane.b32.xlu0 %v1670, 64
  %v1673 = vpop.permute.xlu0 %1672
  %v1675 = vmul.f32 %v1657, %v1673
  %1677 = vrot.lane.b32.xlu0 %v1675, 32
  %v1678 = vpop.permute.xlu0 %1677
  %v1679 = vsel %vm176, %v1678, 0
  %1681 = vmatprep.subr.mxu0 0.0
  %1682 = vmatpush1.msra.mxu0 %v1135
  %1683 = vmatprep.subr.mxu0 0.0
  %1684 = vmatpush1.msra.mxu0 %v1136
  %1685 = vmatprep.subr.mxu0 0.0
  %1686 = vmatpush1.msra.mxu0 %v1137
  %1687 = vmatprep.subr.mxu0 0.0
  %1688 = vmatpush1.msra.mxu0 %v1138
  %1689 = vmatprep.subr.mxu0 0.0
  %1690 = vmatpush1.msra.mxu0 0.0
  %1691 = vmatprep.subr.mxu0 0.0
  %1692 = vmatpush1.msra.mxu0 0.0
  %1693 = vmatprep.subr.mxu0 0.0
  %1694 = vmatpush1.msra.mxu0 0.0
  %1695 = vmatprep.subr.mxu0 0.0
  %1696 = vmatpush1.msra.mxu0 0.0
  %1697 = vmatprep.subr.mxu0 0.0
  %1698 = vmatpush1.msra.mxu0 0.0
  %1699 = vmatprep.subr.mxu0 0.0
  %1700 = vmatpush1.msra.mxu0 0.0
  %1701 = vmatprep.subr.mxu0 0.0
  %1702 = vmatpush1.msra.mxu0 0.0
  %1703 = vmatprep.subr.mxu0 0.0
  %1704 = vmatpush1.msra.mxu0 0.0
  %1705 = vmatprep.subr.mxu0 0.0
  %1706 = vmatpush1.msra.mxu0 0.0
  %1707 = vmatprep.subr.mxu0 0.0
  %1708 = vmatpush1.msra.mxu0 0.0
  %1709 = vmatprep.subr.mxu0 0.0
  %1710 = vmatpush1.msra.mxu0 0.0
  %1711 = vmatprep.subr.mxu0 0.0
  %1712 = vmatpush1.msra.mxu0 0.0
  %1713 = vmatprep.subr.mxu0 0.0
  %1714 = vmatpush1.msra.mxu0 0.0
  %1715 = vmatprep.subr.mxu0 0.0
  %1716 = vmatpush1.msra.mxu0 0.0
  %1717 = vmatprep.subr.mxu0 0.0
  %1718 = vmatpush1.msra.mxu0 0.0
  %1719 = vmatprep.subr.mxu0 0.0
  %1720 = vmatpush1.msra.mxu0 0.0
  %1721 = vmatprep.subr.mxu0 0.0
  %1722 = vmatpush1.msra.mxu0 0.0
  %1723 = vmatprep.subr.mxu0 0.0
  %1724 = vmatpush1.msra.mxu0 0.0
  %1725 = vmatprep.subr.mxu0 0.0
  %1726 = vmatpush1.msra.mxu0 0.0
  %1727 = vmatprep.subr.mxu0 0.0
  %1728 = vmatpush1.msra.mxu0 0.0
  %1729 = vmatprep.subr.mxu0 0.0
  %1730 = vmatpush1.msra.mxu0 0.0
  %1731 = vmatprep.subr.mxu0 0.0
  %1732 = vmatpush1.msra.mxu0 0.0
  %1733 = vmatprep.subr.mxu0 0.0
  %1734 = vmatpush1.msra.mxu0 0.0
  %1735 = vmatprep.subr.mxu0 0.0
  %1736 = vmatpush1.msra.mxu0 0.0
  %1737 = vmatprep.subr.mxu0 0.0
  %1738 = vmatpush1.msra.mxu0 0.0
  %1739 = vmatprep.subr.mxu0 0.0
  %1740 = vmatpush1.msra.mxu0 0.0
  %1741 = vmatprep.subr.mxu0 0.0
  %1742 = vmatpush1.msra.mxu0 0.0
  %1743 = vmatprep.subr.mxu0 0.0
  %1744 = vmatpush1.msra.mxu0 0.0
  %1745 = vmatprep.mubr.f32.mxu0 0.0
  %1746 = vmatmul.mubr.f32.gmra.mrb[0].mxu0 %v1679
  %v1747 = vpop.f32.mrb[0].mxu0
  %v1748 = vadd.f32 0.0, %v1747
  %v1749 = vpop.f32.mrb[0].mxu0
  %1750 = vdwg.mxu0
  %v1751 = vadd.f32 %v1277, %v1748
  %v1752 = vxor.u32 %v1751, 2147483648
  %v1753 = vmul.f32 %v1752, 1.442695
  %v1754 = vpow.pop %v1753
  %v1755 = vadd.f32 %v1754, 1.0
  %v1756 = vrcp.pop %v1755
  %v1757 = vmul.f32 1.0, %v1756
  %v1758 = vtanh.pop %v1751
  %v1759 = vmul.f32 %v1757, %v1669
  %1761 = vrot.lane.b32.xlu0 %v1758, 64
  %v1762 = vpop.permute.xlu0 %1761
  %v1764 = vmul.f32 %v1757, %v1762
  %1766 = vrot.lane.b32.xlu0 %v1764, 32
  %v1767 = vpop.permute.xlu0 %1766
  %v1769 = vadd.f32 %v1759, %v1767
  %v1770 = vtanh.pop %v1769
  %1772 = vrot.lane.b32.xlu0 %v1770, 64
  %v1773 = vpop.permute.xlu0 %1772
  %v1775 = vmul.f32 %v1757, %v1773
  %1777 = vrot.lane.b32.xlu0 %v1775, 32
  %v1778 = vpop.permute.xlu0 %1777
  %v1779 = vsel %vm176, %v1778, 0
  %1781 = vmatprep.subr.mxu0 0.0
  %1782 = vmatpush1.msra.mxu0 %v1135
  %1783 = vmatprep.subr.mxu0 0.0
  %1784 = vmatpush1.msra.mxu0 %v1136
  %1785 = vmatprep.subr.mxu0 0.0
  %1786 = vmatpush1.msra.mxu0 %v1137
  %1787 = vmatprep.subr.mxu0 0.0
  %1788 = vmatpush1.msra.mxu0 %v1138
  %1789 = vmatprep.subr.mxu0 0.0
  %1790 = vmatpush1.msra.mxu0 0.0
  %1791 = vmatprep.subr.mxu0 0.0
  %1792 = vmatpush1.msra.mxu0 0.0
  %1793 = vmatprep.subr.mxu0 0.0
  %1794 = vmatpush1.msra.mxu0 0.0
  %1795 = vmatprep.subr.mxu0 0.0
  %1796 = vmatpush1.msra.mxu0 0.0
  %1797 = vmatprep.subr.mxu0 0.0
  %1798 = vmatpush1.msra.mxu0 0.0
  %1799 = vmatprep.subr.mxu0 0.0
  %1800 = vmatpush1.msra.mxu0 0.0
  %1801 = vmatprep.subr.mxu0 0.0
  %1802 = vmatpush1.msra.mxu0 0.0
  %1803 = vmatprep.subr.mxu0 0.0
  %1804 = vmatpush1.msra.mxu0 0.0
  %1805 = vmatprep.subr.mxu0 0.0
  %1806 = vmatpush1.msra.mxu0 0.0
  %1807 = vmatprep.subr.mxu0 0.0
  %1808 = vmatpush1.msra.mxu0 0.0
  %1809 = vmatprep.subr.mxu0 0.0
  %1810 = vmatpush1.msra.mxu0 0.0
  %1811 = vmatprep.subr.mxu0 0.0
  %1812 = vmatpush1.msra.mxu0 0.0
  %1813 = vmatprep.subr.mxu0 0.0
  %1814 = vmatpush1.msra.mxu0 0.0
  %1815 = vmatprep.subr.mxu0 0.0
  %1816 = vmatpush1.msra.mxu0 0.0
  %1817 = vmatprep.subr.mxu0 0.0
  %1818 = vmatpush1.msra.mxu0 0.0
  %1819 = vmatprep.subr.mxu0 0.0
  %1820 = vmatpush1.msra.mxu0 0.0
  %1821 = vmatprep.subr.mxu0 0.0
  %1822 = vmatpush1.msra.mxu0 0.0
  %1823 = vmatprep.subr.mxu0 0.0
  %1824 = vmatpush1.msra.mxu0 0.0
  %1825 = vmatprep.subr.mxu0 0.0
  %1826 = vmatpush1.msra.mxu0 0.0
  %1827 = vmatprep.subr.mxu0 0.0
  %1828 = vmatpush1.msra.mxu0 0.0
  %1829 = vmatprep.subr.mxu0 0.0
  %1830 = vmatpush1.msra.mxu0 0.0
  %1831 = vmatprep.subr.mxu0 0.0
  %1832 = vmatpush1.msra.mxu0 0.0
  %1833 = vmatprep.subr.mxu0 0.0
  %1834 = vmatpush1.msra.mxu0 0.0
  %1835 = vmatprep.subr.mxu0 0.0
  %1836 = vmatpush1.msra.mxu0 0.0
  %1837 = vmatprep.subr.mxu0 0.0
  %1838 = vmatpush1.msra.mxu0 0.0
  %1839 = vmatprep.subr.mxu0 0.0
  %1840 = vmatpush1.msra.mxu0 0.0
  %1841 = vmatprep.subr.mxu0 0.0
  %1842 = vmatpush1.msra.mxu0 0.0
  %1843 = vmatprep.subr.mxu0 0.0
  %1844 = vmatpush1.msra.mxu0 0.0
  %1845 = vmatprep.mubr.f32.mxu0 0.0
  %1846 = vmatmul.mubr.f32.gmra.mrb[0].mxu0 %v1779
  %v1847 = vpop.f32.mrb[0].mxu0
  %v1848 = vadd.f32 0.0, %v1847
  %v1849 = vpop.f32.mrb[0].mxu0
  %1850 = vdwg.mxu0
  %v1851 = vadd.f32 %v1278, %v1848
  %v1852 = vxor.u32 %v1851, 2147483648
  %v1853 = vmul.f32 %v1852, 1.442695
  %v1854 = vpow.pop %v1853
  %v1855 = vadd.f32 %v1854, 1.0
  %v1856 = vrcp.pop %v1855
  %v1857 = vmul.f32 1.0, %v1856
  %v1858 = vtanh.pop %v1851
  %v1859 = vmul.f32 %v1857, %v1769
  %1861 = vrot.lane.b32.xlu0 %v1858, 64
  %v1862 = vpop.permute.xlu0 %1861
  %v1864 = vmul.f32 %v1857, %v1862
  %1866 = vrot.lane.b32.xlu0 %v1864, 32
  %v1867 = vpop.permute.xlu0 %1866
  %v1869 = vadd.f32 %v1859, %v1867
  %v1870 = vtanh.pop %v1869
  %1872 = vrot.lane.b32.xlu0 %v1870, 64
  %v1873 = vpop.permute.xlu0 %1872
  %v1875 = vmul.f32 %v1857, %v1873
  %1877 = vrot.lane.b32.xlu0 %v1875, 32
  %v1878 = vpop.permute.xlu0 %1877
  %v1879 = vsel %vm176, %v1878, 0
  %1881 = vmatprep.subr.mxu0 0.0
  %1882 = vmatpush1.msra.mxu0 %v1135
  %1883 = vmatprep.subr.mxu0 0.0
  %1884 = vmatpush1.msra.mxu0 %v1136
  %1885 = vmatprep.subr.mxu0 0.0
  %1886 = vmatpush1.msra.mxu0 %v1137
  %1887 = vmatprep.subr.mxu0 0.0
  %1888 = vmatpush1.msra.mxu0 %v1138
  %1889 = vmatprep.subr.mxu0 0.0
  %1890 = vmatpush1.msra.mxu0 0.0
  %1891 = vmatprep.subr.mxu0 0.0
  %1892 = vmatpush1.msra.mxu0 0.0
  %1893 = vmatprep.subr.mxu0 0.0
  %1894 = vmatpush1.msra.mxu0 0.0
  %1895 = vmatprep.subr.mxu0 0.0
  %1896 = vmatpush1.msra.mxu0 0.0
  %1897 = vmatprep.subr.mxu0 0.0
  %1898 = vmatpush1.msra.mxu0 0.0
  %1899 = vmatprep.subr.mxu0 0.0
  %1900 = vmatpush1.msra.mxu0 0.0
  %1901 = vmatprep.subr.mxu0 0.0
  %1902 = vmatpush1.msra.mxu0 0.0
  %1903 = vmatprep.subr.mxu0 0.0
  %1904 = vmatpush1.msra.mxu0 0.0
  %1905 = vmatprep.subr.mxu0 0.0
  %1906 = vmatpush1.msra.mxu0 0.0
  %1907 = vmatprep.subr.mxu0 0.0
  %1908 = vmatpush1.msra.mxu0 0.0
  %1909 = vmatprep.subr.mxu0 0.0
  %1910 = vmatpush1.msra.mxu0 0.0
  %1911 = vmatprep.subr.mxu0 0.0
  %1912 = vmatpush1.msra.mxu0 0.0
  %1913 = vmatprep.subr.mxu0 0.0
  %1914 = vmatpush1.msra.mxu0 0.0
  %1915 = vmatprep.subr.mxu0 0.0
  %1916 = vmatpush1.msra.mxu0 0.0
  %1917 = vmatprep.subr.mxu0 0.0
  %1918 = vmatpush1.msra.mxu0 0.0
  %1919 = vmatprep.subr.mxu0 0.0
  %1920 = vmatpush1.msra.mxu0 0.0
  %1921 = vmatprep.subr.mxu0 0.0
  %1922 = vmatpush1.msra.mxu0 0.0
  %1923 = vmatprep.subr.mxu0 0.0
  %1924 = vmatpush1.msra.mxu0 0.0
  %1925 = vmatprep.subr.mxu0 0.0
  %1926 = vmatpush1.msra.mxu0 0.0
  %1927 = vmatprep.subr.mxu0 0.0
  %1928 = vmatpush1.msra.mxu0 0.0
  %1929 = vmatprep.subr.mxu0 0.0
  %1930 = vmatpush1.msra.mxu0 0.0
  %1931 = vmatprep.subr.mxu0 0.0
  %1932 = vmatpush1.msra.mxu0 0.0
  %1933 = vmatprep.subr.mxu0 0.0
  %1934 = vmatpush1.msra.mxu0 0.0
  %1935 = vmatprep.subr.mxu0 0.0
  %1936 = vmatpush1.msra.mxu0 0.0
  %1937 = vmatprep.subr.mxu0 0.0
  %1938 = vmatpush1.msra.mxu0 0.0
  %1939 = vmatprep.subr.mxu0 0.0
  %1940 = vmatpush1.msra.mxu0 0.0
  %1941 = vmatprep.subr.mxu0 0.0
  %1942 = vmatpush1.msra.mxu0 0.0
  %1943 = vmatprep.subr.mxu0 0.0
  %1944 = vmatpush1.msra.mxu0 0.0
  %1945 = vmatprep.mubr.f32.mxu0 0.0
  %1946 = vmatmul.mubr.f32.gmra.mrb[0].mxu0 %v1879
  %v1947 = vpop.f32.mrb[0].mxu0
  %v1948 = vadd.f32 0.0, %v1947
  %v1949 = vpop.f32.mrb[0].mxu0
  %1950 = vdwg.mxu0
  %v1951 = vadd.f32 %v1279, %v1948
  %v1952 = vxor.u32 %v1951, 2147483648
  %v1953 = vmul.f32 %v1952, 1.442695
  %v1954 = vpow.pop %v1953
  %v1955 = vadd.f32 %v1954, 1.0
  %v1956 = vrcp.pop %v1955
  %v1957 = vmul.f32 1.0, %v1956
  %v1958 = vtanh.pop %v1951
  %v1959 = vmul.f32 %v1957, %v1869
  %1961 = vrot.lane.b32.xlu0 %v1958, 64
  %v1962 = vpop.permute.xlu0 %1961
  %v1964 = vmul.f32 %v1957, %v1962
  %1966 = vrot.lane.b32.xlu0 %v1964, 32
  %v1967 = vpop.permute.xlu0 %1966
  %v1969 = vadd.f32 %v1959, %v1967
  %v1970 = vtanh.pop %v1969
  %1972 = vrot.lane.b32.xlu0 %v1970, 64
  %v1973 = vpop.permute.xlu0 %1972
  %v1975 = vmul.f32 %v1957, %v1973
  %1977 = vrot.lane.b32.xlu0 %v1975, 32
  %v1978 = vpop.permute.xlu0 %1977
  %v1979 = vsel %vm176, %v1978, 0
  %1981 = vmatprep.subr.mxu0 0.0
  %1982 = vmatpush1.msra.mxu0 %v1135
  %1983 = vmatprep.subr.mxu0 0.0
  %1984 = vmatpush1.msra.mxu0 %v1136
  %1985 = vmatprep.subr.mxu0 0.0
  %1986 = vmatpush1.msra.mxu0 %v1137
  %1987 = vmatprep.subr.mxu0 0.0
  %1988 = vmatpush1.msra.mxu0 %v1138
  %1989 = vmatprep.subr.mxu0 0.0
  %1990 = vmatpush1.msra.mxu0 0.0
  %1991 = vmatprep.subr.mxu0 0.0
  %1992 = vmatpush1.msra.mxu0 0.0
  %1993 = vmatprep.subr.mxu0 0.0
  %1994 = vmatpush1.msra.mxu0 0.0
  %1995 = vmatprep.subr.mxu0 0.0
  %1996 = vmatpush1.msra.mxu0 0.0
  %1997 = vmatprep.subr.mxu0 0.0
  %1998 = vmatpush1.msra.mxu0 0.0
  %1999 = vmatprep.subr.mxu0 0.0
  %2000 = vmatpush1.msra.mxu0 0.0
  %2001 = vmatprep.subr.mxu0 0.0
  %2002 = vmatpush1.msra.mxu0 0.0
  %2003 = vmatprep.subr.mxu0 0.0
  %2004 = vmatpush1.msra.mxu0 0.0
  %2005 = vmatprep.subr.mxu0 0.0
  %2006 = vmatpush1.msra.mxu0 0.0
  %2007 = vmatprep.subr.mxu0 0.0
  %2008 = vmatpush1.msra.mxu0 0.0
  %2009 = vmatprep.subr.mxu0 0.0
  %2010 = vmatpush1.msra.mxu0 0.0
  %2011 = vmatprep.subr.mxu0 0.0
  %2012 = vmatpush1.msra.mxu0 0.0
  %2013 = vmatprep.subr.mxu0 0.0
  %2014 = vmatpush1.msra.mxu0 0.0
  %2015 = vmatprep.subr.mxu0 0.0
  %2016 = vmatpush1.msra.mxu0 0.0
  %2017 = vmatprep.subr.mxu0 0.0
  %2018 = vmatpush1.msra.mxu0 0.0
  %2019 = vmatprep.subr.mxu0 0.0
  %2020 = vmatpush1.msra.mxu0 0.0
  %2021 = vmatprep.subr.mxu0 0.0
  %2022 = vmatpush1.msra.mxu0 0.0
  %2023 = vmatprep.subr.mxu0 0.0
  %2024 = vmatpush1.msra.mxu0 0.0
  %2025 = vmatprep.subr.mxu0 0.0
  %2026 = vmatpush1.msra.mxu0 0.0
  %2027 = vmatprep.subr.mxu0 0.0
  %2028 = vmatpush1.msra.mxu0 0.0
  %2029 = vmatprep.subr.mxu0 0.0
  %2030 = vmatpush1.msra.mxu0 0.0
  %2031 = vmatprep.subr.mxu0 0.0
  %2032 = vmatpush1.msra.mxu0 0.0
  %2033 = vmatprep.subr.mxu0 0.0
  %2034 = vmatpush1.msra.mxu0 0.0
  %2035 = vmatprep.subr.mxu0 0.0
  %2036 = vmatpush1.msra.mxu0 0.0
  %2037 = vmatprep.subr.mxu0 0.0
  %2038 = vmatpush1.msra.mxu0 0.0
  %2039 = vmatprep.subr.mxu0 0.0
  %2040 = vmatpush1.msra.mxu0 0.0
  %2041 = vmatprep.subr.mxu0 0.0
  %2042 = vmatpush1.msra.mxu0 0.0
  %2043 = vmatprep.subr.mxu0 0.0
  %2044 = vmatpush1.msra.mxu0 0.0
  %2045 = vmatprep.mubr.f32.mxu0 0.0
  %2046 = vmatmul.mubr.f32.gmra.mrb[0].mxu0 %v1979
  %v2047 = vpop.f32.mrb[0].mxu0
  %v2048 = vadd.f32 0.0, %v2047
  %v2049 = vpop.f32.mrb[0].mxu0
  %2050 = vdwg.mxu0
  %v2051 = vadd.f32 %v1280, %v2048
  %v2052 = vxor.u32 %v2051, 2147483648
  %v2053 = vmul.f32 %v2052, 1.442695
  %v2054 = vpow.pop %v2053
  %v2055 = vadd.f32 %v2054, 1.0
  %v2056 = vrcp.pop %v2055
  %v2057 = vmul.f32 1.0, %v2056
  %v2058 = vtanh.pop %v2051
  %v2059 = vmul.f32 %v2057, %v1969
  %2061 = vrot.lane.b32.xlu0 %v2058, 64
  %v2062 = vpop.permute.xlu0 %2061
  %v2064 = vmul.f32 %v2057, %v2062
  %2066 = vrot.lane.b32.xlu0 %v2064, 32
  %v2067 = vpop.permute.xlu0 %2066
  %v2069 = vadd.f32 %v2059, %v2067
  %v2070 = vtanh.pop %v2069
  %2072 = vrot.lane.b32.xlu0 %v2070, 64
  %v2073 = vpop.permute.xlu0 %2072
  %v2075 = vmul.f32 %v2057, %v2073
  %2078 = vrot.lane.b32.xlu0 %v2075, 32
  %v2079 = vpop.permute.xlu0 %2078
  %v2081 = vsel %vm29, %v1378, %v2079
  %v2084 = vsel %vm29, %v1478, %v1978
  %v2087 = vsel %vm29, %v1578, %v1878
  %v2090 = vsel %vm29, %v1678, %v1778
  %v2091 = vsel %vm29, %v1778, %v1678
  %v2092 = vsel %vm29, %v1878, %v1578
  %v2093 = vsel %vm29, %v1978, %v1478
  %v2094 = vsel %vm29, %v2079, %v1378
  %v2095 = vld [vmem:[%s1 + $0x80] sm:$0xff]
  %v2096 = vld [vmem:[%s1 + $0x88] sm:$0xff]
  %v2097 = vld [vmem:[%s1 + $0x90] sm:$0xff]
  %v2098 = vld [vmem:[%s1 + $0x98] sm:$0xff]
  %v2099 = vld [vmem:[%s1 + $0xa0] sm:$0xff]
  %v2100 = vld [vmem:[%s1 + $0xa8] sm:$0xff]
  %v2101 = vld [vmem:[%s1 + $0xb0] sm:$0xff]
  %v2102 = vld [vmem:[%s1 + $0xb8] sm:$0xff]
  %v2103 = vld [vmem:[%s2 + $0x2] sm:$0x1]
  %v2104 = vlaneseq
  %v2105 = vshrl.u32 %v2104, 7
  %v2106 = vsub.s32 0, %v2105
  %v2107 = vrot.slane %v2103, %v2106
  %v2109 = vsel %vm176, %v2081, 0
  %v2112 = vsel %vm176, %v2084, 0
  %v2115 = vsel %vm176, %v2087, 0
  %v2118 = vsel %vm176, %v2090, 0
  %v2121 = vsel %vm176, %v2091, 0
  %v2124 = vsel %vm176, %v2092, 0
  %v2127 = vsel %vm176, %v2093, 0
  %v2130 = vsel %vm176, %v2094, 0
  %2132 = vmatprep.subr.mxu0 0.0
  %2133 = vmatpush1.msra.mxu0 %v2095
  %2134 = vmatprep.subr.mxu0 0.0
  %2135 = vmatpush1.msra.mxu0 %v2096
  %2136 = vmatprep.subr.mxu0 0.0
  %2137 = vmatpush1.msra.mxu0 %v2097
  %2138 = vmatprep.subr.mxu0 0.0
  %2139 = vmatpush1.msra.mxu0 %v2098
  %2140 = vmatprep.subr.mxu0 0.0
  %2141 = vmatpush1.msra.mxu0 0.0
  %2142 = vmatprep.subr.mxu0 0.0
  %2143 = vmatpush1.msra.mxu0 0.0
  %2144 = vmatprep.subr.mxu0 0.0
  %2145 = vmatpush1.msra.mxu0 0.0
  %2146 = vmatprep.subr.mxu0 0.0
  %2147 = vmatpush1.msra.mxu0 0.0
  %2148 = vmatprep.subr.mxu0 0.0
  %2149 = vmatpush1.msra.mxu0 0.0
  %2150 = vmatprep.subr.mxu0 0.0
  %2151 = vmatpush1.msra.mxu0 0.0
  %2152 = vmatprep.subr.mxu0 0.0
  %2153 = vmatpush1.msra.mxu0 0.0
  %2154 = vmatprep.subr.mxu0 0.0
  %2155 = vmatpush1.msra.mxu0 0.0
  %2156 = vmatprep.subr.mxu0 0.0
  %2157 = vmatpush1.msra.mxu0 0.0
  %2158 = vmatprep.subr.mxu0 0.0
  %2159 = vmatpush1.msra.mxu0 0.0
  %2160 = vmatprep.subr.mxu0 0.0
  %2161 = vmatpush1.msra.mxu0 0.0
  %2162 = vmatprep.subr.mxu0 0.0
  %2163 = vmatpush1.msra.mxu0 0.0
  %2164 = vmatprep.subr.mxu0 0.0
  %2165 = vmatpush1.msra.mxu0 0.0
  %2166 = vmatprep.subr.mxu0 0.0
  %2167 = vmatpush1.msra.mxu0 0.0
  %2168 = vmatprep.subr.mxu0 0.0
  %2169 = vmatpush1.msra.mxu0 0.0
  %2170 = vmatprep.subr.mxu0 0.0
  %2171 = vmatpush1.msra.mxu0 0.0
  %2172 = vmatprep.subr.mxu0 0.0
  %2173 = vmatpush1.msra.mxu0 0.0
  %2174 = vmatprep.subr.mxu0 0.0
  %2175 = vmatpush1.msra.mxu0 0.0
  %2176 = vmatprep.subr.mxu0 0.0
  %2177 = vmatpush1.msra.mxu0 0.0
  %2178 = vmatprep.subr.mxu0 0.0
  %2179 = vmatpush1.msra.mxu0 0.0
  %2180 = vmatprep.subr.mxu0 0.0
  %2181 = vmatpush1.msra.mxu0 0.0
  %2182 = vmatprep.subr.mxu0 0.0
  %2183 = vmatpush1.msra.mxu0 0.0
  %2184 = vmatprep.subr.mxu0 0.0
  %2185 = vmatpush1.msra.mxu0 0.0
  %2186 = vmatprep.subr.mxu0 0.0
  %2187 = vmatpush1.msra.mxu0 0.0
  %2188 = vmatprep.subr.mxu0 0.0
  %2189 = vmatpush1.msra.mxu0 0.0
  %2190 = vmatprep.subr.mxu0 0.0
  %2191 = vmatpush1.msra.mxu0 0.0
  %2192 = vmatprep.subr.mxu0 0.0
  %2193 = vmatpush1.msra.mxu0 0.0
  %2194 = vmatprep.subr.mxu0 0.0
  %2195 = vmatpush1.msra.mxu0 0.0
  %2196 = vmatprep.mubr.f32.mxu0 0.0
  %2197 = vmatmul.mubr.f32.gmra.mrb[0].mxu0 %v2109
  %v2198 = vpop.f32.mrb[0].mxu0
  %v2199 = vadd.f32 %v2107, %v2198
  %v2200 = vpop.f32.mrb[0].mxu0
  %2201 = vmatprep.mubr.f32.mxu0 0.0
  %2202 = vmatmul.mubr.f32.gmra.mrb[0].mxu0 %v2112
  %v2203 = vpop.f32.mrb[0].mxu0
  %v2204 = vadd.f32 %v2107, %v2203
  %v2205 = vpop.f32.mrb[0].mxu0
  %2206 = vmatprep.mubr.f32.mxu0 0.0
  %2207 = vmatmul.mubr.f32.gmra.mrb[0].mxu0 %v2115
  %v2208 = vpop.f32.mrb[0].mxu0
  %v2209 = vadd.f32 %v2107, %v2208
  %v2210 = vpop.f32.mrb[0].mxu0
  %2211 = vmatprep.mubr.f32.mxu0 0.0
  %2212 = vmatmul.mubr.f32.gmra.mrb[0].mxu0 %v2118
  %v2213 = vpop.f32.mrb[0].mxu0
  %v2214 = vadd.f32 %v2107, %v2213
  %v2215 = vpop.f32.mrb[0].mxu0
  %2216 = vmatprep.mubr.f32.mxu0 0.0
  %2217 = vmatmul.mubr.f32.gmra.mrb[0].mxu0 %v2121
  %v2218 = vpop.f32.mrb[0].mxu0
  %v2219 = vadd.f32 %v2107, %v2218
  %v2220 = vpop.f32.mrb[0].mxu0
  %2221 = vmatprep.mubr.f32.mxu0 0.0
  %2222 = vmatmul.mubr.f32.gmra.mrb[0].mxu0 %v2124
  %v2223 = vpop.f32.mrb[0].mxu0
  %v2224 = vadd.f32 %v2107, %v2223
  %v2225 = vpop.f32.mrb[0].mxu0
  %2226 = vmatprep.mubr.f32.mxu0 0.0
  %2227 = vmatmul.mubr.f32.gmra.mrb[0].mxu0 %v2127
  %v2228 = vpop.f32.mrb[0].mxu0
  %v2229 = vadd.f32 %v2107, %v2228
  %v2230 = vpop.f32.mrb[0].mxu0
  %2231 = vmatprep.mubr.f32.mxu0 0.0
  %2232 = vmatmul.mubr.f32.gmra.mrb[0].mxu0 %v2130
  %v2233 = vpop.f32.mrb[0].mxu0
  %v2234 = vadd.f32 %v2107, %v2233
  %v2235 = vpop.f32.mrb[0].mxu0
  %2236 = vdwg.mxu0
  %v2237 = vsel %vm28, %v2199, %v2234
  %v2238 = vsel %vm28, %v2204, %v2229
  %v2239 = vsel %vm28, %v2209, %v2224
  %v2240 = vsel %vm28, %v2214, %v2219
  %v2241 = vsel %vm28, %v2219, %v2214
  %v2242 = vsel %vm28, %v2224, %v2209
  %v2243 = vsel %vm28, %v2229, %v2204
  %v2244 = vsel %vm28, %v2234, %v2199
  %2245 = vmatprep.subr.mxu0 0.0
  %2246 = vmatpush1.msra.mxu0 %v2099
  %2247 = vmatprep.subr.mxu0 0.0
  %2248 = vmatpush1.msra.mxu0 %v2100
  %2249 = vmatprep.subr.mxu0 0.0
  %2250 = vmatpush1.msra.mxu0 %v2101
  %2251 = vmatprep.subr.mxu0 0.0
  %2252 = vmatpush1.msra.mxu0 %v2102
  %2253 = vmatprep.subr.mxu0 0.0
  %2254 = vmatpush1.msra.mxu0 0.0
  %2255 = vmatprep.subr.mxu0 0.0
  %2256 = vmatpush1.msra.mxu0 0.0
  %2257 = vmatprep.subr.mxu0 0.0
  %2258 = vmatpush1.msra.mxu0 0.0
  %2259 = vmatprep.subr.mxu0 0.0
  %2260 = vmatpush1.msra.mxu0 0.0
  %2261 = vmatprep.subr.mxu0 0.0
  %2262 = vmatpush1.msra.mxu0 0.0
  %2263 = vmatprep.subr.mxu0 0.0
  %2264 = vmatpush1.msra.mxu0 0.0
  %2265 = vmatprep.subr.mxu0 0.0
  %2266 = vmatpush1.msra.mxu0 0.0
  %2267 = vmatprep.subr.mxu0 0.0
  %2268 = vmatpush1.msra.mxu0 0.0
  %2269 = vmatprep.subr.mxu0 0.0
  %2270 = vmatpush1.msra.mxu0 0.0
  %2271 = vmatprep.subr.mxu0 0.0
  %2272 = vmatpush1.msra.mxu0 0.0
  %2273 = vmatprep.subr.mxu0 0.0
  %2274 = vmatpush1.msra.mxu0 0.0
  %2275 = vmatprep.subr.mxu0 0.0
  %2276 = vmatpush1.msra.mxu0 0.0
  %2277 = vmatprep.subr.mxu0 0.0
  %2278 = vmatpush1.msra.mxu0 0.0
  %2279 = vmatprep.subr.mxu0 0.0
  %2280 = vmatpush1.msra.mxu0 0.0
  %2281 = vmatprep.subr.mxu0 0.0
  %2282 = vmatpush1.msra.mxu0 0.0
  %2283 = vmatprep.subr.mxu0 0.0
  %2284 = vmatpush1.msra.mxu0 0.0
  %2285 = vmatprep.subr.mxu0 0.0
  %2286 = vmatpush1.msra.mxu0 0.0
  %2287 = vmatprep.subr.mxu0 0.0
  %2288 = vmatpush1.msra.mxu0 0.0
  %2289 = vmatprep.subr.mxu0 0.0
  %2290 = vmatpush1.msra.mxu0 0.0
  %2291 = vmatprep.subr.mxu0 0.0
  %2292 = vmatpush1.msra.mxu0 0.0
  %2293 = vmatprep.subr.mxu0 0.0
  %2294 = vmatpush1.msra.mxu0 0.0
  %2295 = vmatprep.subr.mxu0 0.0
  %2296 = vmatpush1.msra.mxu0 0.0
  %2297 = vmatprep.subr.mxu0 0.0
  %2298 = vmatpush1.msra.mxu0 0.0
  %2299 = vmatprep.subr.mxu0 0.0
  %2300 = vmatpush1.msra.mxu0 0.0
  %2301 = vmatprep.subr.mxu0 0.0
  %2302 = vmatpush1.msra.mxu0 0.0
  %2303 = vmatprep.subr.mxu0 0.0
  %2304 = vmatpush1.msra.mxu0 0.0
  %2305 = vmatprep.subr.mxu0 0.0
  %2306 = vmatpush1.msra.mxu0 0.0
  %2307 = vmatprep.subr.mxu0 0.0
  %2308 = vmatpush1.msra.mxu0 0.0
  %2309 = vmatprep.mubr.f32.mxu0 0.0
  %2310 = vmatmul.mubr.f32.gmra.mrb[0].mxu0 %v315
  %v2311 = vpop.f32.mrb[0].mxu0
  %v2312 = vadd.f32 0.0, %v2311
  %v2313 = vpop.f32.mrb[0].mxu0
  %2314 = vdwg.mxu0
  %v2315 = vadd.f32 %v2237, %v2312
  %v2316 = vxor.u32 %v2315, 2147483648
  %v2317 = vmul.f32 %v2316, 1.442695
  %v2318 = vpow.pop %v2317
  %v2319 = vadd.f32 %v2318, 1.0
  %v2320 = vrcp.pop %v2319
  %v2321 = vmul.f32 1.0, %v2320
  %v2322 = vtanh.pop %v2315
  %v2323 = vmul.f32 %v2321, 0.0
  %2325 = vrot.lane.b32.xlu0 %v2322, 64
  %v2326 = vpop.permute.xlu0 %2325
  %v2328 = vmul.f32 %v2321, %v2326
  %2330 = vrot.lane.b32.xlu0 %v2328, 32
  %v2331 = vpop.permute.xlu0 %2330
  %v2333 = vadd.f32 %v2323, %v2331
  %v2334 = vtanh.pop %v2333
  %2336 = vrot.lane.b32.xlu0 %v2334, 64
  %v2337 = vpop.permute.xlu0 %2336
  %v2339 = vmul.f32 %v2321, %v2337
  %2341 = vrot.lane.b32.xlu0 %v2339, 32
  %v2342 = vpop.permute.xlu0 %2341
  %v2343 = vsel %vm176, %v2342, 0
  %2345 = vmatprep.subr.mxu0 0.0
  %2346 = vmatpush1.msra.mxu0 %v2099
  %2347 = vmatprep.subr.mxu0 0.0
  %2348 = vmatpush1.msra.mxu0 %v2100
  %2349 = vmatprep.subr.mxu0 0.0
  %2350 = vmatpush1.msra.mxu0 %v2101
  %2351 = vmatprep.subr.mxu0 0.0
  %2352 = vmatpush1.msra.mxu0 %v2102
  %2353 = vmatprep.subr.mxu0 0.0
  %2354 = vmatpush1.msra.mxu0 0.0
  %2355 = vmatprep.subr.mxu0 0.0
  %2356 = vmatpush1.msra.mxu0 0.0
  %2357 = vmatprep.subr.mxu0 0.0
  %2358 = vmatpush1.msra.mxu0 0.0
  %2359 = vmatprep.subr.mxu0 0.0
  %2360 = vmatpush1.msra.mxu0 0.0
  %2361 = vmatprep.subr.mxu0 0.0
  %2362 = vmatpush1.msra.mxu0 0.0
  %2363 = vmatprep.subr.mxu0 0.0
  %2364 = vmatpush1.msra.mxu0 0.0
  %2365 = vmatprep.subr.mxu0 0.0
  %2366 = vmatpush1.msra.mxu0 0.0
  %2367 = vmatprep.subr.mxu0 0.0
  %2368 = vmatpush1.msra.mxu0 0.0
  %2369 = vmatprep.subr.mxu0 0.0
  %2370 = vmatpush1.msra.mxu0 0.0
  %2371 = vmatprep.subr.mxu0 0.0
  %2372 = vmatpush1.msra.mxu0 0.0
  %2373 = vmatprep.subr.mxu0 0.0
  %2374 = vmatpush1.msra.mxu0 0.0
  %2375 = vmatprep.subr.mxu0 0.0
  %2376 = vmatpush1.msra.mxu0 0.0
  %2377 = vmatprep.subr.mxu0 0.0
  %2378 = vmatpush1.msra.mxu0 0.0
  %2379 = vmatprep.subr.mxu0 0.0
  %2380 = vmatpush1.msra.mxu0 0.0
  %2381 = vmatprep.subr.mxu0 0.0
  %2382 = vmatpush1.msra.mxu0 0.0
  %2383 = vmatprep.subr.mxu0 0.0
  %2384 = vmatpush1.msra.mxu0 0.0
  %2385 = vmatprep.subr.mxu0 0.0
  %2386 = vmatpush1.msra.mxu0 0.0
  %2387 = vmatprep.subr.mxu0 0.0
  %2388 = vmatpush1.msra.mxu0 0.0
  %2389 = vmatprep.subr.mxu0 0.0
  %2390 = vmatpush1.msra.mxu0 0.0
  %2391 = vmatprep.subr.mxu0 0.0
  %2392 = vmatpush1.msra.mxu0 0.0
  %2393 = vmatprep.subr.mxu0 0.0
  %2394 = vmatpush1.msra.mxu0 0.0
  %2395 = vmatprep.subr.mxu0 0.0
  %2396 = vmatpush1.msra.mxu0 0.0
  %2397 = vmatprep.subr.mxu0 0.0
  %2398 = vmatpush1.msra.mxu0 0.0
  %2399 = vmatprep.subr.mxu0 0.0
  %2400 = vmatpush1.msra.mxu0 0.0
  %2401 = vmatprep.subr.mxu0 0.0
  %2402 = vmatpush1.msra.mxu0 0.0
  %2403 = vmatprep.subr.mxu0 0.0
  %2404 = vmatpush1.msra.mxu0 0.0
  %2405 = vmatprep.subr.mxu0 0.0
  %2406 = vmatpush1.msra.mxu0 0.0
  %2407 = vmatprep.subr.mxu0 0.0
  %2408 = vmatpush1.msra.mxu0 0.0
  %2409 = vmatprep.mubr.f32.mxu0 0.0
  %2410 = vmatmul.mubr.f32.gmra.mrb[0].mxu0 %v2343
  %v2411 = vpop.f32.mrb[0].mxu0
  %v2412 = vadd.f32 0.0, %v2411
  %v2413 = vpop.f32.mrb[0].mxu0
  %2414 = vdwg.mxu0
  %v2415 = vadd.f32 %v2238, %v2412
  %v2416 = vxor.u32 %v2415, 2147483648
  %v2417 = vmul.f32 %v2416, 1.442695
  %v2418 = vpow.pop %v2417
  %v2419 = vadd.f32 %v2418, 1.0
  %v2420 = vrcp.pop %v2419
  %v2421 = vmul.f32 1.0, %v2420
  %v2422 = vtanh.pop %v2415
  %v2423 = vmul.f32 %v2421, %v2333
  %2425 = vrot.lane.b32.xlu0 %v2422, 64
  %v2426 = vpop.permute.xlu0 %2425
  %v2428 = vmul.f32 %v2421, %v2426
  %2430 = vrot.lane.b32.xlu0 %v2428, 32
  %v2431 = vpop.permute.xlu0 %2430
  %v2433 = vadd.f32 %v2423, %v2431
  %v2434 = vtanh.pop %v2433
  %2436 = vrot.lane.b32.xlu0 %v2434, 64
  %v2437 = vpop.permute.xlu0 %2436
  %v2439 = vmul.f32 %v2421, %v2437
  %2441 = vrot.lane.b32.xlu0 %v2439, 32
  %v2442 = vpop.permute.xlu0 %2441
  %v2443 = vsel %vm176, %v2442, 0
  %2445 = vmatprep.subr.mxu0 0.0
  %2446 = vmatpush1.msra.mxu0 %v2099
  %2447 = vmatprep.subr.mxu0 0.0
  %2448 = vmatpush1.msra.mxu0 %v2100
  %2449 = vmatprep.subr.mxu0 0.0
  %2450 = vmatpush1.msra.mxu0 %v2101
  %2451 = vmatprep.subr.mxu0 0.0
  %2452 = vmatpush1.msra.mxu0 %v2102
  %2453 = vmatprep.subr.mxu0 0.0
  %2454 = vmatpush1.msra.mxu0 0.0
  %2455 = vmatprep.subr.mxu0 0.0
  %2456 = vmatpush1.msra.mxu0 0.0
  %2457 = vmatprep.subr.mxu0 0.0
  %2458 = vmatpush1.msra.mxu0 0.0
  %2459 = vmatprep.subr.mxu0 0.0
  %2460 = vmatpush1.msra.mxu0 0.0
  %2461 = vmatprep.subr.mxu0 0.0
  %2462 = vmatpush1.msra.mxu0 0.0
  %2463 = vmatprep.subr.mxu0 0.0
  %2464 = vmatpush1.msra.mxu0 0.0
  %2465 = vmatprep.subr.mxu0 0.0
  %2466 = vmatpush1.msra.mxu0 0.0
  %2467 = vmatprep.subr.mxu0 0.0
  %2468 = vmatpush1.msra.mxu0 0.0
  %2469 = vmatprep.subr.mxu0 0.0
  %2470 = vmatpush1.msra.mxu0 0.0
  %2471 = vmatprep.subr.mxu0 0.0
  %2472 = vmatpush1.msra.mxu0 0.0
  %2473 = vmatprep.subr.mxu0 0.0
  %2474 = vmatpush1.msra.mxu0 0.0
  %2475 = vmatprep.subr.mxu0 0.0
  %2476 = vmatpush1.msra.mxu0 0.0
  %2477 = vmatprep.subr.mxu0 0.0
  %2478 = vmatpush1.msra.mxu0 0.0
  %2479 = vmatprep.subr.mxu0 0.0
  %2480 = vmatpush1.msra.mxu0 0.0
  %2481 = vmatprep.subr.mxu0 0.0
  %2482 = vmatpush1.msra.mxu0 0.0
  %2483 = vmatprep.subr.mxu0 0.0
  %2484 = vmatpush1.msra.mxu0 0.0
  %2485 = vmatprep.subr.mxu0 0.0
  %2486 = vmatpush1.msra.mxu0 0.0
  %2487 = vmatprep.subr.mxu0 0.0
  %2488 = vmatpush1.msra.mxu0 0.0
  %2489 = vmatprep.subr.mxu0 0.0
  %2490 = vmatpush1.msra.mxu0 0.0
  %2491 = vmatprep.subr.mxu0 0.0
  %2492 = vmatpush1.msra.mxu0 0.0
  %2493 = vmatprep.subr.mxu0 0.0
  %2494 = vmatpush1.msra.mxu0 0.0
  %2495 = vmatprep.subr.mxu0 0.0
  %2496 = vmatpush1.msra.mxu0 0.0
  %2497 = vmatprep.subr.mxu0 0.0
  %2498 = vmatpush1.msra.mxu0 0.0
  %2499 = vmatprep.subr.mxu0 0.0
  %2500 = vmatpush1.msra.mxu0 0.0
  %2501 = vmatprep.subr.mxu0 0.0
  %2502 = vmatpush1.msra.mxu0 0.0
  %2503 = vmatprep.subr.mxu0 0.0
  %2504 = vmatpush1.msra.mxu0 0.0
  %2505 = vmatprep.subr.mxu0 0.0
  %2506 = vmatpush1.msra.mxu0 0.0
  %2507 = vmatprep.subr.mxu0 0.0
  %2508 = vmatpush1.msra.mxu0 0.0
  %2509 = vmatprep.mubr.f32.mxu0 0.0
  %2510 = vmatmul.mubr.f32.gmra.mrb[0].mxu0 %v2443
  %v2511 = vpop.f32.mrb[0].mxu0
  %v2512 = vadd.f32 0.0, %v2511
  %v2513 = vpop.f32.mrb[0].mxu0
  %2514 = vdwg.mxu0
  %v2515 = vadd.f32 %v2239, %v2512
  %v2516 = vxor.u32 %v2515, 2147483648
  %v2517 = vmul.f32 %v2516, 1.442695
  %v2518 = vpow.pop %v2517
  %v2519 = vadd.f32 %v2518, 1.0
  %v2520 = vrcp.pop %v2519
  %v2521 = vmul.f32 1.0, %v2520
  %v2522 = vtanh.pop %v2515
  %v2523 = vmul.f32 %v2521, %v2433
  %2525 = vrot.lane.b32.xlu0 %v2522, 64
  %v2526 = vpop.permute.xlu0 %2525
  %v2528 = vmul.f32 %v2521, %v2526
  %2530 = vrot.lane.b32.xlu0 %v2528, 32
  %v2531 = vpop.permute.xlu0 %2530
  %v2533 = vadd.f32 %v2523, %v2531
  %v2534 = vtanh.pop %v2533
  %2536 = vrot.lane.b32.xlu0 %v2534, 64
  %v2537 = vpop.permute.xlu0 %2536
  %v2539 = vmul.f32 %v2521, %v2537
  %2541 = vrot.lane.b32.xlu0 %v2539, 32
  %v2542 = vpop.permute.xlu0 %2541
  %v2543 = vsel %vm176, %v2542, 0
  %2545 = vmatprep.subr.mxu0 0.0
  %2546 = vmatpush1.msra.mxu0 %v2099
  %2547 = vmatprep.subr.mxu0 0.0
  %2548 = vmatpush1.msra.mxu0 %v2100
  %2549 = vmatprep.subr.mxu0 0.0
  %2550 = vmatpush1.msra.mxu0 %v2101
  %2551 = vmatprep.subr.mxu0 0.0
  %2552 = vmatpush1.msra.mxu0 %v2102
  %2553 = vmatprep.subr.mxu0 0.0
  %2554 = vmatpush1.msra.mxu0 0.0
  %2555 = vmatprep.subr.mxu0 0.0
  %2556 = vmatpush1.msra.mxu0 0.0
  %2557 = vmatprep.subr.mxu0 0.0
  %2558 = vmatpush1.msra.mxu0 0.0
  %2559 = vmatprep.subr.mxu0 0.0
  %2560 = vmatpush1.msra.mxu0 0.0
  %2561 = vmatprep.subr.mxu0 0.0
  %2562 = vmatpush1.msra.mxu0 0.0
  %2563 = vmatprep.subr.mxu0 0.0
  %2564 = vmatpush1.msra.mxu0 0.0
  %2565 = vmatprep.subr.mxu0 0.0
  %2566 = vmatpush1.msra.mxu0 0.0
  %2567 = vmatprep.subr.mxu0 0.0
  %2568 = vmatpush1.msra.mxu0 0.0
  %2569 = vmatprep.subr.mxu0 0.0
  %2570 = vmatpush1.msra.mxu0 0.0
  %2571 = vmatprep.subr.mxu0 0.0
  %2572 = vmatpush1.msra.mxu0 0.0
  %2573 = vmatprep.subr.mxu0 0.0
  %2574 = vmatpush1.msra.mxu0 0.0
  %2575 = vmatprep.subr.mxu0 0.0
  %2576 = vmatpush1.msra.mxu0 0.0
  %2577 = vmatprep.subr.mxu0 0.0
  %2578 = vmatpush1.msra.mxu0 0.0
  %2579 = vmatprep.subr.mxu0 0.0
  %2580 = vmatpush1.msra.mxu0 0.0
  %2581 = vmatprep.subr.mxu0 0.0
  %2582 = vmatpush1.msra.mxu0 0.0
  %2583 = vmatprep.subr.mxu0 0.0
  %2584 = vmatpush1.msra.mxu0 0.0
  %2585 = vmatprep.subr.mxu0 0.0
  %2586 = vmatpush1.msra.mxu0 0.0
  %2587 = vmatprep.subr.mxu0 0.0
  %2588 = vmatpush1.msra.mxu0 0.0
  %2589 = vmatprep.subr.mxu0 0.0
  %2590 = vmatpush1.msra.mxu0 0.0
  %2591 = vmatprep.subr.mxu0 0.0
  %2592 = vmatpush1.msra.mxu0 0.0
  %2593 = vmatprep.subr.mxu0 0.0
  %2594 = vmatpush1.msra.mxu0 0.0
  %2595 = vmatprep.subr.mxu0 0.0
  %2596 = vmatpush1.msra.mxu0 0.0
  %2597 = vmatprep.subr.mxu0 0.0
  %2598 = vmatpush1.msra.mxu0 0.0
  %2599 = vmatprep.subr.mxu0 0.0
  %2600 = vmatpush1.msra.mxu0 0.0
  %2601 = vmatprep.subr.mxu0 0.0
  %2602 = vmatpush1.msra.mxu0 0.0
  %2603 = vmatprep.subr.mxu0 0.0
  %2604 = vmatpush1.msra.mxu0 0.0
  %2605 = vmatprep.subr.mxu0 0.0
  %2606 = vmatpush1.msra.mxu0 0.0
  %2607 = vmatprep.subr.mxu0 0.0
  %2608 = vmatpush1.msra.mxu0 0.0
  %2609 = vmatprep.mubr.f32.mxu0 0.0
  %2610 = vmatmul.mubr.f32.gmra.mrb[0].mxu0 %v2543
  %v2611 = vpop.f32.mrb[0].mxu0
  %v2612 = vadd.f32 0.0, %v2611
  %v2613 = vpop.f32.mrb[0].mxu0
  %2614 = vdwg.mxu0
  %v2615 = vadd.f32 %v2240, %v2612
  %v2616 = vxor.u32 %v2615, 2147483648
  %v2617 = vmul.f32 %v2616, 1.442695
  %v2618 = vpow.pop %v2617
  %v2619 = vadd.f32 %v2618, 1.0
  %v2620 = vrcp.pop %v2619
  %v2621 = vmul.f32 1.0, %v2620
  %v2622 = vtanh.pop %v2615
  %v2623 = vmul.f32 %v2621, %v2533
  %2625 = vrot.lane.b32.xlu0 %v2622, 64
  %v2626 = vpop.permute.xlu0 %2625
  %v2628 = vmul.f32 %v2621, %v2626
  %2630 = vrot.lane.b32.xlu0 %v2628, 32
  %v2631 = vpop.permute.xlu0 %2630
  %v2633 = vadd.f32 %v2623, %v2631
  %v2634 = vtanh.pop %v2633
  %2636 = vrot.lane.b32.xlu0 %v2634, 64
  %v2637 = vpop.permute.xlu0 %2636
  %v2639 = vmul.f32 %v2621, %v2637
  %2641 = vrot.lane.b32.xlu0 %v2639, 32
  %v2642 = vpop.permute.xlu0 %2641
  %v2643 = vsel %vm176, %v2642, 0
  %2645 = vmatprep.subr.mxu0 0.0
  %2646 = vmatpush1.msra.mxu0 %v2099
  %2647 = vmatprep.subr.mxu0 0.0
  %2648 = vmatpush1.msra.mxu0 %v2100
  %2649 = vmatprep.subr.mxu0 0.0
  %2650 = vmatpush1.msra.mxu0 %v2101
  %2651 = vmatprep.subr.mxu0 0.0
  %2652 = vmatpush1.msra.mxu0 %v2102
  %2653 = vmatprep.subr.mxu0 0.0
  %2654 = vmatpush1.msra.mxu0 0.0
  %2655 = vmatprep.subr.mxu0 0.0
  %2656 = vmatpush1.msra.mxu0 0.0
  %2657 = vmatprep.subr.mxu0 0.0
  %2658 = vmatpush1.msra.mxu0 0.0
  %2659 = vmatprep.subr.mxu0 0.0
  %2660 = vmatpush1.msra.mxu0 0.0
  %2661 = vmatprep.subr.mxu0 0.0
  %2662 = vmatpush1.msra.mxu0 0.0
  %2663 = vmatprep.subr.mxu0 0.0
  %2664 = vmatpush1.msra.mxu0 0.0
  %2665 = vmatprep.subr.mxu0 0.0
  %2666 = vmatpush1.msra.mxu0 0.0
  %2667 = vmatprep.subr.mxu0 0.0
  %2668 = vmatpush1.msra.mxu0 0.0
  %2669 = vmatprep.subr.mxu0 0.0
  %2670 = vmatpush1.msra.mxu0 0.0
  %2671 = vmatprep.subr.mxu0 0.0
  %2672 = vmatpush1.msra.mxu0 0.0
  %2673 = vmatprep.subr.mxu0 0.0
  %2674 = vmatpush1.msra.mxu0 0.0
  %2675 = vmatprep.subr.mxu0 0.0
  %2676 = vmatpush1.msra.mxu0 0.0
  %2677 = vmatprep.subr.mxu0 0.0
  %2678 = vmatpush1.msra.mxu0 0.0
  %2679 = vmatprep.subr.mxu0 0.0
  %2680 = vmatpush1.msra.mxu0 0.0
  %2681 = vmatprep.subr.mxu0 0.0
  %2682 = vmatpush1.msra.mxu0 0.0
  %2683 = vmatprep.subr.mxu0 0.0
  %2684 = vmatpush1.msra.mxu0 0.0
  %2685 = vmatprep.subr.mxu0 0.0
  %2686 = vmatpush1.msra.mxu0 0.0
  %2687 = vmatprep.subr.mxu0 0.0
  %2688 = vmatpush1.msra.mxu0 0.0
  %2689 = vmatprep.subr.mxu0 0.0
  %2690 = vmatpush1.msra.mxu0 0.0
  %2691 = vmatprep.subr.mxu0 0.0
  %2692 = vmatpush1.msra.mxu0 0.0
  %2693 = vmatprep.subr.mxu0 0.0
  %2694 = vmatpush1.msra.mxu0 0.0
  %2695 = vmatprep.subr.mxu0 0.0
  %2696 = vmatpush1.msra.mxu0 0.0
  %2697 = vmatprep.subr.mxu0 0.0
  %2698 = vmatpush1.msra.mxu0 0.0
  %2699 = vmatprep.subr.mxu0 0.0
  %2700 = vmatpush1.msra.mxu0 0.0
  %2701 = vmatprep.subr.mxu0 0.0
  %2702 = vmatpush1.msra.mxu0 0.0
  %2703 = vmatprep.subr.mxu0 0.0
  %2704 = vmatpush1.msra.mxu0 0.0
  %2705 = vmatprep.subr.mxu0 0.0
  %2706 = vmatpush1.msra.mxu0 0.0
  %2707 = vmatprep.subr.mxu0 0.0
  %2708 = vmatpush1.msra.mxu0 0.0
  %2709 = vmatprep.mubr.f32.mxu0 0.0
  %2710 = vmatmul.mubr.f32.gmra.mrb[0].mxu0 %v2643
  %v2711 = vpop.f32.mrb[0].mxu0
  %v2712 = vadd.f32 0.0, %v2711
  %v2713 = vpop.f32.mrb[0].mxu0
  %2714 = vdwg.mxu0
  %v2715 = vadd.f32 %v2241, %v2712
  %v2716 = vxor.u32 %v2715, 2147483648
  %v2717 = vmul.f32 %v2716, 1.442695
  %v2718 = vpow.pop %v2717
  %v2719 = vadd.f32 %v2718, 1.0
  %v2720 = vrcp.pop %v2719
  %v2721 = vmul.f32 1.0, %v2720
  %v2722 = vtanh.pop %v2715
  %v2723 = vmul.f32 %v2721, %v2633
  %2725 = vrot.lane.b32.xlu0 %v2722, 64
  %v2726 = vpop.permute.xlu0 %2725
  %v2728 = vmul.f32 %v2721, %v2726
  %2730 = vrot.lane.b32.xlu0 %v2728, 32
  %v2731 = vpop.permute.xlu0 %2730
  %v2733 = vadd.f32 %v2723, %v2731
  %v2734 = vtanh.pop %v2733
  %2736 = vrot.lane.b32.xlu0 %v2734, 64
  %v2737 = vpop.permute.xlu0 %2736
  %v2739 = vmul.f32 %v2721, %v2737
  %2741 = vrot.lane.b32.xlu0 %v2739, 32
  %v2742 = vpop.permute.xlu0 %2741
  %v2743 = vsel %vm176, %v2742, 0
  %2745 = vmatprep.subr.mxu0 0.0
  %2746 = vmatpush1.msra.mxu0 %v2099
  %2747 = vmatprep.subr.mxu0 0.0
  %2748 = vmatpush1.msra.mxu0 %v2100
  %2749 = vmatprep.subr.mxu0 0.0
  %2750 = vmatpush1.msra.mxu0 %v2101
  %2751 = vmatprep.subr.mxu0 0.0
  %2752 = vmatpush1.msra.mxu0 %v2102
  %2753 = vmatprep.subr.mxu0 0.0
  %2754 = vmatpush1.msra.mxu0 0.0
  %2755 = vmatprep.subr.mxu0 0.0
  %2756 = vmatpush1.msra.mxu0 0.0
  %2757 = vmatprep.subr.mxu0 0.0
  %2758 = vmatpush1.msra.mxu0 0.0
  %2759 = vmatprep.subr.mxu0 0.0
  %2760 = vmatpush1.msra.mxu0 0.0
  %2761 = vmatprep.subr.mxu0 0.0
  %2762 = vmatpush1.msra.mxu0 0.0
  %2763 = vmatprep.subr.mxu0 0.0
  %2764 = vmatpush1.msra.mxu0 0.0
  %2765 = vmatprep.subr.mxu0 0.0
  %2766 = vmatpush1.msra.mxu0 0.0
  %2767 = vmatprep.subr.mxu0 0.0
  %2768 = vmatpush1.msra.mxu0 0.0
  %2769 = vmatprep.subr.mxu0 0.0
  %2770 = vmatpush1.msra.mxu0 0.0
  %2771 = vmatprep.subr.mxu0 0.0
  %2772 = vmatpush1.msra.mxu0 0.0
  %2773 = vmatprep.subr.mxu0 0.0
  %2774 = vmatpush1.msra.mxu0 0.0
  %2775 = vmatprep.subr.mxu0 0.0
  %2776 = vmatpush1.msra.mxu0 0.0
  %2777 = vmatprep.subr.mxu0 0.0
  %2778 = vmatpush1.msra.mxu0 0.0
  %2779 = vmatprep.subr.mxu0 0.0
  %2780 = vmatpush1.msra.mxu0 0.0
  %2781 = vmatprep.subr.mxu0 0.0
  %2782 = vmatpush1.msra.mxu0 0.0
  %2783 = vmatprep.subr.mxu0 0.0
  %2784 = vmatpush1.msra.mxu0 0.0
  %2785 = vmatprep.subr.mxu0 0.0
  %2786 = vmatpush1.msra.mxu0 0.0
  %2787 = vmatprep.subr.mxu0 0.0
  %2788 = vmatpush1.msra.mxu0 0.0
  %2789 = vmatprep.subr.mxu0 0.0
  %2790 = vmatpush1.msra.mxu0 0.0
  %2791 = vmatprep.subr.mxu0 0.0
  %2792 = vmatpush1.msra.mxu0 0.0
  %2793 = vmatprep.subr.mxu0 0.0
  %2794 = vmatpush1.msra.mxu0 0.0
  %2795 = vmatprep.subr.mxu0 0.0
  %2796 = vmatpush1.msra.mxu0 0.0
  %2797 = vmatprep.subr.mxu0 0.0
  %2798 = vmatpush1.msra.mxu0 0.0
  %2799 = vmatprep.subr.mxu0 0.0
  %2800 = vmatpush1.msra.mxu0 0.0
  %2801 = vmatprep.subr.mxu0 0.0
  %2802 = vmatpush1.msra.mxu0 0.0
  %2803 = vmatprep.subr.mxu0 0.0
  %2804 = vmatpush1.msra.mxu0 0.0
  %2805 = vmatprep.subr.mxu0 0.0
  %2806 = vmatpush1.msra.mxu0 0.0
  %2807 = vmatprep.subr.mxu0 0.0
  %2808 = vmatpush1.msra.mxu0 0.0
  %2809 = vmatprep.mubr.f32.mxu0 0.0
  %2810 = vmatmul.mubr.f32.gmra.mrb[0].mxu0 %v2743
  %v2811 = vpop.f32.mrb[0].mxu0
  %v2812 = vadd.f32 0.0, %v2811
  %v2813 = vpop.f32.mrb[0].mxu0
  %2814 = vdwg.mxu0
  %v2815 = vadd.f32 %v2242, %v2812
  %v2816 = vxor.u32 %v2815, 2147483648
  %v2817 = vmul.f32 %v2816, 1.442695
  %v2818 = vpow.pop %v2817
  %v2819 = vadd.f32 %v2818, 1.0
  %v2820 = vrcp.pop %v2819
  %v2821 = vmul.f32 1.0, %v2820
  %v2822 = vtanh.pop %v2815
  %v2823 = vmul.f32 %v2821, %v2733
  %2825 = vrot.lane.b32.xlu0 %v2822, 64
  %v2826 = vpop.permute.xlu0 %2825
  %v2828 = vmul.f32 %v2821, %v2826
  %2830 = vrot.lane.b32.xlu0 %v2828, 32
  %v2831 = vpop.permute.xlu0 %2830
  %v2833 = vadd.f32 %v2823, %v2831
  %v2834 = vtanh.pop %v2833
  %2836 = vrot.lane.b32.xlu0 %v2834, 64
  %v2837 = vpop.permute.xlu0 %2836
  %v2839 = vmul.f32 %v2821, %v2837
  %2841 = vrot.lane.b32.xlu0 %v2839, 32
  %v2842 = vpop.permute.xlu0 %2841
  %v2843 = vsel %vm176, %v2842, 0
  %2845 = vmatprep.subr.mxu0 0.0
  %2846 = vmatpush1.msra.mxu0 %v2099
  %2847 = vmatprep.subr.mxu0 0.0
  %2848 = vmatpush1.msra.mxu0 %v2100
  %2849 = vmatprep.subr.mxu0 0.0
  %2850 = vmatpush1.msra.mxu0 %v2101
  %2851 = vmatprep.subr.mxu0 0.0
  %2852 = vmatpush1.msra.mxu0 %v2102
  %2853 = vmatprep.subr.mxu0 0.0
  %2854 = vmatpush1.msra.mxu0 0.0
  %2855 = vmatprep.subr.mxu0 0.0
  %2856 = vmatpush1.msra.mxu0 0.0
  %2857 = vmatprep.subr.mxu0 0.0
  %2858 = vmatpush1.msra.mxu0 0.0
  %2859 = vmatprep.subr.mxu0 0.0
  %2860 = vmatpush1.msra.mxu0 0.0
  %2861 = vmatprep.subr.mxu0 0.0
  %2862 = vmatpush1.msra.mxu0 0.0
  %2863 = vmatprep.subr.mxu0 0.0
  %2864 = vmatpush1.msra.mxu0 0.0
  %2865 = vmatprep.subr.mxu0 0.0
  %2866 = vmatpush1.msra.mxu0 0.0
  %2867 = vmatprep.subr.mxu0 0.0
  %2868 = vmatpush1.msra.mxu0 0.0
  %2869 = vmatprep.subr.mxu0 0.0
  %2870 = vmatpush1.msra.mxu0 0.0
  %2871 = vmatprep.subr.mxu0 0.0
  %2872 = vmatpush1.msra.mxu0 0.0
  %2873 = vmatprep.subr.mxu0 0.0
  %2874 = vmatpush1.msra.mxu0 0.0
  %2875 = vmatprep.subr.mxu0 0.0
  %2876 = vmatpush1.msra.mxu0 0.0
  %2877 = vmatprep.subr.mxu0 0.0
  %2878 = vmatpush1.msra.mxu0 0.0
  %2879 = vmatprep.subr.mxu0 0.0
  %2880 = vmatpush1.msra.mxu0 0.0
  %2881 = vmatprep.subr.mxu0 0.0
  %2882 = vmatpush1.msra.mxu0 0.0
  %2883 = vmatprep.subr.mxu0 0.0
  %2884 = vmatpush1.msra.mxu0 0.0
  %2885 = vmatprep.subr.mxu0 0.0
  %2886 = vmatpush1.msra.mxu0 0.0
  %2887 = vmatprep.subr.mxu0 0.0
  %2888 = vmatpush1.msra.mxu0 0.0
  %2889 = vmatprep.subr.mxu0 0.0
  %2890 = vmatpush1.msra.mxu0 0.0
  %2891 = vmatprep.subr.mxu0 0.0
  %2892 = vmatpush1.msra.mxu0 0.0
  %2893 = vmatprep.subr.mxu0 0.0
  %2894 = vmatpush1.msra.mxu0 0.0
  %2895 = vmatprep.subr.mxu0 0.0
  %2896 = vmatpush1.msra.mxu0 0.0
  %2897 = vmatprep.subr.mxu0 0.0
  %2898 = vmatpush1.msra.mxu0 0.0
  %2899 = vmatprep.subr.mxu0 0.0
  %2900 = vmatpush1.msra.mxu0 0.0
  %2901 = vmatprep.subr.mxu0 0.0
  %2902 = vmatpush1.msra.mxu0 0.0
  %2903 = vmatprep.subr.mxu0 0.0
  %2904 = vmatpush1.msra.mxu0 0.0
  %2905 = vmatprep.subr.mxu0 0.0
  %2906 = vmatpush1.msra.mxu0 0.0
  %2907 = vmatprep.subr.mxu0 0.0
  %2908 = vmatpush1.msra.mxu0 0.0
  %2909 = vmatprep.mubr.f32.mxu0 0.0
  %2910 = vmatmul.mubr.f32.gmra.mrb[0].mxu0 %v2843
  %v2911 = vpop.f32.mrb[0].mxu0
  %v2912 = vadd.f32 0.0, %v2911
  %v2913 = vpop.f32.mrb[0].mxu0
  %2914 = vdwg.mxu0
  %v2915 = vadd.f32 %v2243, %v2912
  %v2916 = vxor.u32 %v2915, 2147483648
  %v2917 = vmul.f32 %v2916, 1.442695
  %v2918 = vpow.pop %v2917
  %v2919 = vadd.f32 %v2918, 1.0
  %v2920 = vrcp.pop %v2919
  %v2921 = vmul.f32 1.0, %v2920
  %v2922 = vtanh.pop %v2915
  %v2923 = vmul.f32 %v2921, %v2833
  %2925 = vrot.lane.b32.xlu0 %v2922, 64
  %v2926 = vpop.permute.xlu0 %2925
  %v2928 = vmul.f32 %v2921, %v2926
  %2930 = vrot.lane.b32.xlu0 %v2928, 32
  %v2931 = vpop.permute.xlu0 %2930
  %v2933 = vadd.f32 %v2923, %v2931
  %v2934 = vtanh.pop %v2933
  %2936 = vrot.lane.b32.xlu0 %v2934, 64
  %v2937 = vpop.permute.xlu0 %2936
  %v2939 = vmul.f32 %v2921, %v2937
  %2941 = vrot.lane.b32.xlu0 %v2939, 32
  %v2942 = vpop.permute.xlu0 %2941
  %v2943 = vsel %vm176, %v2942, 0
  %2945 = vmatprep.subr.mxu0 0.0
  %2946 = vmatpush1.msra.mxu0 %v2099
  %2947 = vmatprep.subr.mxu0 0.0
  %2948 = vmatpush1.msra.mxu0 %v2100
  %2949 = vmatprep.subr.mxu0 0.0
  %2950 = vmatpush1.msra.mxu0 %v2101
  %2951 = vmatprep.subr.mxu0 0.0
  %2952 = vmatpush1.msra.mxu0 %v2102
  %2953 = vmatprep.subr.mxu0 0.0
  %2954 = vmatpush1.msra.mxu0 0.0
  %2955 = vmatprep.subr.mxu0 0.0
  %2956 = vmatpush1.msra.mxu0 0.0
  %2957 = vmatprep.subr.mxu0 0.0
  %2958 = vmatpush1.msra.mxu0 0.0
  %2959 = vmatprep.subr.mxu0 0.0
  %2960 = vmatpush1.msra.mxu0 0.0
  %2961 = vmatprep.subr.mxu0 0.0
  %2962 = vmatpush1.msra.mxu0 0.0
  %2963 = vmatprep.subr.mxu0 0.0
  %2964 = vmatpush1.msra.mxu0 0.0
  %2965 = vmatprep.subr.mxu0 0.0
  %2966 = vmatpush1.msra.mxu0 0.0
  %2967 = vmatprep.subr.mxu0 0.0
  %2968 = vmatpush1.msra.mxu0 0.0
  %2969 = vmatprep.subr.mxu0 0.0
  %2970 = vmatpush1.msra.mxu0 0.0
  %2971 = vmatprep.subr.mxu0 0.0
  %2972 = vmatpush1.msra.mxu0 0.0
  %2973 = vmatprep.subr.mxu0 0.0
  %2974 = vmatpush1.msra.mxu0 0.0
  %2975 = vmatprep.subr.mxu0 0.0
  %2976 = vmatpush1.msra.mxu0 0.0
  %2977 = vmatprep.subr.mxu0 0.0
  %2978 = vmatpush1.msra.mxu0 0.0
  %2979 = vmatprep.subr.mxu0 0.0
  %2980 = vmatpush1.msra.mxu0 0.0
  %2981 = vmatprep.subr.mxu0 0.0
  %2982 = vmatpush1.msra.mxu0 0.0
  %2983 = vmatprep.subr.mxu0 0.0
  %2984 = vmatpush1.msra.mxu0 0.0
  %2985 = vmatprep.subr.mxu0 0.0
  %2986 = vmatpush1.msra.mxu0 0.0
  %2987 = vmatprep.subr.mxu0 0.0
  %2988 = vmatpush1.msra.mxu0 0.0
  %2989 = vmatprep.subr.mxu0 0.0
  %2990 = vmatpush1.msra.mxu0 0.0
  %2991 = vmatprep.subr.mxu0 0.0
  %2992 = vmatpush1.msra.mxu0 0.0
  %2993 = vmatprep.subr.mxu0 0.0
  %2994 = vmatpush1.msra.mxu0 0.0
  %2995 = vmatprep.subr.mxu0 0.0
  %2996 = vmatpush1.msra.mxu0 0.0
  %2997 = vmatprep.subr.mxu0 0.0
  %2998 = vmatpush1.msra.mxu0 0.0
  %2999 = vmatprep.subr.mxu0 0.0
  %3000 = vmatpush1.msra.mxu0 0.0
  %3001 = vmatprep.subr.mxu0 0.0
  %3002 = vmatpush1.msra.mxu0 0.0
  %3003 = vmatprep.subr.mxu0 0.0
  %3004 = vmatpush1.msra.mxu0 0.0
  %3005 = vmatprep.subr.mxu0 0.0
  %3006 = vmatpush1.msra.mxu0 0.0
  %3007 = vmatprep.subr.mxu0 0.0
  %3008 = vmatpush1.msra.mxu0 0.0
  %3009 = vmatprep.mubr.f32.mxu0 0.0
  %3010 = vmatmul.mubr.f32.gmra.mrb[0].mxu0 %v2943
  %v3011 = vpop.f32.mrb[0].mxu0
  %v3012 = vadd.f32 0.0, %v3011
  %v3013 = vpop.f32.mrb[0].mxu0
  %3014 = vdwg.mxu0
  %v3015 = vadd.f32 %v2244, %v3012
  %v3016 = vxor.u32 %v3015, 2147483648
  %v3017 = vmul.f32 %v3016, 1.442695
  %v3018 = vpow.pop %v3017
  %v3019 = vadd.f32 %v3018, 1.0
  %v3020 = vrcp.pop %v3019
  %v3021 = vmul.f32 1.0, %v3020
  %v3022 = vtanh.pop %v3015
  %v3023 = vmul.f32 %v3021, %v2933
  %3025 = vrot.lane.b32.xlu0 %v3022, 64
  %v3026 = vpop.permute.xlu0 %3025
  %v3028 = vmul.f32 %v3021, %v3026
  %3030 = vrot.lane.b32.xlu0 %v3028, 32
  %v3031 = vpop.permute.xlu0 %3030
  %v3033 = vadd.f32 %v3023, %v3031
  %v3034 = vtanh.pop %v3033
  %3036 = vrot.lane.b32.xlu0 %v3034, 64
  %v3037 = vpop.permute.xlu0 %3036
  %v3039 = vmul.f32 %v3021, %v3037
  %3042 = vrot.lane.b32.xlu0 %v3039, 32
  %v3043 = vpop.permute.xlu0 %3042
  %v3045 = vsel %vm29, %v2342, %v3043
  %v3048 = vsel %vm29, %v2442, %v2942
  %v3051 = vsel %vm29, %v2542, %v2842
  %v3054 = vsel %vm29, %v2642, %v2742
  %v3055 = vsel %vm29, %v2742, %v2642
  %v3056 = vsel %vm29, %v2842, %v2542
  %v3057 = vsel %vm29, %v2942, %v2442
  %v3058 = vsel %vm29, %v3043, %v2342
  %v3059 = vld [vmem:[%s1 + $0xc0] sm:$0xff]
  %v3060 = vld [vmem:[%s1 + $0xc8] sm:$0xff]
  %v3061 = vld [vmem:[%s1 + $0xd0] sm:$0xff]
  %v3062 = vld [vmem:[%s1 + $0xd8] sm:$0xff]
  %v3063 = vld [vmem:[%s1 + $0xe0] sm:$0xff]
  %v3064 = vld [vmem:[%s1 + $0xe8] sm:$0xff]
  %v3065 = vld [vmem:[%s1 + $0xf0] sm:$0xff]
  %v3066 = vld [vmem:[%s1 + $0xf8] sm:$0xff]
  %v3067 = vld [vmem:[%s2 + $0x3] sm:$0x1]
  %v3068 = vlaneseq
  %v3069 = vshrl.u32 %v3068, 7
  %v3070 = vsub.s32 0, %v3069
  %v3071 = vrot.slane %v3067, %v3070
  %v3073 = vsel %vm176, %v3045, 0
  %v3076 = vsel %vm176, %v3048, 0
  %v3079 = vsel %vm176, %v3051, 0
  %v3082 = vsel %vm176, %v3054, 0
  %v3085 = vsel %vm176, %v3055, 0
  %v3088 = vsel %vm176, %v3056, 0
  %v3091 = vsel %vm176, %v3057, 0
  %v3094 = vsel %vm176, %v3058, 0
  %3096 = vmatprep.subr.mxu0 0.0
  %3097 = vmatpush1.msra.mxu0 %v3059
  %3098 = vmatprep.subr.mxu0 0.0
  %3099 = vmatpush1.msra.mxu0 %v3060
  %3100 = vmatprep.subr.mxu0 0.0
  %3101 = vmatpush1.msra.mxu0 %v3061
  %3102 = vmatprep.subr.mxu0 0.0
  %3103 = vmatpush1.msra.mxu0 %v3062
  %3104 = vmatprep.subr.mxu0 0.0
  %3105 = vmatpush1.msra.mxu0 0.0
  %3106 = vmatprep.subr.mxu0 0.0
  %3107 = vmatpush1.msra.mxu0 0.0
  %3108 = vmatprep.subr.mxu0 0.0
  %3109 = vmatpush1.msra.mxu0 0.0
  %3110 = vmatprep.subr.mxu0 0.0
  %3111 = vmatpush1.msra.mxu0 0.0
  %3112 = vmatprep.subr.mxu0 0.0
  %3113 = vmatpush1.msra.mxu0 0.0
  %3114 = vmatprep.subr.mxu0 0.0
  %3115 = vmatpush1.msra.mxu0 0.0
  %3116 = vmatprep.subr.mxu0 0.0
  %3117 = vmatpush1.msra.mxu0 0.0
  %3118 = vmatprep.subr.mxu0 0.0
  %3119 = vmatpush1.msra.mxu0 0.0
  %3120 = vmatprep.subr.mxu0 0.0
  %3121 = vmatpush1.msra.mxu0 0.0
  %3122 = vmatprep.subr.mxu0 0.0
  %3123 = vmatpush1.msra.mxu0 0.0
  %3124 = vmatprep.subr.mxu0 0.0
  %3125 = vmatpush1.msra.mxu0 0.0
  %3126 = vmatprep.subr.mxu0 0.0
  %3127 = vmatpush1.msra.mxu0 0.0
  %3128 = vmatprep.subr.mxu0 0.0
  %3129 = vmatpush1.msra.mxu0 0.0
  %3130 = vmatprep.subr.mxu0 0.0
  %3131 = vmatpush1.msra.mxu0 0.0
  %3132 = vmatprep.subr.mxu0 0.0
  %3133 = vmatpush1.msra.mxu0 0.0
  %3134 = vmatprep.subr.mxu0 0.0
  %3135 = vmatpush1.msra.mxu0 0.0
  %3136 = vmatprep.subr.mxu0 0.0
  %3137 = vmatpush1.msra.mxu0 0.0
  %3138 = vmatprep.subr.mxu0 0.0
  %3139 = vmatpush1.msra.mxu0 0.0
  %3140 = vmatprep.subr.mxu0 0.0
  %3141 = vmatpush1.msra.mxu0 0.0
  %3142 = vmatprep.subr.mxu0 0.0
  %3143 = vmatpush1.msra.mxu0 0.0
  %3144 = vmatprep.subr.mxu0 0.0
  %3145 = vmatpush1.msra.mxu0 0.0
  %3146 = vmatprep.subr.mxu0 0.0
  %3147 = vmatpush1.msra.mxu0 0.0
  %3148 = vmatprep.subr.mxu0 0.0
  %3149 = vmatpush1.msra.mxu0 0.0
  %3150 = vmatprep.subr.mxu0 0.0
  %3151 = vmatpush1.msra.mxu0 0.0
  %3152 = vmatprep.subr.mxu0 0.0
  %3153 = vmatpush1.msra.mxu0 0.0
  %3154 = vmatprep.subr.mxu0 0.0
  %3155 = vmatpush1.msra.mxu0 0.0
  %3156 = vmatprep.subr.mxu0 0.0
  %3157 = vmatpush1.msra.mxu0 0.0
  %3158 = vmatprep.subr.mxu0 0.0
  %3159 = vmatpush1.msra.mxu0 0.0
  %3160 = vmatprep.mubr.f32.mxu0 0.0
  %3161 = vmatmul.mubr.f32.gmra.mrb[0].mxu0 %v3073
  %v3162 = vpop.f32.mrb[0].mxu0
  %v3163 = vadd.f32 %v3071, %v3162
  %v3164 = vpop.f32.mrb[0].mxu0
  %3165 = vmatprep.mubr.f32.mxu0 0.0
  %3166 = vmatmul.mubr.f32.gmra.mrb[0].mxu0 %v3076
  %v3167 = vpop.f32.mrb[0].mxu0
  %v3168 = vadd.f32 %v3071, %v3167
  %v3169 = vpop.f32.mrb[0].mxu0
  %3170 = vmatprep.mubr.f32.mxu0 0.0
  %3171 = vmatmul.mubr.f32.gmra.mrb[0].mxu0 %v3079
  %v3172 = vpop.f32.mrb[0].mxu0
  %v3173 = vadd.f32 %v3071, %v3172
  %v3174 = vpop.f32.mrb[0].mxu0
  %3175 = vmatprep.mubr.f32.mxu0 0.0
  %3176 = vmatmul.mubr.f32.gmra.mrb[0].mxu0 %v3082
  %v3177 = vpop.f32.mrb[0].mxu0
  %v3178 = vadd.f32 %v3071, %v3177
  %v3179 = vpop.f32.mrb[0].mxu0
  %3180 = vmatprep.mubr.f32.mxu0 0.0
  %3181 = vmatmul.mubr.f32.gmra.mrb[0].mxu0 %v3085
  %v3182 = vpop.f32.mrb[0].mxu0
  %v3183 = vadd.f32 %v3071, %v3182
  %v3184 = vpop.f32.mrb[0].mxu0
  %3185 = vmatprep.mubr.f32.mxu0 0.0
  %3186 = vmatmul.mubr.f32.gmra.mrb[0].mxu0 %v3088
  %v3187 = vpop.f32.mrb[0].mxu0
  %v3188 = vadd.f32 %v3071, %v3187
  %v3189 = vpop.f32.mrb[0].mxu0
  %3190 = vmatprep.mubr.f32.mxu0 0.0
  %3191 = vmatmul.mubr.f32.gmra.mrb[0].mxu0 %v3091
  %v3192 = vpop.f32.mrb[0].mxu0
  %v3193 = vadd.f32 %v3071, %v3192
  %v3194 = vpop.f32.mrb[0].mxu0
  %3195 = vmatprep.mubr.f32.mxu0 0.0
  %3196 = vmatmul.mubr.f32.gmra.mrb[0].mxu0 %v3094
  %v3197 = vpop.f32.mrb[0].mxu0
  %v3198 = vadd.f32 %v3071, %v3197
  %v3199 = vpop.f32.mrb[0].mxu0
  %3200 = vdwg.mxu0
  %v3201 = vsel %vm28, %v3163, %v3198
  %v3202 = vsel %vm28, %v3168, %v3193
  %v3203 = vsel %vm28, %v3173, %v3188
  %v3204 = vsel %vm28, %v3178, %v3183
  %v3205 = vsel %vm28, %v3183, %v3178
  %v3206 = vsel %vm28, %v3188, %v3173
  %v3207 = vsel %vm28, %v3193, %v3168
  %v3208 = vsel %vm28, %v3198, %v3163
  %3209 = vmatprep.subr.mxu0 0.0
  %3210 = vmatpush1.msra.mxu0 %v3063
  %3211 = vmatprep.subr.mxu0 0.0
  %3212 = vmatpush1.msra.mxu0 %v3064
  %3213 = vmatprep.subr.mxu0 0.0
  %3214 = vmatpush1.msra.mxu0 %v3065
  %3215 = vmatprep.subr.mxu0 0.0
  %3216 = vmatpush1.msra.mxu0 %v3066
  %3217 = vmatprep.subr.mxu0 0.0
  %3218 = vmatpush1.msra.mxu0 0.0
  %3219 = vmatprep.subr.mxu0 0.0
  %3220 = vmatpush1.msra.mxu0 0.0
  %3221 = vmatprep.subr.mxu0 0.0
  %3222 = vmatpush1.msra.mxu0 0.0
  %3223 = vmatprep.subr.mxu0 0.0
  %3224 = vmatpush1.msra.mxu0 0.0
  %3225 = vmatprep.subr.mxu0 0.0
  %3226 = vmatpush1.msra.mxu0 0.0
  %3227 = vmatprep.subr.mxu0 0.0
  %3228 = vmatpush1.msra.mxu0 0.0
  %3229 = vmatprep.subr.mxu0 0.0
  %3230 = vmatpush1.msra.mxu0 0.0
  %3231 = vmatprep.subr.mxu0 0.0
  %3232 = vmatpush1.msra.mxu0 0.0
  %3233 = vmatprep.subr.mxu0 0.0
  %3234 = vmatpush1.msra.mxu0 0.0
  %3235 = vmatprep.subr.mxu0 0.0
  %3236 = vmatpush1.msra.mxu0 0.0
  %3237 = vmatprep.subr.mxu0 0.0
  %3238 = vmatpush1.msra.mxu0 0.0
  %3239 = vmatprep.subr.mxu0 0.0
  %3240 = vmatpush1.msra.mxu0 0.0
  %3241 = vmatprep.subr.mxu0 0.0
  %3242 = vmatpush1.msra.mxu0 0.0
  %3243 = vmatprep.subr.mxu0 0.0
  %3244 = vmatpush1.msra.mxu0 0.0
  %3245 = vmatprep.subr.mxu0 0.0
  %3246 = vmatpush1.msra.mxu0 0.0
  %3247 = vmatprep.subr.mxu0 0.0
  %3248 = vmatpush1.msra.mxu0 0.0
  %3249 = vmatprep.subr.mxu0 0.0
  %3250 = vmatpush1.msra.mxu0 0.0
  %3251 = vmatprep.subr.mxu0 0.0
  %3252 = vmatpush1.msra.mxu0 0.0
  %3253 = vmatprep.subr.mxu0 0.0
  %3254 = vmatpush1.msra.mxu0 0.0
  %3255 = vmatprep.subr.mxu0 0.0
  %3256 = vmatpush1.msra.mxu0 0.0
  %3257 = vmatprep.subr.mxu0 0.0
  %3258 = vmatpush1.msra.mxu0 0.0
  %3259 = vmatprep.subr.mxu0 0.0
  %3260 = vmatpush1.msra.mxu0 0.0
  %3261 = vmatprep.subr.mxu0 0.0
  %3262 = vmatpush1.msra.mxu0 0.0
  %3263 = vmatprep.subr.mxu0 0.0
  %3264 = vmatpush1.msra.mxu0 0.0
  %3265 = vmatprep.subr.mxu0 0.0
  %3266 = vmatpush1.msra.mxu0 0.0
  %3267 = vmatprep.subr.mxu0 0.0
  %3268 = vmatpush1.msra.mxu0 0.0
  %3269 = vmatprep.subr.mxu0 0.0
  %3270 = vmatpush1.msra.mxu0 0.0
  %3271 = vmatprep.subr.mxu0 0.0
  %3272 = vmatpush1.msra.mxu0 0.0
  %3273 = vmatprep.mubr.f32.mxu0 0.0
  %3274 = vmatmul.mubr.f32.gmra.mrb[0].mxu0 %v315
  %v3275 = vpop.f32.mrb[0].mxu0
  %v3276 = vadd.f32 0.0, %v3275
  %v3277 = vpop.f32.mrb[0].mxu0
  %3278 = vdwg.mxu0
  %v3279 = vadd.f32 %v3201, %v3276
  %v3280 = vxor.u32 %v3279, 2147483648
  %v3281 = vmul.f32 %v3280, 1.442695
  %v3282 = vpow.pop %v3281
  %v3283 = vadd.f32 %v3282, 1.0
  %v3284 = vrcp.pop %v3283
  %v3285 = vmul.f32 1.0, %v3284
  %v3286 = vtanh.pop %v3279
  %v3287 = vmul.f32 %v3285, 0.0
  %3289 = vrot.lane.b32.xlu0 %v3286, 64
  %v3290 = vpop.permute.xlu0 %3289
  %v3292 = vmul.f32 %v3285, %v3290
  %3294 = vrot.lane.b32.xlu0 %v3292, 32
  %v3295 = vpop.permute.xlu0 %3294
  %v3297 = vadd.f32 %v3287, %v3295
  %v3298 = vtanh.pop %v3297
  %3300 = vrot.lane.b32.xlu0 %v3298, 64
  %v3301 = vpop.permute.xlu0 %3300
  %v3303 = vmul.f32 %v3285, %v3301
  %3305 = vrot.lane.b32.xlu0 %v3303, 32
  %v3306 = vpop.permute.xlu0 %3305
  %v3307 = vsel %vm176, %v3306, 0
  %3309 = vmatprep.subr.mxu0 0.0
  %3310 = vmatpush1.msra.mxu0 %v3063
  %3311 = vmatprep.subr.mxu0 0.0
  %3312 = vmatpush1.msra.mxu0 %v3064
  %3313 = vmatprep.subr.mxu0 0.0
  %3314 = vmatpush1.msra.mxu0 %v3065
  %3315 = vmatprep.subr.mxu0 0.0
  %3316 = vmatpush1.msra.mxu0 %v3066
  %3317 = vmatprep.subr.mxu0 0.0
  %3318 = vmatpush1.msra.mxu0 0.0
  %3319 = vmatprep.subr.mxu0 0.0
  %3320 = vmatpush1.msra.mxu0 0.0
  %3321 = vmatprep.subr.mxu0 0.0
  %3322 = vmatpush1.msra.mxu0 0.0
  %3323 = vmatprep.subr.mxu0 0.0
  %3324 = vmatpush1.msra.mxu0 0.0
  %3325 = vmatprep.subr.mxu0 0.0
  %3326 = vmatpush1.msra.mxu0 0.0
  %3327 = vmatprep.subr.mxu0 0.0
  %3328 = vmatpush1.msra.mxu0 0.0
  %3329 = vmatprep.subr.mxu0 0.0
  %3330 = vmatpush1.msra.mxu0 0.0
  %3331 = vmatprep.subr.mxu0 0.0
  %3332 = vmatpush1.msra.mxu0 0.0
  %3333 = vmatprep.subr.mxu0 0.0
  %3334 = vmatpush1.msra.mxu0 0.0
  %3335 = vmatprep.subr.mxu0 0.0
  %3336 = vmatpush1.msra.mxu0 0.0
  %3337 = vmatprep.subr.mxu0 0.0
  %3338 = vmatpush1.msra.mxu0 0.0
  %3339 = vmatprep.subr.mxu0 0.0
  %3340 = vmatpush1.msra.mxu0 0.0
  %3341 = vmatprep.subr.mxu0 0.0
  %3342 = vmatpush1.msra.mxu0 0.0
  %3343 = vmatprep.subr.mxu0 0.0
  %3344 = vmatpush1.msra.mxu0 0.0
  %3345 = vmatprep.subr.mxu0 0.0
  %3346 = vmatpush1.msra.mxu0 0.0
  %3347 = vmatprep.subr.mxu0 0.0
  %3348 = vmatpush1.msra.mxu0 0.0
  %3349 = vmatprep.subr.mxu0 0.0
  %3350 = vmatpush1.msra.mxu0 0.0
  %3351 = vmatprep.subr.mxu0 0.0
  %3352 = vmatpush1.msra.mxu0 0.0
  %3353 = vmatprep.subr.mxu0 0.0
  %3354 = vmatpush1.msra.mxu0 0.0
  %3355 = vmatprep.subr.mxu0 0.0
  %3356 = vmatpush1.msra.mxu0 0.0
  %3357 = vmatprep.subr.mxu0 0.0
  %3358 = vmatpush1.msra.mxu0 0.0
  %3359 = vmatprep.subr.mxu0 0.0
  %3360 = vmatpush1.msra.mxu0 0.0
  %3361 = vmatprep.subr.mxu0 0.0
  %3362 = vmatpush1.msra.mxu0 0.0
  %3363 = vmatprep.subr.mxu0 0.0
  %3364 = vmatpush1.msra.mxu0 0.0
  %3365 = vmatprep.subr.mxu0 0.0
  %3366 = vmatpush1.msra.mxu0 0.0
  %3367 = vmatprep.subr.mxu0 0.0
  %3368 = vmatpush1.msra.mxu0 0.0
  %3369 = vmatprep.subr.mxu0 0.0
  %3370 = vmatpush1.msra.mxu0 0.0
  %3371 = vmatprep.subr.mxu0 0.0
  %3372 = vmatpush1.msra.mxu0 0.0
  %3373 = vmatprep.mubr.f32.mxu0 0.0
  %3374 = vmatmul.mubr.f32.gmra.mrb[0].mxu0 %v3307
  %v3375 = vpop.f32.mrb[0].mxu0
  %v3376 = vadd.f32 0.0, %v3375
  %v3377 = vpop.f32.mrb[0].mxu0
  %3378 = vdwg.mxu0
  %v3379 = vadd.f32 %v3202, %v3376
  %v3380 = vxor.u32 %v3379, 2147483648
  %v3381 = vmul.f32 %v3380, 1.442695
  %v3382 = vpow.pop %v3381
  %v3383 = vadd.f32 %v3382, 1.0
  %v3384 = vrcp.pop %v3383
  %v3385 = vmul.f32 1.0, %v3384
  %v3386 = vtanh.pop %v3379
  %v3387 = vmul.f32 %v3385, %v3297
  %3389 = vrot.lane.b32.xlu0 %v3386, 64
  %v3390 = vpop.permute.xlu0 %3389
  %v3392 = vmul.f32 %v3385, %v3390
  %3394 = vrot.lane.b32.xlu0 %v3392, 32
  %v3395 = vpop.permute.xlu0 %3394
  %v3397 = vadd.f32 %v3387, %v3395
  %v3398 = vtanh.pop %v3397
  %3400 = vrot.lane.b32.xlu0 %v3398, 64
  %v3401 = vpop.permute.xlu0 %3400
  %v3403 = vmul.f32 %v3385, %v3401
  %3405 = vrot.lane.b32.xlu0 %v3403, 32
  %v3406 = vpop.permute.xlu0 %3405
  %v3407 = vsel %vm176, %v3406, 0
  %3409 = vmatprep.subr.mxu0 0.0
  %3410 = vmatpush1.msra.mxu0 %v3063
  %3411 = vmatprep.subr.mxu0 0.0
  %3412 = vmatpush1.msra.mxu0 %v3064
  %3413 = vmatprep.subr.mxu0 0.0
  %3414 = vmatpush1.msra.mxu0 %v3065
  %3415 = vmatprep.subr.mxu0 0.0
  %3416 = vmatpush1.msra.mxu0 %v3066
  %3417 = vmatprep.subr.mxu0 0.0
  %3418 = vmatpush1.msra.mxu0 0.0
  %3419 = vmatprep.subr.mxu0 0.0
  %3420 = vmatpush1.msra.mxu0 0.0
  %3421 = vmatprep.subr.mxu0 0.0
  %3422 = vmatpush1.msra.mxu0 0.0
  %3423 = vmatprep.subr.mxu0 0.0
  %3424 = vmatpush1.msra.mxu0 0.0
  %3425 = vmatprep.subr.mxu0 0.0
  %3426 = vmatpush1.msra.mxu0 0.0
  %3427 = vmatprep.subr.mxu0 0.0
  %3428 = vmatpush1.msra.mxu0 0.0
  %3429 = vmatprep.subr.mxu0 0.0
  %3430 = vmatpush1.msra.mxu0 0.0
  %3431 = vmatprep.subr.mxu0 0.0
  %3432 = vmatpush1.msra.mxu0 0.0
  %3433 = vmatprep.subr.mxu0 0.0
  %3434 = vmatpush1.msra.mxu0 0.0
  %3435 = vmatprep.subr.mxu0 0.0
  %3436 = vmatpush1.msra.mxu0 0.0
  %3437 = vmatprep.subr.mxu0 0.0
  %3438 = vmatpush1.msra.mxu0 0.0
  %3439 = vmatprep.subr.mxu0 0.0
  %3440 = vmatpush1.msra.mxu0 0.0
  %3441 = vmatprep.subr.mxu0 0.0
  %3442 = vmatpush1.msra.mxu0 0.0
  %3443 = vmatprep.subr.mxu0 0.0
  %3444 = vmatpush1.msra.mxu0 0.0
  %3445 = vmatprep.subr.mxu0 0.0
  %3446 = vmatpush1.msra.mxu0 0.0
  %3447 = vmatprep.subr.mxu0 0.0
  %3448 = vmatpush1.msra.mxu0 0.0
  %3449 = vmatprep.subr.mxu0 0.0
  %3450 = vmatpush1.msra.mxu0 0.0
  %3451 = vmatprep.subr.mxu0 0.0
  %3452 = vmatpush1.msra.mxu0 0.0
  %3453 = vmatprep.subr.mxu0 0.0
  %3454 = vmatpush1.msra.mxu0 0.0
  %3455 = vmatprep.subr.mxu0 0.0
  %3456 = vmatpush1.msra.mxu0 0.0
  %3457 = vmatprep.subr.mxu0 0.0
  %3458 = vmatpush1.msra.mxu0 0.0
  %3459 = vmatprep.subr.mxu0 0.0
  %3460 = vmatpush1.msra.mxu0 0.0
  %3461 = vmatprep.subr.mxu0 0.0
  %3462 = vmatpush1.msra.mxu0 0.0
  %3463 = vmatprep.subr.mxu0 0.0
  %3464 = vmatpush1.msra.mxu0 0.0
  %3465 = vmatprep.subr.mxu0 0.0
  %3466 = vmatpush1.msra.mxu0 0.0
  %3467 = vmatprep.subr.mxu0 0.0
  %3468 = vmatpush1.msra.mxu0 0.0
  %3469 = vmatprep.subr.mxu0 0.0
  %3470 = vmatpush1.msra.mxu0 0.0
  %3471 = vmatprep.subr.mxu0 0.0
  %3472 = vmatpush1.msra.mxu0 0.0
  %3473 = vmatprep.mubr.f32.mxu0 0.0
  %3474 = vmatmul.mubr.f32.gmra.mrb[0].mxu0 %v3407
  %v3475 = vpop.f32.mrb[0].mxu0
  %v3476 = vadd.f32 0.0, %v3475
  %v3477 = vpop.f32.mrb[0].mxu0
  %3478 = vdwg.mxu0
  %v3479 = vadd.f32 %v3203, %v3476
  %v3480 = vxor.u32 %v3479, 2147483648
  %v3481 = vmul.f32 %v3480, 1.442695
  %v3482 = vpow.pop %v3481
  %v3483 = vadd.f32 %v3482, 1.0
  %v3484 = vrcp.pop %v3483
  %v3485 = vmul.f32 1.0, %v3484
  %v3486 = vtanh.pop %v3479
  %v3487 = vmul.f32 %v3485, %v3397
  %3489 = vrot.lane.b32.xlu0 %v3486, 64
  %v3490 = vpop.permute.xlu0 %3489
  %v3492 = vmul.f32 %v3485, %v3490
  %3494 = vrot.lane.b32.xlu0 %v3492, 32
  %v3495 = vpop.permute.xlu0 %3494
  %v3497 = vadd.f32 %v3487, %v3495
  %v3498 = vtanh.pop %v3497
  %3500 = vrot.lane.b32.xlu0 %v3498, 64
  %v3501 = vpop.permute.xlu0 %3500
  %v3503 = vmul.f32 %v3485, %v3501
  %3505 = vrot.lane.b32.xlu0 %v3503, 32
  %v3506 = vpop.permute.xlu0 %3505
  %v3507 = vsel %vm176, %v3506, 0
  %3509 = vmatprep.subr.mxu0 0.0
  %3510 = vmatpush1.msra.mxu0 %v3063
  %3511 = vmatprep.subr.mxu0 0.0
  %3512 = vmatpush1.msra.mxu0 %v3064
  %3513 = vmatprep.subr.mxu0 0.0
  %3514 = vmatpush1.msra.mxu0 %v3065
  %3515 = vmatprep.subr.mxu0 0.0
  %3516 = vmatpush1.msra.mxu0 %v3066
  %3517 = vmatprep.subr.mxu0 0.0
  %3518 = vmatpush1.msra.mxu0 0.0
  %3519 = vmatprep.subr.mxu0 0.0
  %3520 = vmatpush1.msra.mxu0 0.0
  %3521 = vmatprep.subr.mxu0 0.0
  %3522 = vmatpush1.msra.mxu0 0.0
  %3523 = vmatprep.subr.mxu0 0.0
  %3524 = vmatpush1.msra.mxu0 0.0
  %3525 = vmatprep.subr.mxu0 0.0
  %3526 = vmatpush1.msra.mxu0 0.0
  %3527 = vmatprep.subr.mxu0 0.0
  %3528 = vmatpush1.msra.mxu0 0.0
  %3529 = vmatprep.subr.mxu0 0.0
  %3530 = vmatpush1.msra.mxu0 0.0
  %3531 = vmatprep.subr.mxu0 0.0
  %3532 = vmatpush1.msra.mxu0 0.0
  %3533 = vmatprep.subr.mxu0 0.0
  %3534 = vmatpush1.msra.mxu0 0.0
  %3535 = vmatprep.subr.mxu0 0.0
  %3536 = vmatpush1.msra.mxu0 0.0
  %3537 = vmatprep.subr.mxu0 0.0
  %3538 = vmatpush1.msra.mxu0 0.0
  %3539 = vmatprep.subr.mxu0 0.0
  %3540 = vmatpush1.msra.mxu0 0.0
  %3541 = vmatprep.subr.mxu0 0.0
  %3542 = vmatpush1.msra.mxu0 0.0
  %3543 = vmatprep.subr.mxu0 0.0
  %3544 = vmatpush1.msra.mxu0 0.0
  %3545 = vmatprep.subr.mxu0 0.0
  %3546 = vmatpush1.msra.mxu0 0.0
  %3547 = vmatprep.subr.mxu0 0.0
  %3548 = vmatpush1.msra.mxu0 0.0
  %3549 = vmatprep.subr.mxu0 0.0
  %3550 = vmatpush1.msra.mxu0 0.0
  %3551 = vmatprep.subr.mxu0 0.0
  %3552 = vmatpush1.msra.mxu0 0.0
  %3553 = vmatprep.subr.mxu0 0.0
  %3554 = vmatpush1.msra.mxu0 0.0
  %3555 = vmatprep.subr.mxu0 0.0
  %3556 = vmatpush1.msra.mxu0 0.0
  %3557 = vmatprep.subr.mxu0 0.0
  %3558 = vmatpush1.msra.mxu0 0.0
  %3559 = vmatprep.subr.mxu0 0.0
  %3560 = vmatpush1.msra.mxu0 0.0
  %3561 = vmatprep.subr.mxu0 0.0
  %3562 = vmatpush1.msra.mxu0 0.0
  %3563 = vmatprep.subr.mxu0 0.0
  %3564 = vmatpush1.msra.mxu0 0.0
  %3565 = vmatprep.subr.mxu0 0.0
  %3566 = vmatpush1.msra.mxu0 0.0
  %3567 = vmatprep.subr.mxu0 0.0
  %3568 = vmatpush1.msra.mxu0 0.0
  %3569 = vmatprep.subr.mxu0 0.0
  %3570 = vmatpush1.msra.mxu0 0.0
  %3571 = vmatprep.subr.mxu0 0.0
  %3572 = vmatpush1.msra.mxu0 0.0
  %3573 = vmatprep.mubr.f32.mxu0 0.0
  %3574 = vmatmul.mubr.f32.gmra.mrb[0].mxu0 %v3507
  %v3575 = vpop.f32.mrb[0].mxu0
  %v3576 = vadd.f32 0.0, %v3575
  %v3577 = vpop.f32.mrb[0].mxu0
  %3578 = vdwg.mxu0
  %v3579 = vadd.f32 %v3204, %v3576
  %v3580 = vxor.u32 %v3579, 2147483648
  %v3581 = vmul.f32 %v3580, 1.442695
  %v3582 = vpow.pop %v3581
  %v3583 = vadd.f32 %v3582, 1.0
  %v3584 = vrcp.pop %v3583
  %v3585 = vmul.f32 1.0, %v3584
  %v3586 = vtanh.pop %v3579
  %v3587 = vmul.f32 %v3585, %v3497
  %3589 = vrot.lane.b32.xlu0 %v3586, 64
  %v3590 = vpop.permute.xlu0 %3589
  %v3592 = vmul.f32 %v3585, %v3590
  %3594 = vrot.lane.b32.xlu0 %v3592, 32
  %v3595 = vpop.permute.xlu0 %3594
  %v3597 = vadd.f32 %v3587, %v3595
  %v3598 = vtanh.pop %v3597
  %3600 = vrot.lane.b32.xlu0 %v3598, 64
  %v3601 = vpop.permute.xlu0 %3600
  %v3603 = vmul.f32 %v3585, %v3601
  %3605 = vrot.lane.b32.xlu0 %v3603, 32
  %v3606 = vpop.permute.xlu0 %3605
  %v3607 = vsel %vm176, %v3606, 0
  %3609 = vmatprep.subr.mxu0 0.0
  %3610 = vmatpush1.msra.mxu0 %v3063
  %3611 = vmatprep.subr.mxu0 0.0
  %3612 = vmatpush1.msra.mxu0 %v3064
  %3613 = vmatprep.subr.mxu0 0.0
  %3614 = vmatpush1.msra.mxu0 %v3065
  %3615 = vmatprep.subr.mxu0 0.0
  %3616 = vmatpush1.msra.mxu0 %v3066
  %3617 = vmatprep.subr.mxu0 0.0
  %3618 = vmatpush1.msra.mxu0 0.0
  %3619 = vmatprep.subr.mxu0 0.0
  %3620 = vmatpush1.msra.mxu0 0.0
  %3621 = vmatprep.subr.mxu0 0.0
  %3622 = vmatpush1.msra.mxu0 0.0
  %3623 = vmatprep.subr.mxu0 0.0
  %3624 = vmatpush1.msra.mxu0 0.0
  %3625 = vmatprep.subr.mxu0 0.0
  %3626 = vmatpush1.msra.mxu0 0.0
  %3627 = vmatprep.subr.mxu0 0.0
  %3628 = vmatpush1.msra.mxu0 0.0
  %3629 = vmatprep.subr.mxu0 0.0
  %3630 = vmatpush1.msra.mxu0 0.0
  %3631 = vmatprep.subr.mxu0 0.0
  %3632 = vmatpush1.msra.mxu0 0.0
  %3633 = vmatprep.subr.mxu0 0.0
  %3634 = vmatpush1.msra.mxu0 0.0
  %3635 = vmatprep.subr.mxu0 0.0
  %3636 = vmatpush1.msra.mxu0 0.0
  %3637 = vmatprep.subr.mxu0 0.0
  %3638 = vmatpush1.msra.mxu0 0.0
  %3639 = vmatprep.subr.mxu0 0.0
  %3640 = vmatpush1.msra.mxu0 0.0
  %3641 = vmatprep.subr.mxu0 0.0
  %3642 = vmatpush1.msra.mxu0 0.0
  %3643 = vmatprep.subr.mxu0 0.0
  %3644 = vmatpush1.msra.mxu0 0.0
  %3645 = vmatprep.subr.mxu0 0.0
  %3646 = vmatpush1.msra.mxu0 0.0
  %3647 = vmatprep.subr.mxu0 0.0
  %3648 = vmatpush1.msra.mxu0 0.0
  %3649 = vmatprep.subr.mxu0 0.0
  %3650 = vmatpush1.msra.mxu0 0.0
  %3651 = vmatprep.subr.mxu0 0.0
  %3652 = vmatpush1.msra.mxu0 0.0
  %3653 = vmatprep.subr.mxu0 0.0
  %3654 = vmatpush1.msra.mxu0 0.0
  %3655 = vmatprep.subr.mxu0 0.0
  %3656 = vmatpush1.msra.mxu0 0.0
  %3657 = vmatprep.subr.mxu0 0.0
  %3658 = vmatpush1.msra.mxu0 0.0
  %3659 = vmatprep.subr.mxu0 0.0
  %3660 = vmatpush1.msra.mxu0 0.0
  %3661 = vmatprep.subr.mxu0 0.0
  %3662 = vmatpush1.msra.mxu0 0.0
  %3663 = vmatprep.subr.mxu0 0.0
  %3664 = vmatpush1.msra.mxu0 0.0
  %3665 = vmatprep.subr.mxu0 0.0
  %3666 = vmatpush1.msra.mxu0 0.0
  %3667 = vmatprep.subr.mxu0 0.0
  %3668 = vmatpush1.msra.mxu0 0.0
  %3669 = vmatprep.subr.mxu0 0.0
  %3670 = vmatpush1.msra.mxu0 0.0
  %3671 = vmatprep.subr.mxu0 0.0
  %3672 = vmatpush1.msra.mxu0 0.0
  %3673 = vmatprep.mubr.f32.mxu0 0.0
  %3674 = vmatmul.mubr.f32.gmra.mrb[0].mxu0 %v3607
  %v3675 = vpop.f32.mrb[0].mxu0
  %v3676 = vadd.f32 0.0, %v3675
  %v3677 = vpop.f32.mrb[0].mxu0
  %3678 = vdwg.mxu0
  %v3679 = vadd.f32 %v3205, %v3676
  %v3680 = vxor.u32 %v3679, 2147483648
  %v3681 = vmul.f32 %v3680, 1.442695
  %v3682 = vpow.pop %v3681
  %v3683 = vadd.f32 %v3682, 1.0
  %v3684 = vrcp.pop %v3683
  %v3685 = vmul.f32 1.0, %v3684
  %v3686 = vtanh.pop %v3679
  %v3687 = vmul.f32 %v3685, %v3597
  %3689 = vrot.lane.b32.xlu0 %v3686, 64
  %v3690 = vpop.permute.xlu0 %3689
  %v3692 = vmul.f32 %v3685, %v3690
  %3694 = vrot.lane.b32.xlu0 %v3692, 32
  %v3695 = vpop.permute.xlu0 %3694
  %v3697 = vadd.f32 %v3687, %v3695
  %v3698 = vtanh.pop %v3697
  %3700 = vrot.lane.b32.xlu0 %v3698, 64
  %v3701 = vpop.permute.xlu0 %3700
  %v3703 = vmul.f32 %v3685, %v3701
  %3705 = vrot.lane.b32.xlu0 %v3703, 32
  %v3706 = vpop.permute.xlu0 %3705
  %v3707 = vsel %vm176, %v3706, 0
  %3709 = vmatprep.subr.mxu0 0.0
  %3710 = vmatpush1.msra.mxu0 %v3063
  %3711 = vmatprep.subr.mxu0 0.0
  %3712 = vmatpush1.msra.mxu0 %v3064
  %3713 = vmatprep.subr.mxu0 0.0
  %3714 = vmatpush1.msra.mxu0 %v3065
  %3715 = vmatprep.subr.mxu0 0.0
  %3716 = vmatpush1.msra.mxu0 %v3066
  %3717 = vmatprep.subr.mxu0 0.0
  %3718 = vmatpush1.msra.mxu0 0.0
  %3719 = vmatprep.subr.mxu0 0.0
  %3720 = vmatpush1.msra.mxu0 0.0
  %3721 = vmatprep.subr.mxu0 0.0
  %3722 = vmatpush1.msra.mxu0 0.0
  %3723 = vmatprep.subr.mxu0 0.0
  %3724 = vmatpush1.msra.mxu0 0.0
  %3725 = vmatprep.subr.mxu0 0.0
  %3726 = vmatpush1.msra.mxu0 0.0
  %3727 = vmatprep.subr.mxu0 0.0
  %3728 = vmatpush1.msra.mxu0 0.0
  %3729 = vmatprep.subr.mxu0 0.0
  %3730 = vmatpush1.msra.mxu0 0.0
  %3731 = vmatprep.subr.mxu0 0.0
  %3732 = vmatpush1.msra.mxu0 0.0
  %3733 = vmatprep.subr.mxu0 0.0
  %3734 = vmatpush1.msra.mxu0 0.0
  %3735 = vmatprep.subr.mxu0 0.0
  %3736 = vmatpush1.msra.mxu0 0.0
  %3737 = vmatprep.subr.mxu0 0.0
  %3738 = vmatpush1.msra.mxu0 0.0
  %3739 = vmatprep.subr.mxu0 0.0
  %3740 = vmatpush1.msra.mxu0 0.0
  %3741 = vmatprep.subr.mxu0 0.0
  %3742 = vmatpush1.msra.mxu0 0.0
  %3743 = vmatprep.subr.mxu0 0.0
  %3744 = vmatpush1.msra.mxu0 0.0
  %3745 = vmatprep.subr.mxu0 0.0
  %3746 = vmatpush1.msra.mxu0 0.0
  %3747 = vmatprep.subr.mxu0 0.0
  %3748 = vmatpush1.msra.mxu0 0.0
  %3749 = vmatprep.subr.mxu0 0.0
  %3750 = vmatpush1.msra.mxu0 0.0
  %3751 = vmatprep.subr.mxu0 0.0
  %3752 = vmatpush1.msra.mxu0 0.0
  %3753 = vmatprep.subr.mxu0 0.0
  %3754 = vmatpush1.msra.mxu0 0.0
  %3755 = vmatprep.subr.mxu0 0.0
  %3756 = vmatpush1.msra.mxu0 0.0
  %3757 = vmatprep.subr.mxu0 0.0
  %3758 = vmatpush1.msra.mxu0 0.0
  %3759 = vmatprep.subr.mxu0 0.0
  %3760 = vmatpush1.msra.mxu0 0.0
  %3761 = vmatprep.subr.mxu0 0.0
  %3762 = vmatpush1.msra.mxu0 0.0
  %3763 = vmatprep.subr.mxu0 0.0
  %3764 = vmatpush1.msra.mxu0 0.0
  %3765 = vmatprep.subr.mxu0 0.0
  %3766 = vmatpush1.msra.mxu0 0.0
  %3767 = vmatprep.subr.mxu0 0.0
  %3768 = vmatpush1.msra.mxu0 0.0
  %3769 = vmatprep.subr.mxu0 0.0
  %3770 = vmatpush1.msra.mxu0 0.0
  %3771 = vmatprep.subr.mxu0 0.0
  %3772 = vmatpush1.msra.mxu0 0.0
  %3773 = vmatprep.mubr.f32.mxu0 0.0
  %3774 = vmatmul.mubr.f32.gmra.mrb[0].mxu0 %v3707
  %v3775 = vpop.f32.mrb[0].mxu0
  %v3776 = vadd.f32 0.0, %v3775
  %v3777 = vpop.f32.mrb[0].mxu0
  %3778 = vdwg.mxu0
  %v3779 = vadd.f32 %v3206, %v3776
  %v3780 = vxor.u32 %v3779, 2147483648
  %v3781 = vmul.f32 %v3780, 1.442695
  %v3782 = vpow.pop %v3781
  %v3783 = vadd.f32 %v3782, 1.0
  %v3784 = vrcp.pop %v3783
  %v3785 = vmul.f32 1.0, %v3784
  %v3786 = vtanh.pop %v3779
  %v3787 = vmul.f32 %v3785, %v3697
  %3789 = vrot.lane.b32.xlu0 %v3786, 64
  %v3790 = vpop.permute.xlu0 %3789
  %v3792 = vmul.f32 %v3785, %v3790
  %3794 = vrot.lane.b32.xlu0 %v3792, 32
  %v3795 = vpop.permute.xlu0 %3794
  %v3797 = vadd.f32 %v3787, %v3795
  %v3798 = vtanh.pop %v3797
  %3800 = vrot.lane.b32.xlu0 %v3798, 64
  %v3801 = vpop.permute.xlu0 %3800
  %v3803 = vmul.f32 %v3785, %v3801
  %3805 = vrot.lane.b32.xlu0 %v3803, 32
  %v3806 = vpop.permute.xlu0 %3805
  %v3807 = vsel %vm176, %v3806, 0
  %3809 = vmatprep.subr.mxu0 0.0
  %3810 = vmatpush1.msra.mxu0 %v3063
  %3811 = vmatprep.subr.mxu0 0.0
  %3812 = vmatpush1.msra.mxu0 %v3064
  %3813 = vmatprep.subr.mxu0 0.0
  %3814 = vmatpush1.msra.mxu0 %v3065
  %3815 = vmatprep.subr.mxu0 0.0
  %3816 = vmatpush1.msra.mxu0 %v3066
  %3817 = vmatprep.subr.mxu0 0.0
  %3818 = vmatpush1.msra.mxu0 0.0
  %3819 = vmatprep.subr.mxu0 0.0
  %3820 = vmatpush1.msra.mxu0 0.0
  %3821 = vmatprep.subr.mxu0 0.0
  %3822 = vmatpush1.msra.mxu0 0.0
  %3823 = vmatprep.subr.mxu0 0.0
  %3824 = vmatpush1.msra.mxu0 0.0
  %3825 = vmatprep.subr.mxu0 0.0
  %3826 = vmatpush1.msra.mxu0 0.0
  %3827 = vmatprep.subr.mxu0 0.0
  %3828 = vmatpush1.msra.mxu0 0.0
  %3829 = vmatprep.subr.mxu0 0.0
  %3830 = vmatpush1.msra.mxu0 0.0
  %3831 = vmatprep.subr.mxu0 0.0
  %3832 = vmatpush1.msra.mxu0 0.0
  %3833 = vmatprep.subr.mxu0 0.0
  %3834 = vmatpush1.msra.mxu0 0.0
  %3835 = vmatprep.subr.mxu0 0.0
  %3836 = vmatpush1.msra.mxu0 0.0
  %3837 = vmatprep.subr.mxu0 0.0
  %3838 = vmatpush1.msra.mxu0 0.0
  %3839 = vmatprep.subr.mxu0 0.0
  %3840 = vmatpush1.msra.mxu0 0.0
  %3841 = vmatprep.subr.mxu0 0.0
  %3842 = vmatpush1.msra.mxu0 0.0
  %3843 = vmatprep.subr.mxu0 0.0
  %3844 = vmatpush1.msra.mxu0 0.0
  %3845 = vmatprep.subr.mxu0 0.0
  %3846 = vmatpush1.msra.mxu0 0.0
  %3847 = vmatprep.subr.mxu0 0.0
  %3848 = vmatpush1.msra.mxu0 0.0
  %3849 = vmatprep.subr.mxu0 0.0
  %3850 = vmatpush1.msra.mxu0 0.0
  %3851 = vmatprep.subr.mxu0 0.0
  %3852 = vmatpush1.msra.mxu0 0.0
  %3853 = vmatprep.subr.mxu0 0.0
  %3854 = vmatpush1.msra.mxu0 0.0
  %3855 = vmatprep.subr.mxu0 0.0
  %3856 = vmatpush1.msra.mxu0 0.0
  %3857 = vmatprep.subr.mxu0 0.0
  %3858 = vmatpush1.msra.mxu0 0.0
  %3859 = vmatprep.subr.mxu0 0.0
  %3860 = vmatpush1.msra.mxu0 0.0
  %3861 = vmatprep.subr.mxu0 0.0
  %3862 = vmatpush1.msra.mxu0 0.0
  %3863 = vmatprep.subr.mxu0 0.0
  %3864 = vmatpush1.msra.mxu0 0.0
  %3865 = vmatprep.subr.mxu0 0.0
  %3866 = vmatpush1.msra.mxu0 0.0
  %3867 = vmatprep.subr.mxu0 0.0
  %3868 = vmatpush1.msra.mxu0 0.0
  %3869 = vmatprep.subr.mxu0 0.0
  %3870 = vmatpush1.msra.mxu0 0.0
  %3871 = vmatprep.subr.mxu0 0.0
  %3872 = vmatpush1.msra.mxu0 0.0
  %3873 = vmatprep.mubr.f32.mxu0 0.0
  %3874 = vmatmul.mubr.f32.gmra.mrb[0].mxu0 %v3807
  %v3875 = vpop.f32.mrb[0].mxu0
  %v3876 = vadd.f32 0.0, %v3875
  %v3877 = vpop.f32.mrb[0].mxu0
  %3878 = vdwg.mxu0
  %v3879 = vadd.f32 %v3207, %v3876
  %v3880 = vxor.u32 %v3879, 2147483648
  %v3881 = vmul.f32 %v3880, 1.442695
  %v3882 = vpow.pop %v3881
  %v3883 = vadd.f32 %v3882, 1.0
  %v3884 = vrcp.pop %v3883
  %v3885 = vmul.f32 1.0, %v3884
  %v3886 = vtanh.pop %v3879
  %v3887 = vmul.f32 %v3885, %v3797
  %3889 = vrot.lane.b32.xlu0 %v3886, 64
  %v3890 = vpop.permute.xlu0 %3889
  %v3892 = vmul.f32 %v3885, %v3890
  %3894 = vrot.lane.b32.xlu0 %v3892, 32
  %v3895 = vpop.permute.xlu0 %3894
  %v3897 = vadd.f32 %v3887, %v3895
  %v3898 = vtanh.pop %v3897
  %3900 = vrot.lane.b32.xlu0 %v3898, 64
  %v3901 = vpop.permute.xlu0 %3900
  %v3903 = vmul.f32 %v3885, %v3901
  %3905 = vrot.lane.b32.xlu0 %v3903, 32
  %v3906 = vpop.permute.xlu0 %3905
  %v3907 = vsel %vm176, %v3906, 0
  %3909 = vmatprep.subr.mxu0 0.0
  %3910 = vmatpush1.msra.mxu0 %v3063
  %3911 = vmatprep.subr.mxu0 0.0
  %3912 = vmatpush1.msra.mxu0 %v3064
  %3913 = vmatprep.subr.mxu0 0.0
  %3914 = vmatpush1.msra.mxu0 %v3065
  %3915 = vmatprep.subr.mxu0 0.0
  %3916 = vmatpush1.msra.mxu0 %v3066
  %3917 = vmatprep.subr.mxu0 0.0
  %3918 = vmatpush1.msra.mxu0 0.0
  %3919 = vmatprep.subr.mxu0 0.0
  %3920 = vmatpush1.msra.mxu0 0.0
  %3921 = vmatprep.subr.mxu0 0.0
  %3922 = vmatpush1.msra.mxu0 0.0
  %3923 = vmatprep.subr.mxu0 0.0
  %3924 = vmatpush1.msra.mxu0 0.0
  %3925 = vmatprep.subr.mxu0 0.0
  %3926 = vmatpush1.msra.mxu0 0.0
  %3927 = vmatprep.subr.mxu0 0.0
  %3928 = vmatpush1.msra.mxu0 0.0
  %3929 = vmatprep.subr.mxu0 0.0
  %3930 = vmatpush1.msra.mxu0 0.0
  %3931 = vmatprep.subr.mxu0 0.0
  %3932 = vmatpush1.msra.mxu0 0.0
  %3933 = vmatprep.subr.mxu0 0.0
  %3934 = vmatpush1.msra.mxu0 0.0
  %3935 = vmatprep.subr.mxu0 0.0
  %3936 = vmatpush1.msra.mxu0 0.0
  %3937 = vmatprep.subr.mxu0 0.0
  %3938 = vmatpush1.msra.mxu0 0.0
  %3939 = vmatprep.subr.mxu0 0.0
  %3940 = vmatpush1.msra.mxu0 0.0
  %3941 = vmatprep.subr.mxu0 0.0
  %3942 = vmatpush1.msra.mxu0 0.0
  %3943 = vmatprep.subr.mxu0 0.0
  %3944 = vmatpush1.msra.mxu0 0.0
  %3945 = vmatprep.subr.mxu0 0.0
  %3946 = vmatpush1.msra.mxu0 0.0
  %3947 = vmatprep.subr.mxu0 0.0
  %3948 = vmatpush1.msra.mxu0 0.0
  %3949 = vmatprep.subr.mxu0 0.0
  %3950 = vmatpush1.msra.mxu0 0.0
  %3951 = vmatprep.subr.mxu0 0.0
  %3952 = vmatpush1.msra.mxu0 0.0
  %3953 = vmatprep.subr.mxu0 0.0
  %3954 = vmatpush1.msra.mxu0 0.0
  %3955 = vmatprep.subr.mxu0 0.0
  %3956 = vmatpush1.msra.mxu0 0.0
  %3957 = vmatprep.subr.mxu0 0.0
  %3958 = vmatpush1.msra.mxu0 0.0
  %3959 = vmatprep.subr.mxu0 0.0
  %3960 = vmatpush1.msra.mxu0 0.0
  %3961 = vmatprep.subr.mxu0 0.0
  %3962 = vmatpush1.msra.mxu0 0.0
  %3963 = vmatprep.subr.mxu0 0.0
  %3964 = vmatpush1.msra.mxu0 0.0
  %3965 = vmatprep.subr.mxu0 0.0
  %3966 = vmatpush1.msra.mxu0 0.0
  %3967 = vmatprep.subr.mxu0 0.0
  %3968 = vmatpush1.msra.mxu0 0.0
  %3969 = vmatprep.subr.mxu0 0.0
  %3970 = vmatpush1.msra.mxu0 0.0
  %3971 = vmatprep.subr.mxu0 0.0
  %3972 = vmatpush1.msra.mxu0 0.0
  %3973 = vmatprep.mubr.f32.mxu0 0.0
  %3974 = vmatmul.mubr.f32.gmra.mrb[0].mxu0 %v3907
  %v3975 = vpop.f32.mrb[0].mxu0
  %v3976 = vadd.f32 0.0, %v3975
  %v3977 = vpop.f32.mrb[0].mxu0
  %3978 = vdwg.mxu0
  %v3979 = vadd.f32 %v3208, %v3976
  %v3980 = vxor.u32 %v3979, 2147483648
  %v3981 = vmul.f32 %v3980, 1.442695
  %v3982 = vpow.pop %v3981
  %v3983 = vadd.f32 %v3982, 1.0
  %v3984 = vrcp.pop %v3983
  %v3985 = vmul.f32 1.0, %v3984
  %v3986 = vtanh.pop %v3979
  %v3987 = vmul.f32 %v3985, %v3897
  %3989 = vrot.lane.b32.xlu0 %v3986, 64
  %v3990 = vpop.permute.xlu0 %3989
  %v3992 = vmul.f32 %v3985, %v3990
  %3994 = vrot.lane.b32.xlu0 %v3992, 32
  %v3995 = vpop.permute.xlu0 %3994
  %v3997 = vadd.f32 %v3987, %v3995
  %v3998 = vtanh.pop %v3997
  %4000 = vrot.lane.b32.xlu0 %v3998, 64
  %v4001 = vpop.permute.xlu0 %4000
  %v4003 = vmul.f32 %v3985, %v4001
  %4006 = vrot.lane.b32.xlu0 %v4003, 32
  %v4007 = vpop.permute.xlu0 %4006
  %v4009 = vsel %vm29, %v3306, %v4007
  %v4012 = vsel %vm29, %v3406, %v3906
  %v4015 = vsel %vm29, %v3506, %v3806
  %v4018 = vsel %vm29, %v3606, %v3706
  %v4019 = vsel %vm29, %v3706, %v3606
  %v4020 = vsel %vm29, %v3806, %v3506
  %v4021 = vsel %vm29, %v3906, %v3406
  %v4022 = vsel %vm29, %v4007, %v3306
  %v4023 = vld [vmem:[%s1 + $0x100] sm:$0xff]
  %v4024 = vld [vmem:[%s1 + $0x108] sm:$0xff]
  %v4025 = vld [vmem:[%s1 + $0x110] sm:$0xff]
  %v4026 = vld [vmem:[%s1 + $0x118] sm:$0xff]
  %v4027 = vld [vmem:[%s2 + $0x4] sm:$0x1]
  %v4028 = vlaneseq
  %v4029 = vshrl.u32 %v4028, 7
  %v4030 = vsub.s32 0, %v4029
  %v4031 = vrot.slane %v4027, %v4030
  %v4033 = vsel %vm176, %v4009, 0
  %v4036 = vsel %vm176, %v4012, 0
  %v4039 = vsel %vm176, %v4015, 0
  %v4042 = vsel %vm176, %v4018, 0
  %v4045 = vsel %vm176, %v4019, 0
  %v4048 = vsel %vm176, %v4020, 0
  %v4051 = vsel %vm176, %v4021, 0
  %v4054 = vsel %vm176, %v4022, 0
  %4056 = vmatprep.subr.mxu0 0.0
  %4057 = vmatpush1.msra.mxu0 %v4023
  %4058 = vmatprep.subr.mxu0 0.0
  %4059 = vmatpush1.msra.mxu0 %v4024
  %4060 = vmatprep.subr.mxu0 0.0
  %4061 = vmatpush1.msra.mxu0 %v4025
  %4062 = vmatprep.subr.mxu0 0.0
  %4063 = vmatpush1.msra.mxu0 %v4026
  %4064 = vmatprep.subr.mxu0 0.0
  %4065 = vmatpush1.msra.mxu0 0.0
  %4066 = vmatprep.subr.mxu0 0.0
  %4067 = vmatpush1.msra.mxu0 0.0
  %4068 = vmatprep.subr.mxu0 0.0
  %4069 = vmatpush1.msra.mxu0 0.0
  %4070 = vmatprep.subr.mxu0 0.0
  %4071 = vmatpush1.msra.mxu0 0.0
  %4072 = vmatprep.subr.mxu0 0.0
  %4073 = vmatpush1.msra.mxu0 0.0
  %4074 = vmatprep.subr.mxu0 0.0
  %4075 = vmatpush1.msra.mxu0 0.0
  %4076 = vmatprep.subr.mxu0 0.0
  %4077 = vmatpush1.msra.mxu0 0.0
  %4078 = vmatprep.subr.mxu0 0.0
  %4079 = vmatpush1.msra.mxu0 0.0
  %4080 = vmatprep.subr.mxu0 0.0
  %4081 = vmatpush1.msra.mxu0 0.0
  %4082 = vmatprep.subr.mxu0 0.0
  %4083 = vmatpush1.msra.mxu0 0.0
  %4084 = vmatprep.subr.mxu0 0.0
  %4085 = vmatpush1.msra.mxu0 0.0
  %4086 = vmatprep.subr.mxu0 0.0
  %4087 = vmatpush1.msra.mxu0 0.0
  %4088 = vmatprep.subr.mxu0 0.0
  %4089 = vmatpush1.msra.mxu0 0.0
  %4090 = vmatprep.subr.mxu0 0.0
  %4091 = vmatpush1.msra.mxu0 0.0
  %4092 = vmatprep.subr.mxu0 0.0
  %4093 = vmatpush1.msra.mxu0 0.0
  %4094 = vmatprep.subr.mxu0 0.0
  %4095 = vmatpush1.msra.mxu0 0.0
  %4096 = vmatprep.subr.mxu0 0.0
  %4097 = vmatpush1.msra.mxu0 0.0
  %4098 = vmatprep.subr.mxu0 0.0
  %4099 = vmatpush1.msra.mxu0 0.0
  %4100 = vmatprep.subr.mxu0 0.0
  %4101 = vmatpush1.msra.mxu0 0.0
  %4102 = vmatprep.subr.mxu0 0.0
  %4103 = vmatpush1.msra.mxu0 0.0
  %4104 = vmatprep.subr.mxu0 0.0
  %4105 = vmatpush1.msra.mxu0 0.0
  %4106 = vmatprep.subr.mxu0 0.0
  %4107 = vmatpush1.msra.mxu0 0.0
  %4108 = vmatprep.subr.mxu0 0.0
  %4109 = vmatpush1.msra.mxu0 0.0
  %4110 = vmatprep.subr.mxu0 0.0
  %4111 = vmatpush1.msra.mxu0 0.0
  %4112 = vmatprep.subr.mxu0 0.0
  %4113 = vmatpush1.msra.mxu0 0.0
  %4114 = vmatprep.subr.mxu0 0.0
  %4115 = vmatpush1.msra.mxu0 0.0
  %4116 = vmatprep.subr.mxu0 0.0
  %4117 = vmatpush1.msra.mxu0 0.0
  %4118 = vmatprep.subr.mxu0 0.0
  %4119 = vmatpush1.msra.mxu0 0.0
  %4120 = vmatprep.mubr.f32.mxu0 0.0
  %4121 = vmatmul.mubr.f32.gmra.mrb[0].mxu0 %v4033
  %v4122 = vpop.f32.mrb[0].mxu0
  %v4123 = vadd.f32 %v4031, %v4122
  %v4124 = vpop.f32.mrb[0].mxu0
  %4125 = vmatprep.mubr.f32.mxu0 0.0
  %4126 = vmatmul.mubr.f32.gmra.mrb[0].mxu0 %v4036
  %v4127 = vpop.f32.mrb[0].mxu0
  %v4128 = vadd.f32 %v4031, %v4127
  %v4129 = vpop.f32.mrb[0].mxu0
  %4130 = vmatprep.mubr.f32.mxu0 0.0
  %4131 = vmatmul.mubr.f32.gmra.mrb[0].mxu0 %v4039
  %v4132 = vpop.f32.mrb[0].mxu0
  %v4133 = vadd.f32 %v4031, %v4132
  %v4134 = vpop.f32.mrb[0].mxu0
  %4135 = vmatprep.mubr.f32.mxu0 0.0
  %4136 = vmatmul.mubr.f32.gmra.mrb[0].mxu0 %v4042
  %v4137 = vpop.f32.mrb[0].mxu0
  %v4138 = vadd.f32 %v4031, %v4137
  %v4139 = vpop.f32.mrb[0].mxu0
  %4140 = vmatprep.mubr.f32.mxu0 0.0
  %4141 = vmatmul.mubr.f32.gmra.mrb[0].mxu0 %v4045
  %v4142 = vpop.f32.mrb[0].mxu0
  %v4143 = vadd.f32 %v4031, %v4142
  %v4144 = vpop.f32.mrb[0].mxu0
  %4145 = vmatprep.mubr.f32.mxu0 0.0
  %4146 = vmatmul.mubr.f32.gmra.mrb[0].mxu0 %v4048
  %v4147 = vpop.f32.mrb[0].mxu0
  %v4148 = vadd.f32 %v4031, %v4147
  %v4149 = vpop.f32.mrb[0].mxu0
  %4150 = vmatprep.mubr.f32.mxu0 0.0
  %4151 = vmatmul.mubr.f32.gmra.mrb[0].mxu0 %v4051
  %v4152 = vpop.f32.mrb[0].mxu0
  %v4153 = vadd.f32 %v4031, %v4152
  %v4154 = vpop.f32.mrb[0].mxu0
  %4155 = vmatprep.mubr.f32.mxu0 0.0
  %4156 = vmatmul.mubr.f32.gmra.mrb[0].mxu0 %v4054
  %v4157 = vpop.f32.mrb[0].mxu0
  %v4158 = vadd.f32 %v4031, %v4157
  %v4159 = vpop.f32.mrb[0].mxu0
  %4160 = vdwg.mxu0
  %4169 = vrot.lane.b32.xlu0 %v4123, 96
  %v4170 = vpop.permute.xlu0 %4169
  %4171 = vrot.lane.b32.xlu0 %v4128, 96
  %v4172 = vpop.permute.xlu0 %4171
  %4173 = vrot.lane.b32.xlu0 %v4133, 96
  %v4174 = vpop.permute.xlu0 %4173
  %4175 = vrot.lane.b32.xlu0 %v4138, 96
  %v4176 = vpop.permute.xlu0 %4175
  %4177 = vrot.lane.b32.xlu0 %v4143, 96
  %v4178 = vpop.permute.xlu0 %4177
  %4179 = vrot.lane.b32.xlu0 %v4148, 96
  %v4180 = vpop.permute.xlu0 %4179
  %4181 = vrot.lane.b32.xlu0 %v4153, 96
  %v4182 = vpop.permute.xlu0 %4181
  %4183 = vrot.lane.b32.xlu0 %v4158, 96
  %v4184 = vpop.permute.xlu0 %4183
  %v4185 = vsel %vm176, %v4123, 0
  %v4187 = vsel %vm176, %v4128, 0
  %v4189 = vsel %vm176, %v4133, 0
  %v4191 = vsel %vm176, %v4138, 0
  %v4193 = vsel %vm176, %v4143, 0
  %v4195 = vsel %vm176, %v4148, 0
  %v4197 = vsel %vm176, %v4153, 0
  %v4199 = vsel %vm176, %v4158, 0
  %v4201 = vsel %vm176, %v4170, 0
  %v4203 = vsel %vm176, %v4172, 0
  %v4205 = vsel %vm176, %v4174, 0
  %v4207 = vsel %vm176, %v4176, 0
  %v4209 = vsel %vm176, %v4178, 0
  %v4211 = vsel %vm176, %v4180, 0
  %v4213 = vsel %vm176, %v4182, 0
  %v4215 = vsel %vm176, %v4184, 0
  %4217 = vmatprep.subr.mxu0 0.0
  %4218 = vmatpush1.xpose.msra.mxu0 %v4201
  %4219 = vmatprep.subr.mxu0 0.0
  %4220 = vmatpush1.xpose.msra.mxu0 %v4203
  %4221 = vmatprep.subr.mxu0 0.0
  %4222 = vmatpush1.xpose.msra.mxu0 %v4205
  %4223 = vmatprep.subr.mxu0 0.0
  %4224 = vmatpush1.xpose.msra.mxu0 %v4207
  %4225 = vmatprep.subr.mxu0 0.0
  %4226 = vmatpush1.xpose.msra.mxu0 %v4209
  %4227 = vmatprep.subr.mxu0 0.0
  %4228 = vmatpush1.xpose.msra.mxu0 %v4211
  %4229 = vmatprep.subr.mxu0 0.0
  %4230 = vmatpush1.xpose.msra.mxu0 %v4213
  %4231 = vmatprep.subr.mxu0 0.0
  %4232 = vmatpush1.xpose.msra.mxu0 %v4215
  %4233 = vmatprep.subr.mxu0 0.0
  %4234 = vmatpush1.xpose.msra.mxu0 0.0
  %4235 = vmatprep.subr.mxu0 0.0
  %4236 = vmatpush1.xpose.msra.mxu0 0.0
  %4237 = vmatprep.subr.mxu0 0.0
  %4238 = vmatpush1.xpose.msra.mxu0 0.0
  %4239 = vmatprep.subr.mxu0 0.0
  %4240 = vmatpush1.xpose.msra.mxu0 0.0
  %4241 = vmatprep.subr.mxu0 0.0
  %4242 = vmatpush1.xpose.msra.mxu0 0.0
  %4243 = vmatprep.subr.mxu0 0.0
  %4244 = vmatpush1.xpose.msra.mxu0 0.0
  %4245 = vmatprep.subr.mxu0 0.0
  %4246 = vmatpush1.xpose.msra.mxu0 0.0
  %4247 = vmatprep.subr.mxu0 0.0
  %4248 = vmatpush1.xpose.msra.mxu0 0.0
  %4249 = vmatprep.subr.mxu0 0.0
  %4250 = vmatpush1.xpose.msra.mxu0 0.0
  %4251 = vmatprep.subr.mxu0 0.0
  %4252 = vmatpush1.xpose.msra.mxu0 0.0
  %4253 = vmatprep.subr.mxu0 0.0
  %4254 = vmatpush1.xpose.msra.mxu0 0.0
  %4255 = vmatprep.subr.mxu0 0.0
  %4256 = vmatpush1.xpose.msra.mxu0 0.0
  %4257 = vmatprep.subr.mxu0 0.0
  %4258 = vmatpush1.xpose.msra.mxu0 0.0
  %4259 = vmatprep.subr.mxu0 0.0
  %4260 = vmatpush1.xpose.msra.mxu0 0.0
  %4261 = vmatprep.subr.mxu0 0.0
  %4262 = vmatpush1.xpose.msra.mxu0 0.0
  %4263 = vmatprep.subr.mxu0 0.0
  %4264 = vmatpush1.xpose.msra.mxu0 0.0
  %4265 = vmatprep.subr.mxu0 0.0
  %4266 = vmatpush1.xpose.msra.mxu0 0.0
  %4267 = vmatprep.subr.mxu0 0.0
  %4268 = vmatpush1.xpose.msra.mxu0 0.0
  %4269 = vmatprep.subr.mxu0 0.0
  %4270 = vmatpush1.xpose.msra.mxu0 0.0
  %4271 = vmatprep.subr.mxu0 0.0
  %4272 = vmatpush1.xpose.msra.mxu0 0.0
  %4273 = vmatprep.subr.mxu0 0.0
  %4274 = vmatpush1.xpose.msra.mxu0 0.0
  %4275 = vmatprep.subr.mxu0 0.0
  %4276 = vmatpush1.xpose.msra.mxu0 0.0
  %4277 = vmatprep.subr.mxu0 0.0
  %4278 = vmatpush1.xpose.msra.mxu0 0.0
  %4279 = vmatprep.subr.mxu0 0.0
  %4280 = vmatpush1.xpose.msra.mxu0 0.0
  %4281 = vmatprep.mubr.f32.mxu0 0.0
  %4282 = vmatmul.mubr.f32.gmra.mrb[0].mxu0 %v4185
  %v4283 = vpop.f32.mrb[0].mxu0
  %v4284 = vadd.f32 0.0, %v4283
  %v4285 = vpop.f32.mrb[0].mxu0
  %4286 = vmatprep.mubr.f32.mxu0 0.0
  %4287 = vmatmul.mubr.f32.gmra.mrb[0].mxu0 %v4187
  %v4288 = vpop.f32.mrb[0].mxu0
  %v4289 = vadd.f32 0.0, %v4288
  %v4290 = vpop.f32.mrb[0].mxu0
  %4291 = vmatprep.mubr.f32.mxu0 0.0
  %4292 = vmatmul.mubr.f32.gmra.mrb[0].mxu0 %v4189
  %v4293 = vpop.f32.mrb[0].mxu0
  %v4294 = vadd.f32 0.0, %v4293
  %v4295 = vpop.f32.mrb[0].mxu0
  %4296 = vmatprep.mubr.f32.mxu0 0.0
  %4297 = vmatmul.mubr.f32.gmra.mrb[0].mxu0 %v4191
  %v4298 = vpop.f32.mrb[0].mxu0
  %v4299 = vadd.f32 0.0, %v4298
  %v4300 = vpop.f32.mrb[0].mxu0
  %4301 = vmatprep.mubr.f32.mxu0 0.0
  %4302 = vmatmul.mubr.f32.gmra.mrb[0].mxu0 %v4193
  %v4303 = vpop.f32.mrb[0].mxu0
  %v4304 = vadd.f32 0.0, %v4303
  %v4305 = vpop.f32.mrb[0].mxu0
  %4306 = vmatprep.mubr.f32.mxu0 0.0
  %4307 = vmatmul.mubr.f32.gmra.mrb[0].mxu0 %v4195
  %v4308 = vpop.f32.mrb[0].mxu0
  %v4309 = vadd.f32 0.0, %v4308
  %v4310 = vpop.f32.mrb[0].mxu0
  %4311 = vmatprep.mubr.f32.mxu0 0.0
  %4312 = vmatmul.mubr.f32.gmra.mrb[0].mxu0 %v4197
  %v4313 = vpop.f32.mrb[0].mxu0
  %v4314 = vadd.f32 0.0, %v4313
  %v4315 = vpop.f32.mrb[0].mxu0
  %4316 = vmatprep.mubr.f32.mxu0 0.0
  %4317 = vmatmul.mubr.f32.gmra.mrb[0].mxu0 %v4199
  %v4318 = vpop.f32.mrb[0].mxu0
  %v4319 = vadd.f32 0.0, %v4318
  %v4320 = vpop.f32.mrb[0].mxu0
  %4321 = vdwg.mxu0
  %v4322 = vmul.f32 %v4284, 0.17677669
  %v4323 = vmul.f32 %v4289, 0.17677669
  %v4324 = vmul.f32 %v4294, 0.17677669
  %v4325 = vmul.f32 %v4299, 0.17677669
  %v4326 = vmul.f32 %v4304, 0.17677669
  %v4327 = vmul.f32 %v4309, 0.17677669
  %v4328 = vmul.f32 %v4314, 0.17677669
  %v4329 = vmul.f32 %v4319, 0.17677669
  %v4330 = vsel %vm147, %v4322, -1e+30
  %v4331 = vsel %vm148, %v4323, -1e+30
  %v4332 = vsel %vm149, %v4324, -1e+30
  %v4333 = vsel %vm150, %v4325, -1e+30
  %v4334 = vsel %vm151, %v4326, -1e+30
  %v4335 = vsel %vm152, %v4327, -1e+30
  %v4336 = vsel %vm153, %v4328, -1e+30
  %v4337 = vsel %vm154, %v4329, -1e+30
  %vm4338 = vcmask 523264
  %v4339 = vsel %vm4338, %v4330, -inf
  %4340 = vmax.xlane.f32.xlu0 %v4339
  %v4341 = vpop.xlane.xlu0 %4340
  %v4342 = vsel %vm4338, %v4331, -inf
  %4343 = vmax.xlane.f32.xlu0 %v4342
  %v4344 = vpop.xlane.xlu0 %4343
  %v4345 = vsel %vm4338, %v4332, -inf
  %4346 = vmax.xlane.f32.xlu0 %v4345
  %v4347 = vpop.xlane.xlu0 %4346
  %v4348 = vsel %vm4338, %v4333, -inf
  %4349 = vmax.xlane.f32.xlu0 %v4348
  %v4350 = vpop.xlane.xlu0 %4349
  %v4351 = vsel %vm4338, %v4334, -inf
  %4352 = vmax.xlane.f32.xlu0 %v4351
  %v4353 = vpop.xlane.xlu0 %4352
  %v4354 = vsel %vm4338, %v4335, -inf
  %4355 = vmax.xlane.f32.xlu0 %v4354
  %v4356 = vpop.xlane.xlu0 %4355
  %v4357 = vsel %vm4338, %v4336, -inf
  %4358 = vmax.xlane.f32.xlu0 %v4357
  %v4359 = vpop.xlane.xlu0 %4358
  %v4360 = vsel %vm4338, %v4337, -inf
  %4361 = vmax.xlane.f32.xlu0 %v4360
  %v4362 = vpop.xlane.xlu0 %4361
  %v4363 = vsub.f32 %v4330, %v4341
  %v4364 = vsub.f32 %v4331, %v4344
  %v4365 = vsub.f32 %v4332, %v4347
  %v4366 = vsub.f32 %v4333, %v4350
  %v4367 = vsub.f32 %v4334, %v4353
  %v4368 = vsub.f32 %v4335, %v4356
  %v4369 = vsub.f32 %v4336, %v4359
  %v4370 = vsub.f32 %v4337, %v4362
  %v4371 = vmul.f32 %v4363, 1.442695
  %v4372 = vpow.pop %v4371
  %v4373 = vmul.f32 %v4364, 1.442695
  %v4374 = vpow.pop %v4373
  %v4375 = vmul.f32 %v4365, 1.442695
  %v4376 = vpow.pop %v4375
  %v4377 = vmul.f32 %v4366, 1.442695
  %v4378 = vpow.pop %v4377
  %v4379 = vmul.f32 %v4367, 1.442695
  %v4380 = vpow.pop %v4379
  %v4381 = vmul.f32 %v4368, 1.442695
  %v4382 = vpow.pop %v4381
  %v4383 = vmul.f32 %v4369, 1.442695
  %v4384 = vpow.pop %v4383
  %v4385 = vmul.f32 %v4370, 1.442695
  %v4386 = vpow.pop %v4385
  %v4387 = vsel %vm4338, %v4372, 0.0
  %4388 = vadd.xlane.f32.xlu0 %v4387
  %v4389 = vpop.xlane.xlu0 %4388
  %v4390 = vsel %vm4338, %v4374, 0.0
  %4391 = vadd.xlane.f32.xlu0 %v4390
  %v4392 = vpop.xlane.xlu0 %4391
  %v4393 = vsel %vm4338, %v4376, 0.0
  %4394 = vadd.xlane.f32.xlu0 %v4393
  %v4395 = vpop.xlane.xlu0 %4394
  %v4396 = vsel %vm4338, %v4378, 0.0
  %4397 = vadd.xlane.f32.xlu0 %v4396
  %v4398 = vpop.xlane.xlu0 %4397
  %v4399 = vsel %vm4338, %v4380, 0.0
  %4400 = vadd.xlane.f32.xlu0 %v4399
  %v4401 = vpop.xlane.xlu0 %4400
  %v4402 = vsel %vm4338, %v4382, 0.0
  %4403 = vadd.xlane.f32.xlu0 %v4402
  %v4404 = vpop.xlane.xlu0 %4403
  %v4405 = vsel %vm4338, %v4384, 0.0
  %4406 = vadd.xlane.f32.xlu0 %v4405
  %v4407 = vpop.xlane.xlu0 %4406
  %v4408 = vsel %vm4338, %v4386, 0.0
  %4409 = vadd.xlane.f32.xlu0 %v4408
  %v4410 = vpop.xlane.xlu0 %4409
  %v4411 = vrcp.pop %v4389
  %v4412 = vmul.f32 %v4372, %v4411
  %v4413 = vrcp.pop %v4392
  %v4414 = vmul.f32 %v4374, %v4413
  %v4415 = vrcp.pop %v4395
  %v4416 = vmul.f32 %v4376, %v4415
  %v4417 = vrcp.pop %v4398
  %v4418 = vmul.f32 %v4378, %v4417
  %v4419 = vrcp.pop %v4401
  %v4420 = vmul.f32 %v4380, %v4419
  %v4421 = vrcp.pop %v4404
  %v4422 = vmul.f32 %v4382, %v4421
  %v4423 = vrcp.pop %v4407
  %v4424 = vmul.f32 %v4384, %v4423
  %v4425 = vrcp.pop %v4410
  %v4426 = vmul.f32 %v4386, %v4425
  %v4428 = vsel %vm4338, %v4412, 0
  %v4431 = vsel %vm4338, %v4414, 0
  %v4434 = vsel %vm4338, %v4416, 0
  %v4437 = vsel %vm4338, %v4418, 0
  %v4440 = vsel %vm4338, %v4420, 0
  %v4443 = vsel %vm4338, %v4422, 0
  %v4446 = vsel %vm4338, %v4424, 0
  %v4449 = vsel %vm4338, %v4426, 0
  %4451 = vmatprep.subr.mxu0 0.0
  %4452 = vmatpush1.msra.mxu0 %v4123
  %4453 = vmatprep.subr.mxu0 0.0
  %4454 = vmatpush1.msra.mxu0 %v4128
  %4455 = vmatprep.subr.mxu0 0.0
  %4456 = vmatpush1.msra.mxu0 %v4133
  %4457 = vmatprep.subr.mxu0 0.0
  %4458 = vmatpush1.msra.mxu0 %v4138
  %4459 = vmatprep.subr.mxu0 0.0
  %4460 = vmatpush1.msra.mxu0 %v4143
  %4461 = vmatprep.subr.mxu0 0.0
  %4462 = vmatpush1.msra.mxu0 %v4148
  %4463 = vmatprep.subr.mxu0 0.0
  %4464 = vmatpush1.msra.mxu0 %v4153
  %4465 = vmatprep.subr.mxu0 0.0
  %4466 = vmatpush1.msra.mxu0 %v4158
  %4467 = vmatprep.subr.mxu0 0.0
  %4468 = vmatpush1.msra.mxu0 0.0
  %4469 = vmatprep.subr.mxu0 0.0
  %4470 = vmatpush1.msra.mxu0 0.0
  %4471 = vmatprep.subr.mxu0 0.0
  %4472 = vmatpush1.msra.mxu0 0.0
  %4473 = vmatprep.subr.mxu0 0.0
  %4474 = vmatpush1.msra.mxu0 0.0
  %4475 = vmatprep.subr.mxu0 0.0
  %4476 = vmatpush1.msra.mxu0 0.0
  %4477 = vmatprep.subr.mxu0 0.0
  %4478 = vmatpush1.msra.mxu0 0.0
  %4479 = vmatprep.subr.mxu0 0.0
  %4480 = vmatpush1.msra.mxu0 0.0
  %4481 = vmatprep.subr.mxu0 0.0
  %4482 = vmatpush1.msra.mxu0 0.0
  %4483 = vmatprep.subr.mxu0 0.0
  %4484 = vmatpush1.msra.mxu0 0.0
  %4485 = vmatprep.subr.mxu0 0.0
  %4486 = vmatpush1.msra.mxu0 0.0
  %4487 = vmatprep.subr.mxu0 0.0
  %4488 = vmatpush1.msra.mxu0 0.0
  %4489 = vmatprep.subr.mxu0 0.0
  %4490 = vmatpush1.msra.mxu0 0.0
  %4491 = vmatprep.subr.mxu0 0.0
  %4492 = vmatpush1.msra.mxu0 0.0
  %4493 = vmatprep.subr.mxu0 0.0
  %4494 = vmatpush1.msra.mxu0 0.0
  %4495 = vmatprep.subr.mxu0 0.0
  %4496 = vmatpush1.msra.mxu0 0.0
  %4497 = vmatprep.subr.mxu0 0.0
  %4498 = vmatpush1.msra.mxu0 0.0
  %4499 = vmatprep.subr.mxu0 0.0
  %4500 = vmatpush1.msra.mxu0 0.0
  %4501 = vmatprep.subr.mxu0 0.0
  %4502 = vmatpush1.msra.mxu0 0.0
  %4503 = vmatprep.subr.mxu0 0.0
  %4504 = vmatpush1.msra.mxu0 0.0
  %4505 = vmatprep.subr.mxu0 0.0
  %4506 = vmatpush1.msra.mxu0 0.0
  %4507 = vmatprep.subr.mxu0 0.0
  %4508 = vmatpush1.msra.mxu0 0.0
  %4509 = vmatprep.subr.mxu0 0.0
  %4510 = vmatpush1.msra.mxu0 0.0
  %4511 = vmatprep.subr.mxu0 0.0
  %4512 = vmatpush1.msra.mxu0 0.0
  %4513 = vmatprep.subr.mxu0 0.0
  %4514 = vmatpush1.msra.mxu0 0.0
  %4515 = vmatprep.mubr.f32.mxu0 0.0
  %4516 = vmatmul.mubr.f32.gmra.mrb[0].mxu0 %v4428
  %v4517 = vpop.f32.mrb[0].mxu0
  %v4518 = vadd.f32 0.0, %v4517
  %v4519 = vpop.f32.mrb[0].mxu0
  %4520 = vmatprep.mubr.f32.mxu0 0.0
  %4521 = vmatmul.mubr.f32.gmra.mrb[0].mxu0 %v4431
  %v4522 = vpop.f32.mrb[0].mxu0
  %v4523 = vadd.f32 0.0, %v4522
  %v4524 = vpop.f32.mrb[0].mxu0
  %4525 = vmatprep.mubr.f32.mxu0 0.0
  %4526 = vmatmul.mubr.f32.gmra.mrb[0].mxu0 %v4434
  %v4527 = vpop.f32.mrb[0].mxu0
  %v4528 = vadd.f32 0.0, %v4527
  %v4529 = vpop.f32.mrb[0].mxu0
  %4530 = vmatprep.mubr.f32.mxu0 0.0
  %4531 = vmatmul.mubr.f32.gmra.mrb[0].mxu0 %v4437
  %v4532 = vpop.f32.mrb[0].mxu0
  %v4533 = vadd.f32 0.0, %v4532
  %v4534 = vpop.f32.mrb[0].mxu0
  %4535 = vmatprep.mubr.f32.mxu0 0.0
  %4536 = vmatmul.mubr.f32.gmra.mrb[0].mxu0 %v4440
  %v4537 = vpop.f32.mrb[0].mxu0
  %v4538 = vadd.f32 0.0, %v4537
  %v4539 = vpop.f32.mrb[0].mxu0
  %4540 = vmatprep.mubr.f32.mxu0 0.0
  %4541 = vmatmul.mubr.f32.gmra.mrb[0].mxu0 %v4443
  %v4542 = vpop.f32.mrb[0].mxu0
  %v4543 = vadd.f32 0.0, %v4542
  %v4544 = vpop.f32.mrb[0].mxu0
  %4545 = vmatprep.mubr.f32.mxu0 0.0
  %4546 = vmatmul.mubr.f32.gmra.mrb[0].mxu0 %v4446
  %v4547 = vpop.f32.mrb[0].mxu0
  %v4548 = vadd.f32 0.0, %v4547
  %v4549 = vpop.f32.mrb[0].mxu0
  %4550 = vmatprep.mubr.f32.mxu0 0.0
  %4551 = vmatmul.mubr.f32.gmra.mrb[0].mxu0 %v4449
  %v4552 = vpop.f32.mrb[0].mxu0
  %v4553 = vadd.f32 0.0, %v4552
  %v4554 = vpop.f32.mrb[0].mxu0
  %4555 = vdwg.mxu0
  %4556 = vst [vmem:[%s3] sm:$0xff] %v4518
  %4557 = vst [vmem:[%s3 + $0x8] sm:$0xff] %v4523
  %4558 = vst [vmem:[%s3 + $0x10] sm:$0xff] %v4528
  %4559 = vst [vmem:[%s3 + $0x18] sm:$0xff] %v4533
  %4560 = vst [vmem:[%s3 + $0x20] sm:$0xff] %v4538
  %4561 = vst [vmem:[%s3 + $0x28] sm:$0xff] %v4543
  %4562 = vst [vmem:[%s3 + $0x30] sm:$0xff] %v4548
  %4563 = vst [vmem:[%s3 + $0x38] sm:$0xff] %v4553
  // Predicated region
  $region14: #{forward.1} parent=0 // pred_check
    _
  $region15: #{forward.1} parent=0 // pred_check_branch
    %4565 = sbr.rel (0) target = $region17
  $region16: #{forward.1} parent=0 // pred_region
    _
  $region17: #{forward.1} parent=0 // pred_fallthru
    _
  // Predicated region
  $region18: #{forward.1} parent=0 // pred_check
    _
  $region19: #{forward.1} parent=0 // pred_check_branch
    %4567 = sbr.rel (0) target = $region21
  $region20: #{forward.1} parent=0 // pred_region
    _
  $region21: #{forward.1} parent=0 // pred_fallthru
    _

</llo_original>
